<compile_context>
chip_gen: v7x
topology: tpu7x:2x2x1
jax: 0.10.0
libtpu: 0.0.40
codegen_flags: <defaults>
</compile_context>

<pallas_src>
import functools

import jax
import jax.numpy as jnp
from jax import lax
from jax.experimental import pallas as pl
from jax.experimental.pallas import tpu as pltpu

K = 7                    # depthwise kernel size
PAD = (K - 1) // 2       # 3
BN_EPS = 1e-5

# ~24 f32 vregs allowed for one depthwise chunk accumulator (C * chunk_lanes).
_CHUNK_ACC_ELEMS = 24 * 8 * 128


def _round_up(v, m):
    return (v + m - 1) // m * m


def block_kernel(x_ref, dw1_w_ref, dw1_b_ref, f12_w_ref, f12_b_ref,
                 g_w_ref, g_b_ref, dw2_w_ref, dw2_b_ref, gapmask_ref,
                 out_ref, xe1_ref, xe2_ref,
                 *, H, W, B_tile, cm_pad, chunk_rows):
    """One grid step = B_tile images.  Activations are (C, lanes)."""
    C = out_ref.shape[1]
    Wp = W + 2 * PAD                       # padded row stride (zero columns between rows)
    Ht = B_tile * H + (B_tile - 1) * PAD   # stacked rows (PAD zero rows between images)
    LW = Ht * Wp                           # work-layout width (lane axis)
    LE = xe1_ref.shape[1]
    TOP = _round_up(PAD * Wp + PAD, 128)   # 128-aligned top margin (covers dy,dx = -PAD)

    # Hoisted depthwise weights / biases (review item 4): two aligned loads each
    # instead of 49 one-lane VMEM loads per conv per chunk.
    w1 = dw1_w_ref[...]            # (C, 49) f32
    b1 = dw1_b_ref[...]            # (C, 1)  f32
    w2 = dw2_w_ref[...]
    b2 = dw2_b_ref[...]
    f12_w = f12_w_ref[...]         # (2*cm_pad, C) bf16
    f12_b = f12_b_ref[...]         # (2*cm_pad, 1) f32
    g_w = g_w_ref[...]             # (C, cm_pad)   bf16
    g_b = g_b_ref[...]             # (C, 1)        f32

    n_chunks = -(-Ht // chunk_rows)

    def dw_chunk(src_ref, w, row0, nrows):
        """7x7 depthwise conv over `nrows` stride-rows starting at `row0`.

        Each tap is one contiguous lane slice of the padded-stride buffer, so
        no column mask / per-dx grouping is needed (review item 2).  `acc` is
        the only live (C, chunk) array and is bounded to ~24 vregs by the
        chunk_rows choice (review item 1).
        """
        CH = nrows * Wp
        acc = jnp.zeros((C, CH), jnp.float32)
        for dy in range(K):
            for dx in range(K):
                off = TOP + (row0 + dy - PAD) * Wp + (dx - PAD)
                tap = src_ref[:, off:off + CH]                       # (C, CH)
                acc = acc + tap * w[:, dy * K + dx:dy * K + dx + 1]
        return acc

    # ---- zero the staging buffers ------------------------------------------
    # xe1 is fully re-zeroed every grid step (the zero gaps/margins are never
    # overwritten by the per-row staging below); xe2 only needs its margins,
    # because phase 1 fully rewrites its image region (gap-masked).  Re-zeroing
    # every step keeps the grid free of carried state, so the batch axis can
    # safely run "parallel" (megacore / v7x two-TC split).
    xe1_ref[...] = jnp.zeros((C, LE), jnp.float32)
    xe2_ref[:, 0:TOP] = jnp.zeros((C, TOP), jnp.float32)
    xe2_ref[:, TOP + LW:LE] = jnp.zeros((C, LE - TOP - LW), jnp.float32)

    # ---- stage the input rows with padded stride ----------------------------
    for b in range(B_tile):
        for y in range(H):
            row = b * (H + PAD) + y
            dst = TOP + row * Wp + PAD
            xe1_ref[:, dst:dst + W] = x_ref[b, :, y * W:(y + 1) * W]

    # ---- phase 1 (per spatial chunk): dwconv1 -> f1/f2 -> relu6* -> g --------
    for ci in range(n_chunks):
        row0 = ci * chunk_rows
        nrows = min(chunk_rows, Ht - row0)
        CH = nrows * Wp
        lane0 = row0 * Wp

        y1 = dw_chunk(xe1_ref, w1, row0, nrows) + b1                 # (C, CH) f32
        # f1 and f2 fused into one MXU matmul (bf16 operands, f32 accumulation).
        x12 = jnp.dot(f12_w, y1.astype(jnp.bfloat16),
                      preferred_element_type=jnp.float32) + f12_b    # (2*cm_pad, CH)
        xm = jnp.clip(x12[:cm_pad], 0.0, 6.0) * x12[cm_pad:]         # relu6(x1) * x2
        xg = jnp.dot(g_w, xm.astype(jnp.bfloat16),
                     preferred_element_type=jnp.float32) + g_b       # (C, CH)
        # Stage for dwconv2: one contiguous store; the gap mask re-zeroes the
        # padding columns (and inter-image gap rows) so dwconv2 again sees
        # exact zero-padding.
        xe2_ref[:, TOP + lane0:TOP + lane0 + CH] = (
            xg * gapmask_ref[:, lane0:lane0 + CH])

    # ---- phase 2 (per spatial chunk): dwconv2 -> + residual -> store --------
    for ci in range(n_chunks):
        row0 = ci * chunk_rows
        nrows = min(chunk_rows, Ht - row0)

        z = dw_chunk(xe2_ref, w2, row0, nrows) + b2                  # (C, CH) f32
        # Per-row extraction back to the compact (C, H*W) layout; the residual
        # is re-read from the (still VMEM-resident) input block instead of
        # keeping x live across both matmuls and both dwconvs (review item 9).
        for j in range(nrows):
            b, y = divmod(row0 + j, H + PAD)
            if y >= H:            # zero gap row between stacked images
                continue
            out_ref[b, :, y * W:(y + 1) * W] = (
                x_ref[b, :, y * W:(y + 1) * W]
                + z[:, j * Wp + PAD:j * Wp + PAD + W]).astype(out_ref.dtype)


def block_forward(x_nchw, p):
    """x_nchw: (N, C, H, W) float32 -> (N, C, H, W) float32."""
    N, C, H, W = x_nchw.shape
    cm = p["f1_w"].shape[0]
    cm_pad = _round_up(cm, 16)            # 16: bf16 sublane packing (review item 8)
    HW = H * W
    Wp = W + 2 * PAD

    # Images per grid step: keep the work width (matmul N, store width) >= ~256
    # lanes for small late-stage feature maps (review item 5).  B_tile == 1 here.
    want = max(1, -(-256 // (H * Wp)))
    B_tile = 1
    for d in range(min(want, N), 0, -1):
        if N % d == 0:
            B_tile = d
            break

    Ht = B_tile * H + (B_tile - 1) * PAD
    LW = Ht * Wp
    TOP = _round_up(PAD * Wp + PAD, 128)
    LE = TOP + _round_up(LW + PAD * Wp + PAD, 128)

    # Rows per depthwise chunk: keep the (C, chunk) accumulator at ~24 f32 vregs.
    chunk_rows = max(1, min(Ht, (_CHUNK_ACC_ELEMS // max(C, 8)) // Wp))

    x = x_nchw.reshape(N, C, HW).astype(jnp.float32)      # free reshape, stays NCHW

    # ---- fold BN (eval: gamma=1, beta=0, mean=0, var=1) and pack params ------
    bn = 1.0 / jnp.sqrt(1.0 + BN_EPS)
    dw1_w = (p["dw1_w"] * bn).reshape(C, K * K)
    dw1_b = (p["dw1_b"] * bn).reshape(C, 1)
    dw2_w = p["dw2_w"].reshape(C, K * K)
    dw2_b = p["dw2_b"].reshape(C, 1)

    f12_w = jnp.zeros((2 * cm_pad, C), jnp.float32)
    f12_w = f12_w.at[:cm].set(p["f1_w"]).at[cm_pad:cm_pad + cm].set(p["f2_w"])
    f12_b = jnp.zeros((2 * cm_pad, 1), jnp.float32)
    f12_b = f12_b.at[:cm, 0].set(p["f1_b"]).at[cm_pad:cm_pad + cm, 0].set(p["f2_b"])
    g_w = jnp.zeros((C, cm_pad), jnp.float32).at[:, :cm].set(p["g_w"] * bn)
    g_b = (p["g_b"] * bn).reshape(C, 1)

    # Gap mask over the work layout: 1 on real pixels, 0 on the zero-padding
    # columns between rows and the PAD gap rows between stacked images.
    pos = jnp.arange(LW, dtype=jnp.int32)
    col = pos % Wp
    row_in_img = (pos // Wp) % (H + PAD)
    gapmask = ((col >= PAD) & (col < PAD + W) & (row_in_img < H)
               ).astype(jnp.float32).reshape(1, LW)

    def rep_spec(a):                      # whole (small) array, same block every step
        nd = a.ndim
        return pl.BlockSpec(a.shape, lambda n, nd=nd: (0,) * nd)

    inputs = (x, dw1_w, dw1_b, f12_w.astype(jnp.bfloat16), f12_b,
              g_w.astype(jnp.bfloat16), g_b, dw2_w, dw2_b, gapmask)

    flops = N * (2 * 2 * C * K * K * H * Wp              # two depthwise convs
                 + 2 * (2 * cm_pad) * C * H * Wp         # fused f1/f2 matmul
                 + 2 * C * cm_pad * H * Wp)              # g matmul
    bytes_accessed = sum(int(a.size) * a.dtype.itemsize for a in inputs) \
        + N * C * HW * 4

    out = pl.pallas_call(
        functools.partial(block_kernel, H=H, W=W, B_tile=B_tile,
                          cm_pad=cm_pad, chunk_rows=chunk_rows),
        out_shape=jax.ShapeDtypeStruct((N, C, HW), jnp.float32),
        grid=(N // B_tile,),
        in_specs=[pl.BlockSpec((B_tile, C, HW), lambda n: (n, 0, 0))]
                 + [rep_spec(a) for a in inputs[1:]],
        out_specs=pl.BlockSpec((B_tile, C, HW), lambda n: (n, 0, 0)),
        scratch_shapes=[pltpu.VMEM((C, LE), jnp.float32),    # staged input / reuse
                        pltpu.VMEM((C, LE), jnp.float32)],   # staged g-output
        compiler_params=pltpu.CompilerParams(
            dimension_semantics=("parallel",),        # independent images -> megacore
            vmem_limit_bytes=32 * 1024 * 1024),
        cost_estimate=pl.CostEstimate(
            flops=int(flops), transcendentals=0,
            bytes_accessed=int(bytes_accessed)),
    )(*inputs)

    return out.reshape(N, C, H, W)


def init_params(key, dim, mlp_ratio=3):
    """Deterministic synthetic params in their 'logical' (PyTorch-squeezed) shapes."""
    cm = mlp_ratio * dim
    ks = jax.random.split(key, 10)

    def nrm(k, shape, scale=0.1):
        return scale * jax.random.normal(k, shape, jnp.float32)

    return dict(
        dw1_w=nrm(ks[0], (dim, K, K)),    # PyTorch (dim, 1, 7, 7) squeezed
        dw1_b=nrm(ks[1], (dim,)),
        f1_w=nrm(ks[2], (cm, dim)),       # PyTorch (cm, dim, 1, 1) squeezed
        f1_b=nrm(ks[3], (cm,)),
        f2_w=nrm(ks[4], (cm, dim)),
        f2_b=nrm(ks[5], (cm,)),
        g_w=nrm(ks[6], (dim, cm)),        # PyTorch (dim, cm, 1, 1) squeezed
        g_b=nrm(ks[7], (dim,)),
        dw2_w=nrm(ks[8], (dim, K, K)),
        dw2_b=nrm(ks[9], (dim,)),
    )


def block_ref(x, p):
    """Pure-JAX reference (NCHW), with BN folded exactly like the kernel wrapper."""
    N, C, H, W = x.shape
    bn = 1.0 / jnp.sqrt(1.0 + BN_EPS)

    def dw(v, w, b):                      # w: (C, K, K), b: (C,)
        w_hwio = jnp.transpose(w, (1, 2, 0))[:, :, None, :]     # (K, K, 1, C)
        y = lax.conv_general_dilated(
            v, w_hwio, (1, 1), ((PAD, PAD), (PAD, PAD)),
            dimension_numbers=("NCHW", "HWIO", "NCHW"), feature_group_count=C)
        return y + b[None, :, None, None]

    y = dw(x, p["dw1_w"] * bn, p["dw1_b"] * bn)
    x1 = jnp.einsum("mc,nchw->nmhw", p["f1_w"], y) + p["f1_b"][None, :, None, None]
    x2 = jnp.einsum("mc,nchw->nmhw", p["f2_w"], y) + p["f2_b"][None, :, None, None]
    xm = jnp.clip(x1, 0.0, 6.0) * x2
    g = jnp.einsum("cm,nmhw->nchw", p["g_w"] * bn, xm) \
        + (p["g_b"] * bn)[None, :, None, None]
    return x + dw(g, p["dw2_w"], p["dw2_b"])


if __name__ == "__main__":
    key = jax.random.PRNGKey(0)
    kx, kp = jax.random.split(key)

    N, DIM, H, W = 2, 4, 16, 16
    x = jax.random.normal(kx, (N, DIM, H, W), jnp.float32)      # NCHW like PyTorch
    params = init_params(kp, DIM, mlp_ratio=3)

    out = jax.block_until_ready(block_forward(x, params))
    ref = jax.block_until_ready(block_ref(x, params))

    assert out.shape == x.shape, (out.shape, x.shape)
    err = float(jnp.max(jnp.abs(out - ref)))
    # bf16 is only used for the 1x1-conv MXU operands (f32 accumulation);
    # the depthwise convs and residual stay f32, so the error is well inside this.
    assert jnp.allclose(out, ref, atol=3e-3, rtol=3e-3), err
    print("KERNEL_OK")
</pallas_src>

<mosaic_0001>
module attributes {stable_mosaic.version = 11 : i64} {
  func.func @block_kernel(%arg0: i32, %arg1: memref<1x4x256xf32, #tpu.memory_space<vmem>>, %arg2: memref<4x49xf32, #tpu.memory_space<vmem>>, %arg3: memref<4x1xf32, #tpu.memory_space<vmem>>, %arg4: memref<32x4xbf16, #tpu.memory_space<vmem>>, %arg5: memref<32x1xf32, #tpu.memory_space<vmem>>, %arg6: memref<4x16xbf16, #tpu.memory_space<vmem>>, %arg7: memref<4x1xf32, #tpu.memory_space<vmem>>, %arg8: memref<4x49xf32, #tpu.memory_space<vmem>>, %arg9: memref<4x1xf32, #tpu.memory_space<vmem>>, %arg10: memref<1x352xf32, #tpu.memory_space<vmem>>, %arg11: memref<1x4x256xf32, #tpu.memory_space<vmem>>, %arg12: memref<4x640xf32, #tpu.memory_space<vmem>>, %arg13: memref<4x640xf32, #tpu.memory_space<vmem>>) attributes {dimension_semantics = [#tpu.dimension_semantics<parallel>], iteration_bounds = array<i64: 2>, scalar_prefetch = 0 : i64, scratch_operands = 2 : i64, tpu.core_type = #tpu.core_type<tc>, window_params = [{transform_indices = @transform_0, window_bounds = array<i64: 1, 4, 256>}, {pipeline_mode = #tpu.pipeline_mode<synchronous>, transform_indices = @transform_1, window_bounds = array<i64: 4, 49>}, {pipeline_mode = #tpu.pipeline_mode<synchronous>, transform_indices = @transform_2, window_bounds = array<i64: 4, 1>}, {pipeline_mode = #tpu.pipeline_mode<synchronous>, transform_indices = @transform_3, window_bounds = array<i64: 32, 4>}, {pipeline_mode = #tpu.pipeline_mode<synchronous>, transform_indices = @transform_4, window_bounds = array<i64: 32, 1>}, {pipeline_mode = #tpu.pipeline_mode<synchronous>, transform_indices = @transform_5, window_bounds = array<i64: 4, 16>}, {pipeline_mode = #tpu.pipeline_mode<synchronous>, transform_indices = @transform_6, window_bounds = array<i64: 4, 1>}, {pipeline_mode = #tpu.pipeline_mode<synchronous>, transform_indices = @transform_7, window_bounds = array<i64: 4, 49>}, {pipeline_mode = #tpu.pipeline_mode<synchronous>, transform_indices = @transform_8, window_bounds = array<i64: 4, 1>}, {pipeline_mode = #tpu.pipeline_mode<synchronous>, transform_indices = @transform_9, window_bounds = array<i64: 1, 352>}, {transform_indices = @transform_10, window_bounds = array<i64: 1, 4, 256>}]} {
    %c0 = arith.constant 0 : index
    %c0_0 = arith.constant 0 : index
    %0 = vector.load %arg2[%c0, %c0_0] : memref<4x49xf32, #tpu.memory_space<vmem>>, vector<4x49xf32>
    %c0_1 = arith.constant 0 : index
    %c0_2 = arith.constant 0 : index
    %1 = vector.load %arg3[%c0_1, %c0_2] : memref<4x1xf32, #tpu.memory_space<vmem>>, vector<4x1xf32>
    %c0_3 = arith.constant 0 : index
    %c0_4 = arith.constant 0 : index
    %2 = vector.load %arg8[%c0_3, %c0_4] : memref<4x49xf32, #tpu.memory_space<vmem>>, vector<4x49xf32>
    %c0_5 = arith.constant 0 : index
    %c0_6 = arith.constant 0 : index
    %3 = vector.load %arg9[%c0_5, %c0_6] : memref<4x1xf32, #tpu.memory_space<vmem>>, vector<4x1xf32>
    %c0_7 = arith.constant 0 : index
    %c0_8 = arith.constant 0 : index
    %4 = vector.load %arg4[%c0_7, %c0_8] : memref<32x4xbf16, #tpu.memory_space<vmem>>, vector<32x4xbf16>
    %c0_9 = arith.constant 0 : index
    %c0_10 = arith.constant 0 : index
    %5 = vector.load %arg5[%c0_9, %c0_10] : memref<32x1xf32, #tpu.memory_space<vmem>>, vector<32x1xf32>
    %c0_11 = arith.constant 0 : index
    %c0_12 = arith.constant 0 : index
    %6 = vector.load %arg6[%c0_11, %c0_12] : memref<4x16xbf16, #tpu.memory_space<vmem>>, vector<4x16xbf16>
    %c0_13 = arith.constant 0 : index
    %c0_14 = arith.constant 0 : index
    %7 = vector.load %arg7[%c0_13, %c0_14] : memref<4x1xf32, #tpu.memory_space<vmem>>, vector<4x1xf32>
    %cst = arith.constant 0.000000e+00 : f32
    %8 = vector.broadcast %cst : f32 to vector<4x640xf32>
    %c0_15 = arith.constant 0 : index
    %c0_16 = arith.constant 0 : index
    %9 = vector.load %arg12[%c0_15, %c0_16] : memref<4x640xf32, #tpu.memory_space<vmem>>, vector<4x640xf32>
    tpu.vector_store %arg12[%c0_15, %c0_16], %8 {strides = array<i32>} : memref<4x640xf32, #tpu.memory_space<vmem>>, vector<4x640xf32>,
    %cst_17 = arith.constant 0.000000e+00 : f32
    %10 = vector.broadcast %cst_17 : f32 to vector<4x128xf32>
    %c0_18 = arith.constant 0 : index
    %c0_19 = arith.constant 0 : index
    %11 = vector.load %arg13[%c0_18, %c0_19] : memref<4x640xf32, #tpu.memory_space<vmem>>, vector<4x128xf32>
    tpu.vector_store %arg13[%c0_18, %c0_19], %10 {strides = array<i32>} : memref<4x640xf32, #tpu.memory_space<vmem>>, vector<4x128xf32>,
    %cst_20 = arith.constant 0.000000e+00 : f32
    %12 = vector.broadcast %cst_20 : f32 to vector<4x160xf32>
    %c0_21 = arith.constant 0 : index
    %c480 = arith.constant 480 : index
    %13 = vector.load %arg13[%c0_21, %c480] : memref<4x640xf32, #tpu.memory_space<vmem>>, vector<4x160xf32>
    tpu.vector_store %arg13[%c0_21, %c480], %12 {strides = array<i32>} : memref<4x640xf32, #tpu.memory_space<vmem>>, vector<4x160xf32>,
    %c0_22 = arith.constant 0 : index
    %c0_23 = arith.constant 0 : index
    %c0_24 = arith.constant 0 : index
    %14 = vector.load %arg1[%c0_22, %c0_23, %c0_24] : memref<1x4x256xf32, #tpu.memory_space<vmem>>, vector<1x4x16xf32>
    %15 = vector.shape_cast %14 : vector<1x4x16xf32> to vector<4x16xf32>
    %c0_25 = arith.constant 0 : index
    %c131 = arith.constant 131 : index
    %16 = vector.load %arg12[%c0_25, %c131] : memref<4x640xf32, #tpu.memory_space<vmem>>, vector<4x16xf32>
    tpu.vector_store %arg12[%c0_25, %c131], %15 {strides = array<i32>} : memref<4x640xf32, #tpu.memory_space<vmem>>, vector<4x16xf32>,
    %c0_26 = arith.constant 0 : index
    %c0_27 = arith.constant 0 : index
    %c16 = arith.constant 16 : index
    %17 = vector.load %arg1[%c0_26, %c0_27, %c16] : memref<1x4x256xf32, #tpu.memory_space<vmem>>, vector<1x4x16xf32>
    %18 = vector.shape_cast %17 : vector<1x4x16xf32> to vector<4x16xf32>
    %c0_28 = arith.constant 0 : index
    %c153 = arith.constant 153 : index
    %19 = vector.load %arg12[%c0_28, %c153] : memref<4x640xf32, #tpu.memory_space<vmem>>, vector<4x16xf32>
    tpu.vector_store %arg12[%c0_28, %c153], %18 {strides = array<i32>} : memref<4x640xf32, #tpu.memory_space<vmem>>, vector<4x16xf32>,
    %c0_29 = arith.constant 0 : index
    %c0_30 = arith.constant 0 : index
    %c32 = arith.constant 32 : index
    %20 = vector.load %arg1[%c0_29, %c0_30, %c32] : memref<1x4x256xf32, #tpu.memory_space<vmem>>, vector<1x4x16xf32>
    %21 = vector.shape_cast %20 : vector<1x4x16xf32> to vector<4x16xf32>
    %c0_31 = arith.constant 0 : index
    %c175 = arith.constant 175 : index
    %22 = vector.load %arg12[%c0_31, %c175] : memref<4x640xf32, #tpu.memory_space<vmem>>, vector<4x16xf32>
    tpu.vector_store %arg12[%c0_31, %c175], %21 {strides = array<i32>} : memref<4x640xf32, #tpu.memory_space<vmem>>, vector<4x16xf32>,
    %c0_32 = arith.constant 0 : index
    %c0_33 = arith.constant 0 : index
    %c48 = arith.constant 48 : index
    %23 = vector.load %arg1[%c0_32, %c0_33, %c48] : memref<1x4x256xf32, #tpu.memory_space<vmem>>, vector<1x4x16xf32>
    %24 = vector.shape_cast %23 : vector<1x4x16xf32> to vector<4x16xf32>
    %c0_34 = arith.constant 0 : index
    %c197 = arith.constant 197 : index
    %25 = vector.load %arg12[%c0_34, %c197] : memref<4x640xf32, #tpu.memory_space<vmem>>, vector<4x16xf32>
    tpu.vector_store %arg12[%c0_34, %c197], %24 {strides = array<i32>} : memref<4x640xf32, #tpu.memory_space<vmem>>, vector<4x16xf32>,
    %c0_35 = arith.constant 0 : index
    %c0_36 = arith.constant 0 : index
    %c64 = arith.constant 64 : index
    %26 = vector.load %arg1[%c0_35, %c0_36, %c64] : memref<1x4x256xf32, #tpu.memory_space<vmem>>, vector<1x4x16xf32>
    %27 = vector.shape_cast %26 : vector<1x4x16xf32> to vector<4x16xf32>
    %c0_37 = arith.constant 0 : index
    %c219 = arith.constant 219 : index
    %28 = vector.load %arg12[%c0_37, %c219] : memref<4x640xf32, #tpu.memory_space<vmem>>, vector<4x16xf32>
    tpu.vector_store %arg12[%c0_37, %c219], %27 {strides = array<i32>} : memref<4x640xf32, #tpu.memory_space<vmem>>, vector<4x16xf32>,
    %c0_38 = arith.constant 0 : index
    %c0_39 = arith.constant 0 : index
    %c80 = arith.constant 80 : index
    %29 = vector.load %arg1[%c0_38, %c0_39, %c80] : memref<1x4x256xf32, #tpu.memory_space<vmem>>, vector<1x4x16xf32>
    %30 = vector.shape_cast %29 : vector<1x4x16xf32> to vector<4x16xf32>
    %c0_40 = arith.constant 0 : index
    %c241 = arith.constant 241 : index
    %31 = vector.load %arg12[%c0_40, %c241] : memref<4x640xf32, #tpu.memory_space<vmem>>, vector<4x16xf32>
    tpu.vector_store %arg12[%c0_40, %c241], %30 {strides = array<i32>} : memref<4x640xf32, #tpu.memory_space<vmem>>, vector<4x16xf32>,
    %c0_41 = arith.constant 0 : index
    %c0_42 = arith.constant 0 : index
    %c96 = arith.constant 96 : index
    %32 = vector.load %arg1[%c0_41, %c0_42, %c96] : memref<1x4x256xf32, #tpu.memory_space<vmem>>, vector<1x4x16xf32>
    %33 = vector.shape_cast %32 : vector<1x4x16xf32> to vector<4x16xf32>
    %c0_43 = arith.constant 0 : index
    %c263 = arith.constant 263 : index
    %34 = vector.load %arg12[%c0_43, %c263] : memref<4x640xf32, #tpu.memory_space<vmem>>, vector<4x16xf32>
    tpu.vector_store %arg12[%c0_43, %c263], %33 {strides = array<i32>} : memref<4x640xf32, #tpu.memory_space<vmem>>, vector<4x16xf32>,
    %c0_44 = arith.constant 0 : index
    %c0_45 = arith.constant 0 : index
    %c112 = arith.constant 112 : index
    %35 = vector.load %arg1[%c0_44, %c0_45, %c112] : memref<1x4x256xf32, #tpu.memory_space<vmem>>, vector<1x4x16xf32>
    %36 = vector.shape_cast %35 : vector<1x4x16xf32> to vector<4x16xf32>
    %c0_46 = arith.constant 0 : index
    %c285 = arith.constant 285 : index
    %37 = vector.load %arg12[%c0_46, %c285] : memref<4x640xf32, #tpu.memory_space<vmem>>, vector<4x16xf32>
    tpu.vector_store %arg12[%c0_46, %c285], %36 {strides = array<i32>} : memref<4x640xf32, #tpu.memory_space<vmem>>, vector<4x16xf32>,
    %c0_47 = arith.constant 0 : index
    %c0_48 = arith.constant 0 : index
    %c128 = arith.constant 128 : index
    %38 = vector.load %arg1[%c0_47, %c0_48, %c128] : memref<1x4x256xf32, #tpu.memory_space<vmem>>, vector<1x4x16xf32>
    %39 = vector.shape_cast %38 : vector<1x4x16xf32> to vector<4x16xf32>
    %c0_49 = arith.constant 0 : index
    %c307 = arith.constant 307 : index
    %40 = vector.load %arg12[%c0_49, %c307] : memref<4x640xf32, #tpu.memory_space<vmem>>, vector<4x16xf32>
    tpu.vector_store %arg12[%c0_49, %c307], %39 {strides = array<i32>} : memref<4x640xf32, #tpu.memory_space<vmem>>, vector<4x16xf32>,
    %c0_50 = arith.constant 0 : index
    %c0_51 = arith.constant 0 : index
    %c144 = arith.constant 144 : index
    %41 = vector.load %arg1[%c0_50, %c0_51, %c144] : memref<1x4x256xf32, #tpu.memory_space<vmem>>, vector<1x4x16xf32>
    %42 = vector.shape_cast %41 : vector<1x4x16xf32> to vector<4x16xf32>
    %c0_52 = arith.constant 0 : index
    %c329 = arith.constant 329 : index
    %43 = vector.load %arg12[%c0_52, %c329] : memref<4x640xf32, #tpu.memory_space<vmem>>, vector<4x16xf32>
    tpu.vector_store %arg12[%c0_52, %c329], %42 {strides = array<i32>} : memref<4x640xf32, #tpu.memory_space<vmem>>, vector<4x16xf32>,
    %c0_53 = arith.constant 0 : index
    %c0_54 = arith.constant 0 : index
    %c160 = arith.constant 160 : index
    %44 = vector.load %arg1[%c0_53, %c0_54, %c160] : memref<1x4x256xf32, #tpu.memory_space<vmem>>, vector<1x4x16xf32>
    %45 = vector.shape_cast %44 : vector<1x4x16xf32> to vector<4x16xf32>
    %c0_55 = arith.constant 0 : index
    %c351 = arith.constant 351 : index
    %46 = vector.load %arg12[%c0_55, %c351] : memref<4x640xf32, #tpu.memory_space<vmem>>, vector<4x16xf32>
    tpu.vector_store %arg12[%c0_55, %c351], %45 {strides = array<i32>} : memref<4x640xf32, #tpu.memory_space<vmem>>, vector<4x16xf32>,
    %c0_56 = arith.constant 0 : index
    %c0_57 = arith.constant 0 : index
    %c176 = arith.constant 176 : index
    %47 = vector.load %arg1[%c0_56, %c0_57, %c176] : memref<1x4x256xf32, #tpu.memory_space<vmem>>, vector<1x4x16xf32>
    %48 = vector.shape_cast %47 : vector<1x4x16xf32> to vector<4x16xf32>
    %c0_58 = arith.constant 0 : index
    %c373 = arith.constant 373 : index
    %49 = vector.load %arg12[%c0_58, %c373] : memref<4x640xf32, #tpu.memory_space<vmem>>, vector<4x16xf32>
    tpu.vector_store %arg12[%c0_58, %c373], %48 {strides = array<i32>} : memref<4x640xf32, #tpu.memory_space<vmem>>, vector<4x16xf32>,
    %c0_59 = arith.constant 0 : index
    %c0_60 = arith.constant 0 : index
    %c192 = arith.constant 192 : index
    %50 = vector.load %arg1[%c0_59, %c0_60, %c192] : memref<1x4x256xf32, #tpu.memory_space<vmem>>, vector<1x4x16xf32>
    %51 = vector.shape_cast %50 : vector<1x4x16xf32> to vector<4x16xf32>
    %c0_61 = arith.constant 0 : index
    %c395 = arith.constant 395 : index
    %52 = vector.load %arg12[%c0_61, %c395] : memref<4x640xf32, #tpu.memory_space<vmem>>, vector<4x16xf32>
    tpu.vector_store %arg12[%c0_61, %c395], %51 {strides = array<i32>} : memref<4x640xf32, #tpu.memory_space<vmem>>, vector<4x16xf32>,
    %c0_62 = arith.constant 0 : index
    %c0_63 = arith.constant 0 : index
    %c208 = arith.constant 208 : index
    %53 = vector.load %arg1[%c0_62, %c0_63, %c208] : memref<1x4x256xf32, #tpu.memory_space<vmem>>, vector<1x4x16xf32>
    %54 = vector.shape_cast %53 : vector<1x4x16xf32> to vector<4x16xf32>
    %c0_64 = arith.constant 0 : index
    %c417 = arith.constant 417 : index
    %55 = vector.load %arg12[%c0_64, %c417] : memref<4x640xf32, #tpu.memory_space<vmem>>, vector<4x16xf32>
    tpu.vector_store %arg12[%c0_64, %c417], %54 {strides = array<i32>} : memref<4x640xf32, #tpu.memory_space<vmem>>, vector<4x16xf32>,
    %c0_65 = arith.constant 0 : index
    %c0_66 = arith.constant 0 : index
    %c224 = arith.constant 224 : index
    %56 = vector.load %arg1[%c0_65, %c0_66, %c224] : memref<1x4x256xf32, #tpu.memory_space<vmem>>, vector<1x4x16xf32>
    %57 = vector.shape_cast %56 : vector<1x4x16xf32> to vector<4x16xf32>
    %c0_67 = arith.constant 0 : index
    %c439 = arith.constant 439 : index
    %58 = vector.load %arg12[%c0_67, %c439] : memref<4x640xf32, #tpu.memory_space<vmem>>, vector<4x16xf32>
    tpu.vector_store %arg12[%c0_67, %c439], %57 {strides = array<i32>} : memref<4x640xf32, #tpu.memory_space<vmem>>, vector<4x16xf32>,
    %c0_68 = arith.constant 0 : index
    %c0_69 = arith.constant 0 : index
    %c240 = arith.constant 240 : index
    %59 = vector.load %arg1[%c0_68, %c0_69, %c240] : memref<1x4x256xf32, #tpu.memory_space<vmem>>, vector<1x4x16xf32>
    %60 = vector.shape_cast %59 : vector<1x4x16xf32> to vector<4x16xf32>
    %c0_70 = arith.constant 0 : index
    %c461 = arith.constant 461 : index
    %61 = vector.load %arg12[%c0_70, %c461] : memref<4x640xf32, #tpu.memory_space<vmem>>, vector<4x16xf32>
    tpu.vector_store %arg12[%c0_70, %c461], %60 {strides = array<i32>} : memref<4x640xf32, #tpu.memory_space<vmem>>, vector<4x16xf32>,
    %cst_71 = arith.constant 0.000000e+00 : f32
    %62 = vector.broadcast %cst_71 : f32 to vector<4x352xf32>
    %c0_72 = arith.constant 0 : index
    %c59 = arith.constant 59 : index
    %63 = vector.load %arg12[%c0_72, %c59] : memref<4x640xf32, #tpu.memory_space<vmem>>, vector<4x352xf32>
    %64 = vector.extract_strided_slice %0 {offsets = [0, 0], sizes = [4, 1], strides = [1, 1]} : vector<4x49xf32> to vector<4x1xf32>
    %65 = vector.broadcast %64 : vector<4x1xf32> to vector<4x352xf32>
    %66 = arith.mulf %63, %65 : vector<4x352xf32>
    %67 = arith.addf %62, %66 : vector<4x352xf32>
    %c0_73 = arith.constant 0 : index
    %c60 = arith.constant 60 : index
    %68 = vector.load %arg12[%c0_73, %c60] : memref<4x640xf32, #tpu.memory_space<vmem>>, vector<4x352xf32>
    %69 = vector.extract_strided_slice %0 {offsets = [0, 1], sizes = [4, 1], strides = [1, 1]} : vector<4x49xf32> to vector<4x1xf32>
    %70 = vector.broadcast %69 : vector<4x1xf32> to vector<4x352xf32>
    %71 = arith.mulf %68, %70 : vector<4x352xf32>
    %72 = arith.addf %67, %71 : vector<4x352xf32>
    %c0_74 = arith.constant 0 : index
    %c61 = arith.constant 61 : index
    %73 = vector.load %arg12[%c0_74, %c61] : memref<4x640xf32, #tpu.memory_space<vmem>>, vector<4x352xf32>
    %74 = vector.extract_strided_slice %0 {offsets = [0, 2], sizes = [4, 1], strides = [1, 1]} : vector<4x49xf32> to vector<4x1xf32>
    %75 = vector.broadcast %74 : vector<4x1xf32> to vector<4x352xf32>
    %76 = arith.mulf %73, %75 : vector<4x352xf32>
    %77 = arith.addf %72, %76 : vector<4x352xf32>
    %c0_75 = arith.constant 0 : index
    %c62 = arith.constant 62 : index
    %78 = vector.load %arg12[%c0_75, %c62] : memref<4x640xf32, #tpu.memory_space<vmem>>, vector<4x352xf32>
    %79 = vector.extract_strided_slice %0 {offsets = [0, 3], sizes = [4, 1], strides = [1, 1]} : vector<4x49xf32> to vector<4x1xf32>
    %80 = vector.broadcast %79 : vector<4x1xf32> to vector<4x352xf32>
    %81 = arith.mulf %78, %80 : vector<4x352xf32>
    %82 = arith.addf %77, %81 : vector<4x352xf32>
    %c0_76 = arith.constant 0 : index
    %c63 = arith.constant 63 : index
    %83 = vector.load %arg12[%c0_76, %c63] : memref<4x640xf32, #tpu.memory_space<vmem>>, vector<4x352xf32>
    %84 = vector.extract_strided_slice %0 {offsets = [0, 4], sizes = [4, 1], strides = [1, 1]} : vector<4x49xf32> to vector<4x1xf32>
    %85 = vector.broadcast %84 : vector<4x1xf32> to vector<4x352xf32>
    %86 = arith.mulf %83, %85 : vector<4x352xf32>
    %87 = arith.addf %82, %86 : vector<4x352xf32>
    %c0_77 = arith.constant 0 : index
    %c64_78 = arith.constant 64 : index
    %88 = vector.load %arg12[%c0_77, %c64_78] : memref<4x640xf32, #tpu.memory_space<vmem>>, vector<4x352xf32>
    %89 = vector.extract_strided_slice %0 {offsets = [0, 5], sizes = [4, 1], strides = [1, 1]} : vector<4x49xf32> to vector<4x1xf32>
    %90 = vector.broadcast %89 : vector<4x1xf32> to vector<4x352xf32>
    %91 = arith.mulf %88, %90 : vector<4x352xf32>
    %92 = arith.addf %87, %91 : vector<4x352xf32>
    %c0_79 = arith.constant 0 : index
    %c65 = arith.constant 65 : index
    %93 = vector.load %arg12[%c0_79, %c65] : memref<4x640xf32, #tpu.memory_space<vmem>>, vector<4x352xf32>
    %94 = vector.extract_strided_slice %0 {offsets = [0, 6], sizes = [4, 1], strides = [1, 1]} : vector<4x49xf32> to vector<4x1xf32>
    %95 = vector.broadcast %94 : vector<4x1xf32> to vector<4x352xf32>
    %96 = arith.mulf %93, %95 : vector<4x352xf32>
    %97 = arith.addf %92, %96 : vector<4x352xf32>
    %c0_80 = arith.constant 0 : index
    %c81 = arith.constant 81 : index
    %98 = vector.load %arg12[%c0_80, %c81] : memref<4x640xf32, #tpu.memory_space<vmem>>, vector<4x352xf32>
    %99 = vector.extract_strided_slice %0 {offsets = [0, 7], sizes = [4, 1], strides = [1, 1]} : vector<4x49xf32> to vector<4x1xf32>
    %100 = vector.broadcast %99 : vector<4x1xf32> to vector<4x352xf32>
    %101 = arith.mulf %98, %100 : vector<4x352xf32>
    %102 = arith.addf %97, %101 : vector<4x352xf32>
    %c0_81 = arith.constant 0 : index
    %c82 = arith.constant 82 : index
    %103 = vector.load %arg12[%c0_81, %c82] : memref<4x640xf32, #tpu.memory_space<vmem>>, vector<4x352xf32>
    %104 = vector.extract_strided_slice %0 {offsets = [0, 8], sizes = [4, 1], strides = [1, 1]} : vector<4x49xf32> to vector<4x1xf32>
    %105 = vector.broadcast %104 : vector<4x1xf32> to vector<4x352xf32>
    %106 = arith.mulf %103, %105 : vector<4x352xf32>
    %107 = arith.addf %102, %106 : vector<4x352xf32>
    %c0_82 = arith.constant 0 : index
    %c83 = arith.constant 83 : index
    %108 = vector.load %arg12[%c0_82, %c83] : memref<4x640xf32, #tpu.memory_space<vmem>>, vector<4x352xf32>
    %109 = vector.extract_strided_slice %0 {offsets = [0, 9], sizes = [4, 1], strides = [1, 1]} : vector<4x49xf32> to vector<4x1xf32>
    %110 = vector.broadcast %109 : vector<4x1xf32> to vector<4x352xf32>
    %111 = arith.mulf %108, %110 : vector<4x352xf32>
    %112 = arith.addf %107, %111 : vector<4x352xf32>
    %c0_83 = arith.constant 0 : index
    %c84 = arith.constant 84 : index
    %113 = vector.load %arg12[%c0_83, %c84] : memref<4x640xf32, #tpu.memory_space<vmem>>, vector<4x352xf32>
    %114 = vector.extract_strided_slice %0 {offsets = [0, 10], sizes = [4, 1], strides = [1, 1]} : vector<4x49xf32> to vector<4x1xf32>
    %115 = vector.broadcast %114 : vector<4x1xf32> to vector<4x352xf32>
    %116 = arith.mulf %113, %115 : vector<4x352xf32>
    %117 = arith.addf %112, %116 : vector<4x352xf32>
    %c0_84 = arith.constant 0 : index
    %c85 = arith.constant 85 : index
    %118 = vector.load %arg12[%c0_84, %c85] : memref<4x640xf32, #tpu.memory_space<vmem>>, vector<4x352xf32>
    %119 = vector.extract_strided_slice %0 {offsets = [0, 11], sizes = [4, 1], strides = [1, 1]} : vector<4x49xf32> to vector<4x1xf32>
    %120 = vector.broadcast %119 : vector<4x1xf32> to vector<4x352xf32>
    %121 = arith.mulf %118, %120 : vector<4x352xf32>
    %122 = arith.addf %117, %121 : vector<4x352xf32>
    %c0_85 = arith.constant 0 : index
    %c86 = arith.constant 86 : index
    %123 = vector.load %arg12[%c0_85, %c86] : memref<4x640xf32, #tpu.memory_space<vmem>>, vector<4x352xf32>
    %124 = vector.extract_strided_slice %0 {offsets = [0, 12], sizes = [4, 1], strides = [1, 1]} : vector<4x49xf32> to vector<4x1xf32>
    %125 = vector.broadcast %124 : vector<4x1xf32> to vector<4x352xf32>
    %126 = arith.mulf %123, %125 : vector<4x352xf32>
    %127 = arith.addf %122, %126 : vector<4x352xf32>
    %c0_86 = arith.constant 0 : index
    %c87 = arith.constant 87 : index
    %128 = vector.load %arg12[%c0_86, %c87] : memref<4x640xf32, #tpu.memory_space<vmem>>, vector<4x352xf32>
    %129 = vector.extract_strided_slice %0 {offsets = [0, 13], sizes = [4, 1], strides = [1, 1]} : vector<4x49xf32> to vector<4x1xf32>
    %130 = vector.broadcast %129 : vector<4x1xf32> to vector<4x352xf32>
    %131 = arith.mulf %128, %130 : vector<4x352xf32>
    %132 = arith.addf %127, %131 : vector<4x352xf32>
    %c0_87 = arith.constant 0 : index
    %c103 = arith.constant 103 : index
    %133 = vector.load %arg12[%c0_87, %c103] : memref<4x640xf32, #tpu.memory_space<vmem>>, vector<4x352xf32>
    %134 = vector.extract_strided_slice %0 {offsets = [0, 14], sizes = [4, 1], strides = [1, 1]} : vector<4x49xf32> to vector<4x1xf32>
    %135 = vector.broadcast %134 : vector<4x1xf32> to vector<4x352xf32>
    %136 = arith.mulf %133, %135 : vector<4x352xf32>
    %137 = arith.addf %132, %136 : vector<4x352xf32>
    %c0_88 = arith.constant 0 : index
    %c104 = arith.constant 104 : index
    %138 = vector.load %arg12[%c0_88, %c104] : memref<4x640xf32, #tpu.memory_space<vmem>>, vector<4x352xf32>
    %139 = vector.extract_strided_slice %0 {offsets = [0, 15], sizes = [4, 1], strides = [1, 1]} : vector<4x49xf32> to vector<4x1xf32>
    %140 = vector.broadcast %139 : vector<4x1xf32> to vector<4x352xf32>
    %141 = arith.mulf %138, %140 : vector<4x352xf32>
    %142 = arith.addf %137, %141 : vector<4x352xf32>
    %c0_89 = arith.constant 0 : index
    %c105 = arith.constant 105 : index
    %143 = vector.load %arg12[%c0_89, %c105] : memref<4x640xf32, #tpu.memory_space<vmem>>, vector<4x352xf32>
    %144 = vector.extract_strided_slice %0 {offsets = [0, 16], sizes = [4, 1], strides = [1, 1]} : vector<4x49xf32> to vector<4x1xf32>
    %145 = vector.broadcast %144 : vector<4x1xf32> to vector<4x352xf32>
    %146 = arith.mulf %143, %145 : vector<4x352xf32>
    %147 = arith.addf %142, %146 : vector<4x352xf32>
    %c0_90 = arith.constant 0 : index
    %c106 = arith.constant 106 : index
    %148 = vector.load %arg12[%c0_90, %c106] : memref<4x640xf32, #tpu.memory_space<vmem>>, vector<4x352xf32>
    %149 = vector.extract_strided_slice %0 {offsets = [0, 17], sizes = [4, 1], strides = [1, 1]} : vector<4x49xf32> to vector<4x1xf32>
    %150 = vector.broadcast %149 : vector<4x1xf32> to vector<4x352xf32>
    %151 = arith.mulf %148, %150 : vector<4x352xf32>
    %152 = arith.addf %147, %151 : vector<4x352xf32>
    %c0_91 = arith.constant 0 : index
    %c107 = arith.constant 107 : index
    %153 = vector.load %arg12[%c0_91, %c107] : memref<4x640xf32, #tpu.memory_space<vmem>>, vector<4x352xf32>
    %154 = vector.extract_strided_slice %0 {offsets = [0, 18], sizes = [4, 1], strides = [1, 1]} : vector<4x49xf32> to vector<4x1xf32>
    %155 = vector.broadcast %154 : vector<4x1xf32> to vector<4x352xf32>
    %156 = arith.mulf %153, %155 : vector<4x352xf32>
    %157 = arith.addf %152, %156 : vector<4x352xf32>
    %c0_92 = arith.constant 0 : index
    %c108 = arith.constant 108 : index
    %158 = vector.load %arg12[%c0_92, %c108] : memref<4x640xf32, #tpu.memory_space<vmem>>, vector<4x352xf32>
    %159 = vector.extract_strided_slice %0 {offsets = [0, 19], sizes = [4, 1], strides = [1, 1]} : vector<4x49xf32> to vector<4x1xf32>
    %160 = vector.broadcast %159 : vector<4x1xf32> to vector<4x352xf32>
    %161 = arith.mulf %158, %160 : vector<4x352xf32>
    %162 = arith.addf %157, %161 : vector<4x352xf32>
    %c0_93 = arith.constant 0 : index
    %c109 = arith.constant 109 : index
    %163 = vector.load %arg12[%c0_93, %c109] : memref<4x640xf32, #tpu.memory_space<vmem>>, vector<4x352xf32>
    %164 = vector.extract_strided_slice %0 {offsets = [0, 20], sizes = [4, 1], strides = [1, 1]} : vector<4x49xf32> to vector<4x1xf32>
    %165 = vector.broadcast %164 : vector<4x1xf32> to vector<4x352xf32>
    %166 = arith.mulf %163, %165 : vector<4x352xf32>
    %167 = arith.addf %162, %166 : vector<4x352xf32>
    %c0_94 = arith.constant 0 : index
    %c125 = arith.constant 125 : index
    %168 = vector.load %arg12[%c0_94, %c125] : memref<4x640xf32, #tpu.memory_space<vmem>>, vector<4x352xf32>
    %169 = vector.extract_strided_slice %0 {offsets = [0, 21], sizes = [4, 1], strides = [1, 1]} : vector<4x49xf32> to vector<4x1xf32>
    %170 = vector.broadcast %169 : vector<4x1xf32> to vector<4x352xf32>
    %171 = arith.mulf %168, %170 : vector<4x352xf32>
    %172 = arith.addf %167, %171 : vector<4x352xf32>
    %c0_95 = arith.constant 0 : index
    %c126 = arith.constant 126 : index
    %173 = vector.load %arg12[%c0_95, %c126] : memref<4x640xf32, #tpu.memory_space<vmem>>, vector<4x352xf32>
    %174 = vector.extract_strided_slice %0 {offsets = [0, 22], sizes = [4, 1], strides = [1, 1]} : vector<4x49xf32> to vector<4x1xf32>
    %175 = vector.broadcast %174 : vector<4x1xf32> to vector<4x352xf32>
    %176 = arith.mulf %173, %175 : vector<4x352xf32>
    %177 = arith.addf %172, %176 : vector<4x352xf32>
    %c0_96 = arith.constant 0 : index
    %c127 = arith.constant 127 : index
    %178 = vector.load %arg12[%c0_96, %c127] : memref<4x640xf32, #tpu.memory_space<vmem>>, vector<4x352xf32>
    %179 = vector.extract_strided_slice %0 {offsets = [0, 23], sizes = [4, 1], strides = [1, 1]} : vector<4x49xf32> to vector<4x1xf32>
    %180 = vector.broadcast %179 : vector<4x1xf32> to vector<4x352xf32>
    %181 = arith.mulf %178, %180 : vector<4x352xf32>
    %182 = arith.addf %177, %181 : vector<4x352xf32>
    %c0_97 = arith.constant 0 : index
    %c128_98 = arith.constant 128 : index
    %183 = vector.load %arg12[%c0_97, %c128_98] : memref<4x640xf32, #tpu.memory_space<vmem>>, vector<4x352xf32>
    %184 = vector.extract_strided_slice %0 {offsets = [0, 24], sizes = [4, 1], strides = [1, 1]} : vector<4x49xf32> to vector<4x1xf32>
    %185 = vector.broadcast %184 : vector<4x1xf32> to vector<4x352xf32>
    %186 = arith.mulf %183, %185 : vector<4x352xf32>
    %187 = arith.addf %182, %186 : vector<4x352xf32>
    %c0_99 = arith.constant 0 : index
    %c129 = arith.constant 129 : index
    %188 = vector.load %arg12[%c0_99, %c129] : memref<4x640xf32, #tpu.memory_space<vmem>>, vector<4x352xf32>
    %189 = vector.extract_strided_slice %0 {offsets = [0, 25], sizes = [4, 1], strides = [1, 1]} : vector<4x49xf32> to vector<4x1xf32>
    %190 = vector.broadcast %189 : vector<4x1xf32> to vector<4x352xf32>
    %191 = arith.mulf %188, %190 : vector<4x352xf32>
    %192 = arith.addf %187, %191 : vector<4x352xf32>
    %c0_100 = arith.constant 0 : index
    %c130 = arith.constant 130 : index
    %193 = vector.load %arg12[%c0_100, %c130] : memref<4x640xf32, #tpu.memory_space<vmem>>, vector<4x352xf32>
    %194 = vector.extract_strided_slice %0 {offsets = [0, 26], sizes = [4, 1], strides = [1, 1]} : vector<4x49xf32> to vector<4x1xf32>
    %195 = vector.broadcast %194 : vector<4x1xf32> to vector<4x352xf32>
    %196 = arith.mulf %193, %195 : vector<4x352xf32>
    %197 = arith.addf %192, %196 : vector<4x352xf32>
    %c0_101 = arith.constant 0 : index
    %c131_102 = arith.constant 131 : index
    %198 = vector.load %arg12[%c0_101, %c131_102] : memref<4x640xf32, #tpu.memory_space<vmem>>, vector<4x352xf32>
    %199 = vector.extract_strided_slice %0 {offsets = [0, 27], sizes = [4, 1], strides = [1, 1]} : vector<4x49xf32> to vector<4x1xf32>
    %200 = vector.broadcast %199 : vector<4x1xf32> to vector<4x352xf32>
    %201 = arith.mulf %198, %200 : vector<4x352xf32>
    %202 = arith.addf %197, %201 : vector<4x352xf32>
    %c0_103 = arith.constant 0 : index
    %c147 = arith.constant 147 : index
    %203 = vector.load %arg12[%c0_103, %c147] : memref<4x640xf32, #tpu.memory_space<vmem>>, vector<4x352xf32>
    %204 = vector.extract_strided_slice %0 {offsets = [0, 28], sizes = [4, 1], strides = [1, 1]} : vector<4x49xf32> to vector<4x1xf32>
    %205 = vector.broadcast %204 : vector<4x1xf32> to vector<4x352xf32>
    %206 = arith.mulf %203, %205 : vector<4x352xf32>
    %207 = arith.addf %202, %206 : vector<4x352xf32>
    %c0_104 = arith.constant 0 : index
    %c148 = arith.constant 148 : index
    %208 = vector.load %arg12[%c0_104, %c148] : memref<4x640xf32, #tpu.memory_space<vmem>>, vector<4x352xf32>
    %209 = vector.extract_strided_slice %0 {offsets = [0, 29], sizes = [4, 1], strides = [1, 1]} : vector<4x49xf32> to vector<4x1xf32>
    %210 = vector.broadcast %209 : vector<4x1xf32> to vector<4x352xf32>
    %211 = arith.mulf %208, %210 : vector<4x352xf32>
    %212 = arith.addf %207, %211 : vector<4x352xf32>
    %c0_105 = arith.constant 0 : index
    %c149 = arith.constant 149 : index
    %213 = vector.load %arg12[%c0_105, %c149] : memref<4x640xf32, #tpu.memory_space<vmem>>, vector<4x352xf32>
    %214 = vector.extract_strided_slice %0 {offsets = [0, 30], sizes = [4, 1], strides = [1, 1]} : vector<4x49xf32> to vector<4x1xf32>
    %215 = vector.broadcast %214 : vector<4x1xf32> to vector<4x352xf32>
    %216 = arith.mulf %213, %215 : vector<4x352xf32>
    %217 = arith.addf %212, %216 : vector<4x352xf32>
    %c0_106 = arith.constant 0 : index
    %c150 = arith.constant 150 : index
    %218 = vector.load %arg12[%c0_106, %c150] : memref<4x640xf32, #tpu.memory_space<vmem>>, vector<4x352xf32>
    %219 = vector.extract_strided_slice %0 {offsets = [0, 31], sizes = [4, 1], strides = [1, 1]} : vector<4x49xf32> to vector<4x1xf32>
    %220 = vector.broadcast %219 : vector<4x1xf32> to vector<4x352xf32>
    %221 = arith.mulf %218, %220 : vector<4x352xf32>
    %222 = arith.addf %217, %221 : vector<4x352xf32>
    %c0_107 = arith.constant 0 : index
    %c151 = arith.constant 151 : index
    %223 = vector.load %arg12[%c0_107, %c151] : memref<4x640xf32, #tpu.memory_space<vmem>>, vector<4x352xf32>
    %224 = vector.extract_strided_slice %0 {offsets = [0, 32], sizes = [4, 1], strides = [1, 1]} : vector<4x49xf32> to vector<4x1xf32>
    %225 = vector.broadcast %224 : vector<4x1xf32> to vector<4x352xf32>
    %226 = arith.mulf %223, %225 : vector<4x352xf32>
    %227 = arith.addf %222, %226 : vector<4x352xf32>
    %c0_108 = arith.constant 0 : index
    %c152 = arith.constant 152 : index
    %228 = vector.load %arg12[%c0_108, %c152] : memref<4x640xf32, #tpu.memory_space<vmem>>, vector<4x352xf32>
    %229 = vector.extract_strided_slice %0 {offsets = [0, 33], sizes = [4, 1], strides = [1, 1]} : vector<4x49xf32> to vector<4x1xf32>
    %230 = vector.broadcast %229 : vector<4x1xf32> to vector<4x352xf32>
    %231 = arith.mulf %228, %230 : vector<4x352xf32>
    %232 = arith.addf %227, %231 : vector<4x352xf32>
    %c0_109 = arith.constant 0 : index
    %c153_110 = arith.constant 153 : index
    %233 = vector.load %arg12[%c0_109, %c153_110] : memref<4x640xf32, #tpu.memory_space<vmem>>, vector<4x352xf32>
    %234 = vector.extract_strided_slice %0 {offsets = [0, 34], sizes = [4, 1], strides = [1, 1]} : vector<4x49xf32> to vector<4x1xf32>
    %235 = vector.broadcast %234 : vector<4x1xf32> to vector<4x352xf32>
    %236 = arith.mulf %233, %235 : vector<4x352xf32>
    %237 = arith.addf %232, %236 : vector<4x352xf32>
    %c0_111 = arith.constant 0 : index
    %c169 = arith.constant 169 : index
    %238 = vector.load %arg12[%c0_111, %c169] : memref<4x640xf32, #tpu.memory_space<vmem>>, vector<4x352xf32>
    %239 = vector.extract_strided_slice %0 {offsets = [0, 35], sizes = [4, 1], strides = [1, 1]} : vector<4x49xf32> to vector<4x1xf32>
    %240 = vector.broadcast %239 : vector<4x1xf32> to vector<4x352xf32>
    %241 = arith.mulf %238, %240 : vector<4x352xf32>
    %242 = arith.addf %237, %241 : vector<4x352xf32>
    %c0_112 = arith.constant 0 : index
    %c170 = arith.constant 170 : index
    %243 = vector.load %arg12[%c0_112, %c170] : memref<4x640xf32, #tpu.memory_space<vmem>>, vector<4x352xf32>
    %244 = vector.extract_strided_slice %0 {offsets = [0, 36], sizes = [4, 1], strides = [1, 1]} : vector<4x49xf32> to vector<4x1xf32>
    %245 = vector.broadcast %244 : vector<4x1xf32> to vector<4x352xf32>
    %246 = arith.mulf %243, %245 : vector<4x352xf32>
    %247 = arith.addf %242, %246 : vector<4x352xf32>
    %c0_113 = arith.constant 0 : index
    %c171 = arith.constant 171 : index
    %248 = vector.load %arg12[%c0_113, %c171] : memref<4x640xf32, #tpu.memory_space<vmem>>, vector<4x352xf32>
    %249 = vector.extract_strided_slice %0 {offsets = [0, 37], sizes = [4, 1], strides = [1, 1]} : vector<4x49xf32> to vector<4x1xf32>
    %250 = vector.broadcast %249 : vector<4x1xf32> to vector<4x352xf32>
    %251 = arith.mulf %248, %250 : vector<4x352xf32>
    %252 = arith.addf %247, %251 : vector<4x352xf32>
    %c0_114 = arith.constant 0 : index
    %c172 = arith.constant 172 : index
    %253 = vector.load %arg12[%c0_114, %c172] : memref<4x640xf32, #tpu.memory_space<vmem>>, vector<4x352xf32>
    %254 = vector.extract_strided_slice %0 {offsets = [0, 38], sizes = [4, 1], strides = [1, 1]} : vector<4x49xf32> to vector<4x1xf32>
    %255 = vector.broadcast %254 : vector<4x1xf32> to vector<4x352xf32>
    %256 = arith.mulf %253, %255 : vector<4x352xf32>
    %257 = arith.addf %252, %256 : vector<4x352xf32>
    %c0_115 = arith.constant 0 : index
    %c173 = arith.constant 173 : index
    %258 = vector.load %arg12[%c0_115, %c173] : memref<4x640xf32, #tpu.memory_space<vmem>>, vector<4x352xf32>
    %259 = vector.extract_strided_slice %0 {offsets = [0, 39], sizes = [4, 1], strides = [1, 1]} : vector<4x49xf32> to vector<4x1xf32>
    %260 = vector.broadcast %259 : vector<4x1xf32> to vector<4x352xf32>
    %261 = arith.mulf %258, %260 : vector<4x352xf32>
    %262 = arith.addf %257, %261 : vector<4x352xf32>
    %c0_116 = arith.constant 0 : index
    %c174 = arith.constant 174 : index
    %263 = vector.load %arg12[%c0_116, %c174] : memref<4x640xf32, #tpu.memory_space<vmem>>, vector<4x352xf32>
    %264 = vector.extract_strided_slice %0 {offsets = [0, 40], sizes = [4, 1], strides = [1, 1]} : vector<4x49xf32> to vector<4x1xf32>
    %265 = vector.broadcast %264 : vector<4x1xf32> to vector<4x352xf32>
    %266 = arith.mulf %263, %265 : vector<4x352xf32>
    %267 = arith.addf %262, %266 : vector<4x352xf32>
    %c0_117 = arith.constant 0 : index
    %c175_118 = arith.constant 175 : index
    %268 = vector.load %arg12[%c0_117, %c175_118] : memref<4x640xf32, #tpu.memory_space<vmem>>, vector<4x352xf32>
    %269 = vector.extract_strided_slice %0 {offsets = [0, 41], sizes = [4, 1], strides = [1, 1]} : vector<4x49xf32> to vector<4x1xf32>
    %270 = vector.broadcast %269 : vector<4x1xf32> to vector<4x352xf32>
    %271 = arith.mulf %268, %270 : vector<4x352xf32>
    %272 = arith.addf %267, %271 : vector<4x352xf32>
    %c0_119 = arith.constant 0 : index
    %c191 = arith.constant 191 : index
    %273 = vector.load %arg12[%c0_119, %c191] : memref<4x640xf32, #tpu.memory_space<vmem>>, vector<4x352xf32>
    %274 = vector.extract_strided_slice %0 {offsets = [0, 42], sizes = [4, 1], strides = [1, 1]} : vector<4x49xf32> to vector<4x1xf32>
    %275 = vector.broadcast %274 : vector<4x1xf32> to vector<4x352xf32>
    %276 = arith.mulf %273, %275 : vector<4x352xf32>
    %277 = arith.addf %272, %276 : vector<4x352xf32>
    %c0_120 = arith.constant 0 : index
    %c192_121 = arith.constant 192 : index
    %278 = vector.load %arg12[%c0_120, %c192_121] : memref<4x640xf32, #tpu.memory_space<vmem>>, vector<4x352xf32>
    %279 = vector.extract_strided_slice %0 {offsets = [0, 43], sizes = [4, 1], strides = [1, 1]} : vector<4x49xf32> to vector<4x1xf32>
    %280 = vector.broadcast %279 : vector<4x1xf32> to vector<4x352xf32>
    %281 = arith.mulf %278, %280 : vector<4x352xf32>
    %282 = arith.addf %277, %281 : vector<4x352xf32>
    %c0_122 = arith.constant 0 : index
    %c193 = arith.constant 193 : index
    %283 = vector.load %arg12[%c0_122, %c193] : memref<4x640xf32, #tpu.memory_space<vmem>>, vector<4x352xf32>
    %284 = vector.extract_strided_slice %0 {offsets = [0, 44], sizes = [4, 1], strides = [1, 1]} : vector<4x49xf32> to vector<4x1xf32>
    %285 = vector.broadcast %284 : vector<4x1xf32> to vector<4x352xf32>
    %286 = arith.mulf %283, %285 : vector<4x352xf32>
    %287 = arith.addf %282, %286 : vector<4x352xf32>
    %c0_123 = arith.constant 0 : index
    %c194 = arith.constant 194 : index
    %288 = vector.load %arg12[%c0_123, %c194] : memref<4x640xf32, #tpu.memory_space<vmem>>, vector<4x352xf32>
    %289 = vector.extract_strided_slice %0 {offsets = [0, 45], sizes = [4, 1], strides = [1, 1]} : vector<4x49xf32> to vector<4x1xf32>
    %290 = vector.broadcast %289 : vector<4x1xf32> to vector<4x352xf32>
    %291 = arith.mulf %288, %290 : vector<4x352xf32>
    %292 = arith.addf %287, %291 : vector<4x352xf32>
    %c0_124 = arith.constant 0 : index
    %c195 = arith.constant 195 : index
    %293 = vector.load %arg12[%c0_124, %c195] : memref<4x640xf32, #tpu.memory_space<vmem>>, vector<4x352xf32>
    %294 = vector.extract_strided_slice %0 {offsets = [0, 46], sizes = [4, 1], strides = [1, 1]} : vector<4x49xf32> to vector<4x1xf32>
    %295 = vector.broadcast %294 : vector<4x1xf32> to vector<4x352xf32>
    %296 = arith.mulf %293, %295 : vector<4x352xf32>
    %297 = arith.addf %292, %296 : vector<4x352xf32>
    %c0_125 = arith.constant 0 : index
    %c196 = arith.constant 196 : index
    %298 = vector.load %arg12[%c0_125, %c196] : memref<4x640xf32, #tpu.memory_space<vmem>>, vector<4x352xf32>
    %299 = vector.extract_strided_slice %0 {offsets = [0, 47], sizes = [4, 1], strides = [1, 1]} : vector<4x49xf32> to vector<4x1xf32>
    %300 = vector.broadcast %299 : vector<4x1xf32> to vector<4x352xf32>
    %301 = arith.mulf %298, %300 : vector<4x352xf32>
    %302 = arith.addf %297, %301 : vector<4x352xf32>
    %c0_126 = arith.constant 0 : index
    %c197_127 = arith.constant 197 : index
    %303 = vector.load %arg12[%c0_126, %c197_127] : memref<4x640xf32, #tpu.memory_space<vmem>>, vector<4x352xf32>
    %304 = vector.extract_strided_slice %0 {offsets = [0, 48], sizes = [4, 1], strides = [1, 1]} : vector<4x49xf32> to vector<4x1xf32>
    %305 = vector.broadcast %304 : vector<4x1xf32> to vector<4x352xf32>
    %306 = arith.mulf %303, %305 : vector<4x352xf32>
    %307 = arith.addf %302, %306 : vector<4x352xf32>
    %308 = vector.broadcast %1 : vector<4x1xf32> to vector<4x352xf32>
    %309 = arith.addf %307, %308 : vector<4x352xf32>
    %310 = arith.truncf %309 : vector<4x352xf32> to vector<4x352xbf16>
    %cst_128 = arith.constant dense<0.000000e+00> : vector<32x352xf32>
    %311 = tpu.matmul %4, %310, %cst_128 {dimension_numbers = #tpu.dot_dimension_numbers<[1], [0], [0], [1], [0, 0, 1, 1], [], []>} : vector<32x4xbf16>, vector<4x352xbf16>, vector<32x352xf32> -> vector<32x352xf32>
    %312 = vector.broadcast %5 : vector<32x1xf32> to vector<32x352xf32>
    %313 = arith.addf %311, %312 : vector<32x352xf32>
    %314 = vector.extract_strided_slice %313 {offsets = [0, 0], sizes = [16, 352], strides = [1, 1]} : vector<32x352xf32> to vector<16x352xf32>
    %cst_129 = arith.constant 0.000000e+00 : f32
    %cst_130 = arith.constant 6.000000e+00 : f32
    %315 = vector.broadcast %cst_129 : f32 to vector<16x352xf32>
    %316 = arith.maximumf %315, %314 : vector<16x352xf32>
    %317 = vector.broadcast %cst_130 : f32 to vector<16x352xf32>
    %318 = arith.minimumf %317, %316 : vector<16x352xf32>
    %319 = vector.extract_strided_slice %313 {offsets = [16, 0], sizes = [16, 352], strides = [1, 1]} : vector<32x352xf32> to vector<16x352xf32>
    %320 = arith.mulf %318, %319 : vector<16x352xf32>
    %321 = arith.truncf %320 : vector<16x352xf32> to vector<16x352xbf16>
    %cst_131 = arith.constant dense<0.000000e+00> : vector<4x352xf32>
    %322 = tpu.matmul %6, %321, %cst_131 {dimension_numbers = #tpu.dot_dimension_numbers<[1], [0], [0], [1], [0, 0, 1, 1], [], []>} : vector<4x16xbf16>, vector<16x352xbf16>, vector<4x352xf32> -> vector<4x352xf32>
    %323 = vector.broadcast %7 : vector<4x1xf32> to vector<4x352xf32>
    %324 = arith.addf %322, %323 : vector<4x352xf32>
    %c0_132 = arith.constant 0 : index
    %c0_133 = arith.constant 0 : index
    %325 = vector.load %arg10[%c0_132, %c0_133] : memref<1x352xf32, #tpu.memory_space<vmem>>, vector<1x352xf32>
    %326 = vector.broadcast %325 : vector<1x352xf32> to vector<4x352xf32>
    %327 = arith.mulf %324, %326 : vector<4x352xf32>
    %c0_134 = arith.constant 0 : index
    %c128_135 = arith.constant 128 : index
    %328 = vector.load %arg13[%c0_134, %c128_135] : memref<4x640xf32, #tpu.memory_space<vmem>>, vector<4x352xf32>
    tpu.vector_store %arg13[%c0_134, %c128_135], %327 {strides = array<i32>} : memref<4x640xf32, #tpu.memory_space<vmem>>, vector<4x352xf32>,
    %cst_136 = arith.constant 0.000000e+00 : f32
    %329 = vector.broadcast %cst_136 : f32 to vector<4x352xf32>
    %c0_137 = arith.constant 0 : index
    %c59_138 = arith.constant 59 : index
    %330 = vector.load %arg13[%c0_137, %c59_138] : memref<4x640xf32, #tpu.memory_space<vmem>>, vector<4x352xf32>
    %331 = vector.extract_strided_slice %2 {offsets = [0, 0], sizes = [4, 1], strides = [1, 1]} : vector<4x49xf32> to vector<4x1xf32>
    %332 = vector.broadcast %331 : vector<4x1xf32> to vector<4x352xf32>
    %333 = arith.mulf %330, %332 : vector<4x352xf32>
    %334 = arith.addf %329, %333 : vector<4x352xf32>
    %c0_139 = arith.constant 0 : index
    %c60_140 = arith.constant 60 : index
    %335 = vector.load %arg13[%c0_139, %c60_140] : memref<4x640xf32, #tpu.memory_space<vmem>>, vector<4x352xf32>
    %336 = vector.extract_strided_slice %2 {offsets = [0, 1], sizes = [4, 1], strides = [1, 1]} : vector<4x49xf32> to vector<4x1xf32>
    %337 = vector.broadcast %336 : vector<4x1xf32> to vector<4x352xf32>
    %338 = arith.mulf %335, %337 : vector<4x352xf32>
    %339 = arith.addf %334, %338 : vector<4x352xf32>
    %c0_141 = arith.constant 0 : index
    %c61_142 = arith.constant 61 : index
    %340 = vector.load %arg13[%c0_141, %c61_142] : memref<4x640xf32, #tpu.memory_space<vmem>>, vector<4x352xf32>
    %341 = vector.extract_strided_slice %2 {offsets = [0, 2], sizes = [4, 1], strides = [1, 1]} : vector<4x49xf32> to vector<4x1xf32>
    %342 = vector.broadcast %341 : vector<4x1xf32> to vector<4x352xf32>
    %343 = arith.mulf %340, %342 : vector<4x352xf32>
    %344 = arith.addf %339, %343 : vector<4x352xf32>
    %c0_143 = arith.constant 0 : index
    %c62_144 = arith.constant 62 : index
    %345 = vector.load %arg13[%c0_143, %c62_144] : memref<4x640xf32, #tpu.memory_space<vmem>>, vector<4x352xf32>
    %346 = vector.extract_strided_slice %2 {offsets = [0, 3], sizes = [4, 1], strides = [1, 1]} : vector<4x49xf32> to vector<4x1xf32>
    %347 = vector.broadcast %346 : vector<4x1xf32> to vector<4x352xf32>
    %348 = arith.mulf %345, %347 : vector<4x352xf32>
    %349 = arith.addf %344, %348 : vector<4x352xf32>
    %c0_145 = arith.constant 0 : index
    %c63_146 = arith.constant 63 : index
    %350 = vector.load %arg13[%c0_145, %c63_146] : memref<4x640xf32, #tpu.memory_space<vmem>>, vector<4x352xf32>
    %351 = vector.extract_strided_slice %2 {offsets = [0, 4], sizes = [4, 1], strides = [1, 1]} : vector<4x49xf32> to vector<4x1xf32>
    %352 = vector.broadcast %351 : vector<4x1xf32> to vector<4x352xf32>
    %353 = arith.mulf %350, %352 : vector<4x352xf32>
    %354 = arith.addf %349, %353 : vector<4x352xf32>
    %c0_147 = arith.constant 0 : index
    %c64_148 = arith.constant 64 : index
    %355 = vector.load %arg13[%c0_147, %c64_148] : memref<4x640xf32, #tpu.memory_space<vmem>>, vector<4x352xf32>
    %356 = vector.extract_strided_slice %2 {offsets = [0, 5], sizes = [4, 1], strides = [1, 1]} : vector<4x49xf32> to vector<4x1xf32>
    %357 = vector.broadcast %356 : vector<4x1xf32> to vector<4x352xf32>
    %358 = arith.mulf %355, %357 : vector<4x352xf32>
    %359 = arith.addf %354, %358 : vector<4x352xf32>
    %c0_149 = arith.constant 0 : index
    %c65_150 = arith.constant 65 : index
    %360 = vector.load %arg13[%c0_149, %c65_150] : memref<4x640xf32, #tpu.memory_space<vmem>>, vector<4x352xf32>
    %361 = vector.extract_strided_slice %2 {offsets = [0, 6], sizes = [4, 1], strides = [1, 1]} : vector<4x49xf32> to vector<4x1xf32>
    %362 = vector.broadcast %361 : vector<4x1xf32> to vector<4x352xf32>
    %363 = arith.mulf %360, %362 : vector<4x352xf32>
    %364 = arith.addf %359, %363 : vector<4x352xf32>
    %c0_151 = arith.constant 0 : index
    %c81_152 = arith.constant 81 : index
    %365 = vector.load %arg13[%c0_151, %c81_152] : memref<4x640xf32, #tpu.memory_space<vmem>>, vector<4x352xf32>
    %366 = vector.extract_strided_slice %2 {offsets = [0, 7], sizes = [4, 1], strides = [1, 1]} : vector<4x49xf32> to vector<4x1xf32>
    %367 = vector.broadcast %366 : vector<4x1xf32> to vector<4x352xf32>
    %368 = arith.mulf %365, %367 : vector<4x352xf32>
    %369 = arith.addf %364, %368 : vector<4x352xf32>
    %c0_153 = arith.constant 0 : index
    %c82_154 = arith.constant 82 : index
    %370 = vector.load %arg13[%c0_153, %c82_154] : memref<4x640xf32, #tpu.memory_space<vmem>>, vector<4x352xf32>
    %371 = vector.extract_strided_slice %2 {offsets = [0, 8], sizes = [4, 1], strides = [1, 1]} : vector<4x49xf32> to vector<4x1xf32>
    %372 = vector.broadcast %371 : vector<4x1xf32> to vector<4x352xf32>
    %373 = arith.mulf %370, %372 : vector<4x352xf32>
    %374 = arith.addf %369, %373 : vector<4x352xf32>
    %c0_155 = arith.constant 0 : index
    %c83_156 = arith.constant 83 : index
    %375 = vector.load %arg13[%c0_155, %c83_156] : memref<4x640xf32, #tpu.memory_space<vmem>>, vector<4x352xf32>
    %376 = vector.extract_strided_slice %2 {offsets = [0, 9], sizes = [4, 1], strides = [1, 1]} : vector<4x49xf32> to vector<4x1xf32>
    %377 = vector.broadcast %376 : vector<4x1xf32> to vector<4x352xf32>
    %378 = arith.mulf %375, %377 : vector<4x352xf32>
    %379 = arith.addf %374, %378 : vector<4x352xf32>
    %c0_157 = arith.constant 0 : index
    %c84_158 = arith.constant 84 : index
    %380 = vector.load %arg13[%c0_157, %c84_158] : memref<4x640xf32, #tpu.memory_space<vmem>>, vector<4x352xf32>
    %381 = vector.extract_strided_slice %2 {offsets = [0, 10], sizes = [4, 1], strides = [1, 1]} : vector<4x49xf32> to vector<4x1xf32>
    %382 = vector.broadcast %381 : vector<4x1xf32> to vector<4x352xf32>
    %383 = arith.mulf %380, %382 : vector<4x352xf32>
    %384 = arith.addf %379, %383 : vector<4x352xf32>
    %c0_159 = arith.constant 0 : index
    %c85_160 = arith.constant 85 : index
    %385 = vector.load %arg13[%c0_159, %c85_160] : memref<4x640xf32, #tpu.memory_space<vmem>>, vector<4x352xf32>
    %386 = vector.extract_strided_slice %2 {offsets = [0, 11], sizes = [4, 1], strides = [1, 1]} : vector<4x49xf32> to vector<4x1xf32>
    %387 = vector.broadcast %386 : vector<4x1xf32> to vector<4x352xf32>
    %388 = arith.mulf %385, %387 : vector<4x352xf32>
    %389 = arith.addf %384, %388 : vector<4x352xf32>
    %c0_161 = arith.constant 0 : index
    %c86_162 = arith.constant 86 : index
    %390 = vector.load %arg13[%c0_161, %c86_162] : memref<4x640xf32, #tpu.memory_space<vmem>>, vector<4x352xf32>
    %391 = vector.extract_strided_slice %2 {offsets = [0, 12], sizes = [4, 1], strides = [1, 1]} : vector<4x49xf32> to vector<4x1xf32>
    %392 = vector.broadcast %391 : vector<4x1xf32> to vector<4x352xf32>
    %393 = arith.mulf %390, %392 : vector<4x352xf32>
    %394 = arith.addf %389, %393 : vector<4x352xf32>
    %c0_163 = arith.constant 0 : index
    %c87_164 = arith.constant 87 : index
    %395 = vector.load %arg13[%c0_163, %c87_164] : memref<4x640xf32, #tpu.memory_space<vmem>>, vector<4x352xf32>
    %396 = vector.extract_strided_slice %2 {offsets = [0, 13], sizes = [4, 1], strides = [1, 1]} : vector<4x49xf32> to vector<4x1xf32>
    %397 = vector.broadcast %396 : vector<4x1xf32> to vector<4x352xf32>
    %398 = arith.mulf %395, %397 : vector<4x352xf32>
    %399 = arith.addf %394, %398 : vector<4x352xf32>
    %c0_165 = arith.constant 0 : index
    %c103_166 = arith.constant 103 : index
    %400 = vector.load %arg13[%c0_165, %c103_166] : memref<4x640xf32, #tpu.memory_space<vmem>>, vector<4x352xf32>
    %401 = vector.extract_strided_slice %2 {offsets = [0, 14], sizes = [4, 1], strides = [1, 1]} : vector<4x49xf32> to vector<4x1xf32>
    %402 = vector.broadcast %401 : vector<4x1xf32> to vector<4x352xf32>
    %403 = arith.mulf %400, %402 : vector<4x352xf32>
    %404 = arith.addf %399, %403 : vector<4x352xf32>
    %c0_167 = arith.constant 0 : index
    %c104_168 = arith.constant 104 : index
    %405 = vector.load %arg13[%c0_167, %c104_168] : memref<4x640xf32, #tpu.memory_space<vmem>>, vector<4x352xf32>
    %406 = vector.extract_strided_slice %2 {offsets = [0, 15], sizes = [4, 1], strides = [1, 1]} : vector<4x49xf32> to vector<4x1xf32>
    %407 = vector.broadcast %406 : vector<4x1xf32> to vector<4x352xf32>
    %408 = arith.mulf %405, %407 : vector<4x352xf32>
    %409 = arith.addf %404, %408 : vector<4x352xf32>
    %c0_169 = arith.constant 0 : index
    %c105_170 = arith.constant 105 : index
    %410 = vector.load %arg13[%c0_169, %c105_170] : memref<4x640xf32, #tpu.memory_space<vmem>>, vector<4x352xf32>
    %411 = vector.extract_strided_slice %2 {offsets = [0, 16], sizes = [4, 1], strides = [1, 1]} : vector<4x49xf32> to vector<4x1xf32>
    %412 = vector.broadcast %411 : vector<4x1xf32> to vector<4x352xf32>
    %413 = arith.mulf %410, %412 : vector<4x352xf32>
    %414 = arith.addf %409, %413 : vector<4x352xf32>
    %c0_171 = arith.constant 0 : index
    %c106_172 = arith.constant 106 : index
    %415 = vector.load %arg13[%c0_171, %c106_172] : memref<4x640xf32, #tpu.memory_space<vmem>>, vector<4x352xf32>
    %416 = vector.extract_strided_slice %2 {offsets = [0, 17], sizes = [4, 1], strides = [1, 1]} : vector<4x49xf32> to vector<4x1xf32>
    %417 = vector.broadcast %416 : vector<4x1xf32> to vector<4x352xf32>
    %418 = arith.mulf %415, %417 : vector<4x352xf32>
    %419 = arith.addf %414, %418 : vector<4x352xf32>
    %c0_173 = arith.constant 0 : index
    %c107_174 = arith.constant 107 : index
    %420 = vector.load %arg13[%c0_173, %c107_174] : memref<4x640xf32, #tpu.memory_space<vmem>>, vector<4x352xf32>
    %421 = vector.extract_strided_slice %2 {offsets = [0, 18], sizes = [4, 1], strides = [1, 1]} : vector<4x49xf32> to vector<4x1xf32>
    %422 = vector.broadcast %421 : vector<4x1xf32> to vector<4x352xf32>
    %423 = arith.mulf %420, %422 : vector<4x352xf32>
    %424 = arith.addf %419, %423 : vector<4x352xf32>
    %c0_175 = arith.constant 0 : index
    %c108_176 = arith.constant 108 : index
    %425 = vector.load %arg13[%c0_175, %c108_176] : memref<4x640xf32, #tpu.memory_space<vmem>>, vector<4x352xf32>
    %426 = vector.extract_strided_slice %2 {offsets = [0, 19], sizes = [4, 1], strides = [1, 1]} : vector<4x49xf32> to vector<4x1xf32>
    %427 = vector.broadcast %426 : vector<4x1xf32> to vector<4x352xf32>
    %428 = arith.mulf %425, %427 : vector<4x352xf32>
    %429 = arith.addf %424, %428 : vector<4x352xf32>
    %c0_177 = arith.constant 0 : index
    %c109_178 = arith.constant 109 : index
    %430 = vector.load %arg13[%c0_177, %c109_178] : memref<4x640xf32, #tpu.memory_space<vmem>>, vector<4x352xf32>
    %431 = vector.extract_strided_slice %2 {offsets = [0, 20], sizes = [4, 1], strides = [1, 1]} : vector<4x49xf32> to vector<4x1xf32>
    %432 = vector.broadcast %431 : vector<4x1xf32> to vector<4x352xf32>
    %433 = arith.mulf %430, %432 : vector<4x352xf32>
    %434 = arith.addf %429, %433 : vector<4x352xf32>
    %c0_179 = arith.constant 0 : index
    %c125_180 = arith.constant 125 : index
    %435 = vector.load %arg13[%c0_179, %c125_180] : memref<4x640xf32, #tpu.memory_space<vmem>>, vector<4x352xf32>
    %436 = vector.extract_strided_slice %2 {offsets = [0, 21], sizes = [4, 1], strides = [1, 1]} : vector<4x49xf32> to vector<4x1xf32>
    %437 = vector.broadcast %436 : vector<4x1xf32> to vector<4x352xf32>
    %438 = arith.mulf %435, %437 : vector<4x352xf32>
    %439 = arith.addf %434, %438 : vector<4x352xf32>
    %c0_181 = arith.constant 0 : index
    %c126_182 = arith.constant 126 : index
    %440 = vector.load %arg13[%c0_181, %c126_182] : memref<4x640xf32, #tpu.memory_space<vmem>>, vector<4x352xf32>
    %441 = vector.extract_strided_slice %2 {offsets = [0, 22], sizes = [4, 1], strides = [1, 1]} : vector<4x49xf32> to vector<4x1xf32>
    %442 = vector.broadcast %441 : vector<4x1xf32> to vector<4x352xf32>
    %443 = arith.mulf %440, %442 : vector<4x352xf32>
    %444 = arith.addf %439, %443 : vector<4x352xf32>
    %c0_183 = arith.constant 0 : index
    %c127_184 = arith.constant 127 : index
    %445 = vector.load %arg13[%c0_183, %c127_184] : memref<4x640xf32, #tpu.memory_space<vmem>>, vector<4x352xf32>
    %446 = vector.extract_strided_slice %2 {offsets = [0, 23], sizes = [4, 1], strides = [1, 1]} : vector<4x49xf32> to vector<4x1xf32>
    %447 = vector.broadcast %446 : vector<4x1xf32> to vector<4x352xf32>
    %448 = arith.mulf %445, %447 : vector<4x352xf32>
    %449 = arith.addf %444, %448 : vector<4x352xf32>
    %c0_185 = arith.constant 0 : index
    %c128_186 = arith.constant 128 : index
    %450 = vector.load %arg13[%c0_185, %c128_186] : memref<4x640xf32, #tpu.memory_space<vmem>>, vector<4x352xf32>
    %451 = vector.extract_strided_slice %2 {offsets = [0, 24], sizes = [4, 1], strides = [1, 1]} : vector<4x49xf32> to vector<4x1xf32>
    %452 = vector.broadcast %451 : vector<4x1xf32> to vector<4x352xf32>
    %453 = arith.mulf %450, %452 : vector<4x352xf32>
    %454 = arith.addf %449, %453 : vector<4x352xf32>
    %c0_187 = arith.constant 0 : index
    %c129_188 = arith.constant 129 : index
    %455 = vector.load %arg13[%c0_187, %c129_188] : memref<4x640xf32, #tpu.memory_space<vmem>>, vector<4x352xf32>
    %456 = vector.extract_strided_slice %2 {offsets = [0, 25], sizes = [4, 1], strides = [1, 1]} : vector<4x49xf32> to vector<4x1xf32>
    %457 = vector.broadcast %456 : vector<4x1xf32> to vector<4x352xf32>
    %458 = arith.mulf %455, %457 : vector<4x352xf32>
    %459 = arith.addf %454, %458 : vector<4x352xf32>
    %c0_189 = arith.constant 0 : index
    %c130_190 = arith.constant 130 : index
    %460 = vector.load %arg13[%c0_189, %c130_190] : memref<4x640xf32, #tpu.memory_space<vmem>>, vector<4x352xf32>
    %461 = vector.extract_strided_slice %2 {offsets = [0, 26], sizes = [4, 1], strides = [1, 1]} : vector<4x49xf32> to vector<4x1xf32>
    %462 = vector.broadcast %461 : vector<4x1xf32> to vector<4x352xf32>
    %463 = arith.mulf %460, %462 : vector<4x352xf32>
    %464 = arith.addf %459, %463 : vector<4x352xf32>
    %c0_191 = arith.constant 0 : index
    %c131_192 = arith.constant 131 : index
    %465 = vector.load %arg13[%c0_191, %c131_192] : memref<4x640xf32, #tpu.memory_space<vmem>>, vector<4x352xf32>
    %466 = vector.extract_strided_slice %2 {offsets = [0, 27], sizes = [4, 1], strides = [1, 1]} : vector<4x49xf32> to vector<4x1xf32>
    %467 = vector.broadcast %466 : vector<4x1xf32> to vector<4x352xf32>
    %468 = arith.mulf %465, %467 : vector<4x352xf32>
    %469 = arith.addf %464, %468 : vector<4x352xf32>
    %c0_193 = arith.constant 0 : index
    %c147_194 = arith.constant 147 : index
    %470 = vector.load %arg13[%c0_193, %c147_194] : memref<4x640xf32, #tpu.memory_space<vmem>>, vector<4x352xf32>
    %471 = vector.extract_strided_slice %2 {offsets = [0, 28], sizes = [4, 1], strides = [1, 1]} : vector<4x49xf32> to vector<4x1xf32>
    %472 = vector.broadcast %471 : vector<4x1xf32> to vector<4x352xf32>
    %473 = arith.mulf %470, %472 : vector<4x352xf32>
    %474 = arith.addf %469, %473 : vector<4x352xf32>
    %c0_195 = arith.constant 0 : index
    %c148_196 = arith.constant 148 : index
    %475 = vector.load %arg13[%c0_195, %c148_196] : memref<4x640xf32, #tpu.memory_space<vmem>>, vector<4x352xf32>
    %476 = vector.extract_strided_slice %2 {offsets = [0, 29], sizes = [4, 1], strides = [1, 1]} : vector<4x49xf32> to vector<4x1xf32>
    %477 = vector.broadcast %476 : vector<4x1xf32> to vector<4x352xf32>
    %478 = arith.mulf %475, %477 : vector<4x352xf32>
    %479 = arith.addf %474, %478 : vector<4x352xf32>
    %c0_197 = arith.constant 0 : index
    %c149_198 = arith.constant 149 : index
    %480 = vector.load %arg13[%c0_197, %c149_198] : memref<4x640xf32, #tpu.memory_space<vmem>>, vector<4x352xf32>
    %481 = vector.extract_strided_slice %2 {offsets = [0, 30], sizes = [4, 1], strides = [1, 1]} : vector<4x49xf32> to vector<4x1xf32>
    %482 = vector.broadcast %481 : vector<4x1xf32> to vector<4x352xf32>
    %483 = arith.mulf %480, %482 : vector<4x352xf32>
    %484 = arith.addf %479, %483 : vector<4x352xf32>
    %c0_199 = arith.constant 0 : index
    %c150_200 = arith.constant 150 : index
    %485 = vector.load %arg13[%c0_199, %c150_200] : memref<4x640xf32, #tpu.memory_space<vmem>>, vector<4x352xf32>
    %486 = vector.extract_strided_slice %2 {offsets = [0, 31], sizes = [4, 1], strides = [1, 1]} : vector<4x49xf32> to vector<4x1xf32>
    %487 = vector.broadcast %486 : vector<4x1xf32> to vector<4x352xf32>
    %488 = arith.mulf %485, %487 : vector<4x352xf32>
    %489 = arith.addf %484, %488 : vector<4x352xf32>
    %c0_201 = arith.constant 0 : index
    %c151_202 = arith.constant 151 : index
    %490 = vector.load %arg13[%c0_201, %c151_202] : memref<4x640xf32, #tpu.memory_space<vmem>>, vector<4x352xf32>
    %491 = vector.extract_strided_slice %2 {offsets = [0, 32], sizes = [4, 1], strides = [1, 1]} : vector<4x49xf32> to vector<4x1xf32>
    %492 = vector.broadcast %491 : vector<4x1xf32> to vector<4x352xf32>
    %493 = arith.mulf %490, %492 : vector<4x352xf32>
    %494 = arith.addf %489, %493 : vector<4x352xf32>
    %c0_203 = arith.constant 0 : index
    %c152_204 = arith.constant 152 : index
    %495 = vector.load %arg13[%c0_203, %c152_204] : memref<4x640xf32, #tpu.memory_space<vmem>>, vector<4x352xf32>
    %496 = vector.extract_strided_slice %2 {offsets = [0, 33], sizes = [4, 1], strides = [1, 1]} : vector<4x49xf32> to vector<4x1xf32>
    %497 = vector.broadcast %496 : vector<4x1xf32> to vector<4x352xf32>
    %498 = arith.mulf %495, %497 : vector<4x352xf32>
    %499 = arith.addf %494, %498 : vector<4x352xf32>
    %c0_205 = arith.constant 0 : index
    %c153_206 = arith.constant 153 : index
    %500 = vector.load %arg13[%c0_205, %c153_206] : memref<4x640xf32, #tpu.memory_space<vmem>>, vector<4x352xf32>
    %501 = vector.extract_strided_slice %2 {offsets = [0, 34], sizes = [4, 1], strides = [1, 1]} : vector<4x49xf32> to vector<4x1xf32>
    %502 = vector.broadcast %501 : vector<4x1xf32> to vector<4x352xf32>
    %503 = arith.mulf %500, %502 : vector<4x352xf32>
    %504 = arith.addf %499, %503 : vector<4x352xf32>
    %c0_207 = arith.constant 0 : index
    %c169_208 = arith.constant 169 : index
    %505 = vector.load %arg13[%c0_207, %c169_208] : memref<4x640xf32, #tpu.memory_space<vmem>>, vector<4x352xf32>
    %506 = vector.extract_strided_slice %2 {offsets = [0, 35], sizes = [4, 1], strides = [1, 1]} : vector<4x49xf32> to vector<4x1xf32>
    %507 = vector.broadcast %506 : vector<4x1xf32> to vector<4x352xf32>
    %508 = arith.mulf %505, %507 : vector<4x352xf32>
    %509 = arith.addf %504, %508 : vector<4x352xf32>
    %c0_209 = arith.constant 0 : index
    %c170_210 = arith.constant 170 : index
    %510 = vector.load %arg13[%c0_209, %c170_210] : memref<4x640xf32, #tpu.memory_space<vmem>>, vector<4x352xf32>
    %511 = vector.extract_strided_slice %2 {offsets = [0, 36], sizes = [4, 1], strides = [1, 1]} : vector<4x49xf32> to vector<4x1xf32>
    %512 = vector.broadcast %511 : vector<4x1xf32> to vector<4x352xf32>
    %513 = arith.mulf %510, %512 : vector<4x352xf32>
    %514 = arith.addf %509, %513 : vector<4x352xf32>
    %c0_211 = arith.constant 0 : index
    %c171_212 = arith.constant 171 : index
    %515 = vector.load %arg13[%c0_211, %c171_212] : memref<4x640xf32, #tpu.memory_space<vmem>>, vector<4x352xf32>
    %516 = vector.extract_strided_slice %2 {offsets = [0, 37], sizes = [4, 1], strides = [1, 1]} : vector<4x49xf32> to vector<4x1xf32>
    %517 = vector.broadcast %516 : vector<4x1xf32> to vector<4x352xf32>
    %518 = arith.mulf %515, %517 : vector<4x352xf32>
    %519 = arith.addf %514, %518 : vector<4x352xf32>
    %c0_213 = arith.constant 0 : index
    %c172_214 = arith.constant 172 : index
    %520 = vector.load %arg13[%c0_213, %c172_214] : memref<4x640xf32, #tpu.memory_space<vmem>>, vector<4x352xf32>
    %521 = vector.extract_strided_slice %2 {offsets = [0, 38], sizes = [4, 1], strides = [1, 1]} : vector<4x49xf32> to vector<4x1xf32>
    %522 = vector.broadcast %521 : vector<4x1xf32> to vector<4x352xf32>
    %523 = arith.mulf %520, %522 : vector<4x352xf32>
    %524 = arith.addf %519, %523 : vector<4x352xf32>
    %c0_215 = arith.constant 0 : index
    %c173_216 = arith.constant 173 : index
    %525 = vector.load %arg13[%c0_215, %c173_216] : memref<4x640xf32, #tpu.memory_space<vmem>>, vector<4x352xf32>
    %526 = vector.extract_strided_slice %2 {offsets = [0, 39], sizes = [4, 1], strides = [1, 1]} : vector<4x49xf32> to vector<4x1xf32>
    %527 = vector.broadcast %526 : vector<4x1xf32> to vector<4x352xf32>
    %528 = arith.mulf %525, %527 : vector<4x352xf32>
    %529 = arith.addf %524, %528 : vector<4x352xf32>
    %c0_217 = arith.constant 0 : index
    %c174_218 = arith.constant 174 : index
    %530 = vector.load %arg13[%c0_217, %c174_218] : memref<4x640xf32, #tpu.memory_space<vmem>>, vector<4x352xf32>
    %531 = vector.extract_strided_slice %2 {offsets = [0, 40], sizes = [4, 1], strides = [1, 1]} : vector<4x49xf32> to vector<4x1xf32>
    %532 = vector.broadcast %531 : vector<4x1xf32> to vector<4x352xf32>
    %533 = arith.mulf %530, %532 : vector<4x352xf32>
    %534 = arith.addf %529, %533 : vector<4x352xf32>
    %c0_219 = arith.constant 0 : index
    %c175_220 = arith.constant 175 : index
    %535 = vector.load %arg13[%c0_219, %c175_220] : memref<4x640xf32, #tpu.memory_space<vmem>>, vector<4x352xf32>
    %536 = vector.extract_strided_slice %2 {offsets = [0, 41], sizes = [4, 1], strides = [1, 1]} : vector<4x49xf32> to vector<4x1xf32>
    %537 = vector.broadcast %536 : vector<4x1xf32> to vector<4x352xf32>
    %538 = arith.mulf %535, %537 : vector<4x352xf32>
    %539 = arith.addf %534, %538 : vector<4x352xf32>
    %c0_221 = arith.constant 0 : index
    %c191_222 = arith.constant 191 : index
    %540 = vector.load %arg13[%c0_221, %c191_222] : memref<4x640xf32, #tpu.memory_space<vmem>>, vector<4x352xf32>
    %541 = vector.extract_strided_slice %2 {offsets = [0, 42], sizes = [4, 1], strides = [1, 1]} : vector<4x49xf32> to vector<4x1xf32>
    %542 = vector.broadcast %541 : vector<4x1xf32> to vector<4x352xf32>
    %543 = arith.mulf %540, %542 : vector<4x352xf32>
    %544 = arith.addf %539, %543 : vector<4x352xf32>
    %c0_223 = arith.constant 0 : index
    %c192_224 = arith.constant 192 : index
    %545 = vector.load %arg13[%c0_223, %c192_224] : memref<4x640xf32, #tpu.memory_space<vmem>>, vector<4x352xf32>
    %546 = vector.extract_strided_slice %2 {offsets = [0, 43], sizes = [4, 1], strides = [1, 1]} : vector<4x49xf32> to vector<4x1xf32>
    %547 = vector.broadcast %546 : vector<4x1xf32> to vector<4x352xf32>
    %548 = arith.mulf %545, %547 : vector<4x352xf32>
    %549 = arith.addf %544, %548 : vector<4x352xf32>
    %c0_225 = arith.constant 0 : index
    %c193_226 = arith.constant 193 : index
    %550 = vector.load %arg13[%c0_225, %c193_226] : memref<4x640xf32, #tpu.memory_space<vmem>>, vector<4x352xf32>
    %551 = vector.extract_strided_slice %2 {offsets = [0, 44], sizes = [4, 1], strides = [1, 1]} : vector<4x49xf32> to vector<4x1xf32>
    %552 = vector.broadcast %551 : vector<4x1xf32> to vector<4x352xf32>
    %553 = arith.mulf %550, %552 : vector<4x352xf32>
    %554 = arith.addf %549, %553 : vector<4x352xf32>
    %c0_227 = arith.constant 0 : index
    %c194_228 = arith.constant 194 : index
    %555 = vector.load %arg13[%c0_227, %c194_228] : memref<4x640xf32, #tpu.memory_space<vmem>>, vector<4x352xf32>
    %556 = vector.extract_strided_slice %2 {offsets = [0, 45], sizes = [4, 1], strides = [1, 1]} : vector<4x49xf32> to vector<4x1xf32>
    %557 = vector.broadcast %556 : vector<4x1xf32> to vector<4x352xf32>
    %558 = arith.mulf %555, %557 : vector<4x352xf32>
    %559 = arith.addf %554, %558 : vector<4x352xf32>
    %c0_229 = arith.constant 0 : index
    %c195_230 = arith.constant 195 : index
    %560 = vector.load %arg13[%c0_229, %c195_230] : memref<4x640xf32, #tpu.memory_space<vmem>>, vector<4x352xf32>
    %561 = vector.extract_strided_slice %2 {offsets = [0, 46], sizes = [4, 1], strides = [1, 1]} : vector<4x49xf32> to vector<4x1xf32>
    %562 = vector.broadcast %561 : vector<4x1xf32> to vector<4x352xf32>
    %563 = arith.mulf %560, %562 : vector<4x352xf32>
    %564 = arith.addf %559, %563 : vector<4x352xf32>
    %c0_231 = arith.constant 0 : index
    %c196_232 = arith.constant 196 : index
    %565 = vector.load %arg13[%c0_231, %c196_232] : memref<4x640xf32, #tpu.memory_space<vmem>>, vector<4x352xf32>
    %566 = vector.extract_strided_slice %2 {offsets = [0, 47], sizes = [4, 1], strides = [1, 1]} : vector<4x49xf32> to vector<4x1xf32>
    %567 = vector.broadcast %566 : vector<4x1xf32> to vector<4x352xf32>
    %568 = arith.mulf %565, %567 : vector<4x352xf32>
    %569 = arith.addf %564, %568 : vector<4x352xf32>
    %c0_233 = arith.constant 0 : index
    %c197_234 = arith.constant 197 : index
    %570 = vector.load %arg13[%c0_233, %c197_234] : memref<4x640xf32, #tpu.memory_space<vmem>>, vector<4x352xf32>
    %571 = vector.extract_strided_slice %2 {offsets = [0, 48], sizes = [4, 1], strides = [1, 1]} : vector<4x49xf32> to vector<4x1xf32>
    %572 = vector.broadcast %571 : vector<4x1xf32> to vector<4x352xf32>
    %573 = arith.mulf %570, %572 : vector<4x352xf32>
    %574 = arith.addf %569, %573 : vector<4x352xf32>
    %575 = vector.broadcast %3 : vector<4x1xf32> to vector<4x352xf32>
    %576 = arith.addf %574, %575 : vector<4x352xf32>
    %c0_235 = arith.constant 0 : index
    %c0_236 = arith.constant 0 : index
    %c0_237 = arith.constant 0 : index
    %577 = vector.load %arg1[%c0_235, %c0_236, %c0_237] : memref<1x4x256xf32, #tpu.memory_space<vmem>>, vector<1x4x16xf32>
    %578 = vector.shape_cast %577 : vector<1x4x16xf32> to vector<4x16xf32>
    %579 = vector.extract_strided_slice %576 {offsets = [0, 3], sizes = [4, 16], strides = [1, 1]} : vector<4x352xf32> to vector<4x16xf32>
    %580 = arith.addf %578, %579 : vector<4x16xf32>
    %c0_238 = arith.constant 0 : index
    %c0_239 = arith.constant 0 : index
    %c0_240 = arith.constant 0 : index
    %581 = vector.load %arg11[%c0_238, %c0_239, %c0_240] : memref<1x4x256xf32, #tpu.memory_space<vmem>>, vector<1x4x16xf32>
    %582 = vector.shape_cast %581 : vector<1x4x16xf32> to vector<4x16xf32>
    %583 = vector.shape_cast %580 : vector<4x16xf32> to vector<1x4x16xf32>
    tpu.vector_store %arg11[%c0_238, %c0_239, %c0_240], %583 {strides = array<i32>} : memref<1x4x256xf32, #tpu.memory_space<vmem>>, vector<1x4x16xf32>,
    %c0_241 = arith.constant 0 : index
    %c0_242 = arith.constant 0 : index
    %c16_243 = arith.constant 16 : index
    %584 = vector.load %arg1[%c0_241, %c0_242, %c16_243] : memref<1x4x256xf32, #tpu.memory_space<vmem>>, vector<1x4x16xf32>
    %585 = vector.shape_cast %584 : vector<1x4x16xf32> to vector<4x16xf32>
    %586 = vector.extract_strided_slice %576 {offsets = [0, 25], sizes = [4, 16], strides = [1, 1]} : vector<4x352xf32> to vector<4x16xf32>
    %587 = arith.addf %585, %586 : vector<4x16xf32>
    %c0_244 = arith.constant 0 : index
    %c0_245 = arith.constant 0 : index
    %c16_246 = arith.constant 16 : index
    %588 = vector.load %arg11[%c0_244, %c0_245, %c16_246] : memref<1x4x256xf32, #tpu.memory_space<vmem>>, vector<1x4x16xf32>
    %589 = vector.shape_cast %588 : vector<1x4x16xf32> to vector<4x16xf32>
    %590 = vector.shape_cast %587 : vector<4x16xf32> to vector<1x4x16xf32>
    tpu.vector_store %arg11[%c0_244, %c0_245, %c16_246], %590 {strides = array<i32>} : memref<1x4x256xf32, #tpu.memory_space<vmem>>, vector<1x4x16xf32>,
    %c0_247 = arith.constant 0 : index
    %c0_248 = arith.constant 0 : index
    %c32_249 = arith.constant 32 : index
    %591 = vector.load %arg1[%c0_247, %c0_248, %c32_249] : memref<1x4x256xf32, #tpu.memory_space<vmem>>, vector<1x4x16xf32>
    %592 = vector.shape_cast %591 : vector<1x4x16xf32> to vector<4x16xf32>
    %593 = vector.extract_strided_slice %576 {offsets = [0, 47], sizes = [4, 16], strides = [1, 1]} : vector<4x352xf32> to vector<4x16xf32>
    %594 = arith.addf %592, %593 : vector<4x16xf32>
    %c0_250 = arith.constant 0 : index
    %c0_251 = arith.constant 0 : index
    %c32_252 = arith.constant 32 : index
    %595 = vector.load %arg11[%c0_250, %c0_251, %c32_252] : memref<1x4x256xf32, #tpu.memory_space<vmem>>, vector<1x4x16xf32>
    %596 = vector.shape_cast %595 : vector<1x4x16xf32> to vector<4x16xf32>
    %597 = vector.shape_cast %594 : vector<4x16xf32> to vector<1x4x16xf32>
    tpu.vector_store %arg11[%c0_250, %c0_251, %c32_252], %597 {strides = array<i32>} : memref<1x4x256xf32, #tpu.memory_space<vmem>>, vector<1x4x16xf32>,
    %c0_253 = arith.constant 0 : index
    %c0_254 = arith.constant 0 : index
    %c48_255 = arith.constant 48 : index
    %598 = vector.load %arg1[%c0_253, %c0_254, %c48_255] : memref<1x4x256xf32, #tpu.memory_space<vmem>>, vector<1x4x16xf32>
    %599 = vector.shape_cast %598 : vector<1x4x16xf32> to vector<4x16xf32>
    %600 = vector.extract_strided_slice %576 {offsets = [0, 69], sizes = [4, 16], strides = [1, 1]} : vector<4x352xf32> to vector<4x16xf32>
    %601 = arith.addf %599, %600 : vector<4x16xf32>
    %c0_256 = arith.constant 0 : index
    %c0_257 = arith.constant 0 : index
    %c48_258 = arith.constant 48 : index
    %602 = vector.load %arg11[%c0_256, %c0_257, %c48_258] : memref<1x4x256xf32, #tpu.memory_space<vmem>>, vector<1x4x16xf32>
    %603 = vector.shape_cast %602 : vector<1x4x16xf32> to vector<4x16xf32>
    %604 = vector.shape_cast %601 : vector<4x16xf32> to vector<1x4x16xf32>
    tpu.vector_store %arg11[%c0_256, %c0_257, %c48_258], %604 {strides = array<i32>} : memref<1x4x256xf32, #tpu.memory_space<vmem>>, vector<1x4x16xf32>,
    %c0_259 = arith.constant 0 : index
    %c0_260 = arith.constant 0 : index
    %c64_261 = arith.constant 64 : index
    %605 = vector.load %arg1[%c0_259, %c0_260, %c64_261] : memref<1x4x256xf32, #tpu.memory_space<vmem>>, vector<1x4x16xf32>
    %606 = vector.shape_cast %605 : vector<1x4x16xf32> to vector<4x16xf32>
    %607 = vector.extract_strided_slice %576 {offsets = [0, 91], sizes = [4, 16], strides = [1, 1]} : vector<4x352xf32> to vector<4x16xf32>
    %608 = arith.addf %606, %607 : vector<4x16xf32>
    %c0_262 = arith.constant 0 : index
    %c0_263 = arith.constant 0 : index
    %c64_264 = arith.constant 64 : index
    %609 = vector.load %arg11[%c0_262, %c0_263, %c64_264] : memref<1x4x256xf32, #tpu.memory_space<vmem>>, vector<1x4x16xf32>
    %610 = vector.shape_cast %609 : vector<1x4x16xf32> to vector<4x16xf32>
    %611 = vector.shape_cast %608 : vector<4x16xf32> to vector<1x4x16xf32>
    tpu.vector_store %arg11[%c0_262, %c0_263, %c64_264], %611 {strides = array<i32>} : memref<1x4x256xf32, #tpu.memory_space<vmem>>, vector<1x4x16xf32>,
    %c0_265 = arith.constant 0 : index
    %c0_266 = arith.constant 0 : index
    %c80_267 = arith.constant 80 : index
    %612 = vector.load %arg1[%c0_265, %c0_266, %c80_267] : memref<1x4x256xf32, #tpu.memory_space<vmem>>, vector<1x4x16xf32>
    %613 = vector.shape_cast %612 : vector<1x4x16xf32> to vector<4x16xf32>
    %614 = vector.extract_strided_slice %576 {offsets = [0, 113], sizes = [4, 16], strides = [1, 1]} : vector<4x352xf32> to vector<4x16xf32>
    %615 = arith.addf %613, %614 : vector<4x16xf32>
    %c0_268 = arith.constant 0 : index
    %c0_269 = arith.constant 0 : index
    %c80_270 = arith.constant 80 : index
    %616 = vector.load %arg11[%c0_268, %c0_269, %c80_270] : memref<1x4x256xf32, #tpu.memory_space<vmem>>, vector<1x4x16xf32>
    %617 = vector.shape_cast %616 : vector<1x4x16xf32> to vector<4x16xf32>
    %618 = vector.shape_cast %615 : vector<4x16xf32> to vector<1x4x16xf32>
    tpu.vector_store %arg11[%c0_268, %c0_269, %c80_270], %618 {strides = array<i32>} : memref<1x4x256xf32, #tpu.memory_space<vmem>>, vector<1x4x16xf32>,
    %c0_271 = arith.constant 0 : index
    %c0_272 = arith.constant 0 : index
    %c96_273 = arith.constant 96 : index
    %619 = vector.load %arg1[%c0_271, %c0_272, %c96_273] : memref<1x4x256xf32, #tpu.memory_space<vmem>>, vector<1x4x16xf32>
    %620 = vector.shape_cast %619 : vector<1x4x16xf32> to vector<4x16xf32>
    %621 = vector.extract_strided_slice %576 {offsets = [0, 135], sizes = [4, 16], strides = [1, 1]} : vector<4x352xf32> to vector<4x16xf32>
    %622 = arith.addf %620, %621 : vector<4x16xf32>
    %c0_274 = arith.constant 0 : index
    %c0_275 = arith.constant 0 : index
    %c96_276 = arith.constant 96 : index
    %623 = vector.load %arg11[%c0_274, %c0_275, %c96_276] : memref<1x4x256xf32, #tpu.memory_space<vmem>>, vector<1x4x16xf32>
    %624 = vector.shape_cast %623 : vector<1x4x16xf32> to vector<4x16xf32>
    %625 = vector.shape_cast %622 : vector<4x16xf32> to vector<1x4x16xf32>
    tpu.vector_store %arg11[%c0_274, %c0_275, %c96_276], %625 {strides = array<i32>} : memref<1x4x256xf32, #tpu.memory_space<vmem>>, vector<1x4x16xf32>,
    %c0_277 = arith.constant 0 : index
    %c0_278 = arith.constant 0 : index
    %c112_279 = arith.constant 112 : index
    %626 = vector.load %arg1[%c0_277, %c0_278, %c112_279] : memref<1x4x256xf32, #tpu.memory_space<vmem>>, vector<1x4x16xf32>
    %627 = vector.shape_cast %626 : vector<1x4x16xf32> to vector<4x16xf32>
    %628 = vector.extract_strided_slice %576 {offsets = [0, 157], sizes = [4, 16], strides = [1, 1]} : vector<4x352xf32> to vector<4x16xf32>
    %629 = arith.addf %627, %628 : vector<4x16xf32>
    %c0_280 = arith.constant 0 : index
    %c0_281 = arith.constant 0 : index
    %c112_282 = arith.constant 112 : index
    %630 = vector.load %arg11[%c0_280, %c0_281, %c112_282] : memref<1x4x256xf32, #tpu.memory_space<vmem>>, vector<1x4x16xf32>
    %631 = vector.shape_cast %630 : vector<1x4x16xf32> to vector<4x16xf32>
    %632 = vector.shape_cast %629 : vector<4x16xf32> to vector<1x4x16xf32>
    tpu.vector_store %arg11[%c0_280, %c0_281, %c112_282], %632 {strides = array<i32>} : memref<1x4x256xf32, #tpu.memory_space<vmem>>, vector<1x4x16xf32>,
    %c0_283 = arith.constant 0 : index
    %c0_284 = arith.constant 0 : index
    %c128_285 = arith.constant 128 : index
    %633 = vector.load %arg1[%c0_283, %c0_284, %c128_285] : memref<1x4x256xf32, #tpu.memory_space<vmem>>, vector<1x4x16xf32>
    %634 = vector.shape_cast %633 : vector<1x4x16xf32> to vector<4x16xf32>
    %635 = vector.extract_strided_slice %576 {offsets = [0, 179], sizes = [4, 16], strides = [1, 1]} : vector<4x352xf32> to vector<4x16xf32>
    %636 = arith.addf %634, %635 : vector<4x16xf32>
    %c0_286 = arith.constant 0 : index
    %c0_287 = arith.constant 0 : index
    %c128_288 = arith.constant 128 : index
    %637 = vector.load %arg11[%c0_286, %c0_287, %c128_288] : memref<1x4x256xf32, #tpu.memory_space<vmem>>, vector<1x4x16xf32>
    %638 = vector.shape_cast %637 : vector<1x4x16xf32> to vector<4x16xf32>
    %639 = vector.shape_cast %636 : vector<4x16xf32> to vector<1x4x16xf32>
    tpu.vector_store %arg11[%c0_286, %c0_287, %c128_288], %639 {strides = array<i32>} : memref<1x4x256xf32, #tpu.memory_space<vmem>>, vector<1x4x16xf32>,
    %c0_289 = arith.constant 0 : index
    %c0_290 = arith.constant 0 : index
    %c144_291 = arith.constant 144 : index
    %640 = vector.load %arg1[%c0_289, %c0_290, %c144_291] : memref<1x4x256xf32, #tpu.memory_space<vmem>>, vector<1x4x16xf32>
    %641 = vector.shape_cast %640 : vector<1x4x16xf32> to vector<4x16xf32>
    %642 = vector.extract_strided_slice %576 {offsets = [0, 201], sizes = [4, 16], strides = [1, 1]} : vector<4x352xf32> to vector<4x16xf32>
    %643 = arith.addf %641, %642 : vector<4x16xf32>
    %c0_292 = arith.constant 0 : index
    %c0_293 = arith.constant 0 : index
    %c144_294 = arith.constant 144 : index
    %644 = vector.load %arg11[%c0_292, %c0_293, %c144_294] : memref<1x4x256xf32, #tpu.memory_space<vmem>>, vector<1x4x16xf32>
    %645 = vector.shape_cast %644 : vector<1x4x16xf32> to vector<4x16xf32>
    %646 = vector.shape_cast %643 : vector<4x16xf32> to vector<1x4x16xf32>
    tpu.vector_store %arg11[%c0_292, %c0_293, %c144_294], %646 {strides = array<i32>} : memref<1x4x256xf32, #tpu.memory_space<vmem>>, vector<1x4x16xf32>,
    %c0_295 = arith.constant 0 : index
    %c0_296 = arith.constant 0 : index
    %c160_297 = arith.constant 160 : index
    %647 = vector.load %arg1[%c0_295, %c0_296, %c160_297] : memref<1x4x256xf32, #tpu.memory_space<vmem>>, vector<1x4x16xf32>
    %648 = vector.shape_cast %647 : vector<1x4x16xf32> to vector<4x16xf32>
    %649 = vector.extract_strided_slice %576 {offsets = [0, 223], sizes = [4, 16], strides = [1, 1]} : vector<4x352xf32> to vector<4x16xf32>
    %650 = arith.addf %648, %649 : vector<4x16xf32>
    %c0_298 = arith.constant 0 : index
    %c0_299 = arith.constant 0 : index
    %c160_300 = arith.constant 160 : index
    %651 = vector.load %arg11[%c0_298, %c0_299, %c160_300] : memref<1x4x256xf32, #tpu.memory_space<vmem>>, vector<1x4x16xf32>
    %652 = vector.shape_cast %651 : vector<1x4x16xf32> to vector<4x16xf32>
    %653 = vector.shape_cast %650 : vector<4x16xf32> to vector<1x4x16xf32>
    tpu.vector_store %arg11[%c0_298, %c0_299, %c160_300], %653 {strides = array<i32>} : memref<1x4x256xf32, #tpu.memory_space<vmem>>, vector<1x4x16xf32>,
    %c0_301 = arith.constant 0 : index
    %c0_302 = arith.constant 0 : index
    %c176_303 = arith.constant 176 : index
    %654 = vector.load %arg1[%c0_301, %c0_302, %c176_303] : memref<1x4x256xf32, #tpu.memory_space<vmem>>, vector<1x4x16xf32>
    %655 = vector.shape_cast %654 : vector<1x4x16xf32> to vector<4x16xf32>
    %656 = vector.extract_strided_slice %576 {offsets = [0, 245], sizes = [4, 16], strides = [1, 1]} : vector<4x352xf32> to vector<4x16xf32>
    %657 = arith.addf %655, %656 : vector<4x16xf32>
    %c0_304 = arith.constant 0 : index
    %c0_305 = arith.constant 0 : index
    %c176_306 = arith.constant 176 : index
    %658 = vector.load %arg11[%c0_304, %c0_305, %c176_306] : memref<1x4x256xf32, #tpu.memory_space<vmem>>, vector<1x4x16xf32>
    %659 = vector.shape_cast %658 : vector<1x4x16xf32> to vector<4x16xf32>
    %660 = vector.shape_cast %657 : vector<4x16xf32> to vector<1x4x16xf32>
    tpu.vector_store %arg11[%c0_304, %c0_305, %c176_306], %660 {strides = array<i32>} : memref<1x4x256xf32, #tpu.memory_space<vmem>>, vector<1x4x16xf32>,
    %c0_307 = arith.constant 0 : index
    %c0_308 = arith.constant 0 : index
    %c192_309 = arith.constant 192 : index
    %661 = vector.load %arg1[%c0_307, %c0_308, %c192_309] : memref<1x4x256xf32, #tpu.memory_space<vmem>>, vector<1x4x16xf32>
    %662 = vector.shape_cast %661 : vector<1x4x16xf32> to vector<4x16xf32>
    %663 = vector.extract_strided_slice %576 {offsets = [0, 267], sizes = [4, 16], strides = [1, 1]} : vector<4x352xf32> to vector<4x16xf32>
    %664 = arith.addf %662, %663 : vector<4x16xf32>
    %c0_310 = arith.constant 0 : index
    %c0_311 = arith.constant 0 : index
    %c192_312 = arith.constant 192 : index
    %665 = vector.load %arg11[%c0_310, %c0_311, %c192_312] : memref<1x4x256xf32, #tpu.memory_space<vmem>>, vector<1x4x16xf32>
    %666 = vector.shape_cast %665 : vector<1x4x16xf32> to vector<4x16xf32>
    %667 = vector.shape_cast %664 : vector<4x16xf32> to vector<1x4x16xf32>
    tpu.vector_store %arg11[%c0_310, %c0_311, %c192_312], %667 {strides = array<i32>} : memref<1x4x256xf32, #tpu.memory_space<vmem>>, vector<1x4x16xf32>,
    %c0_313 = arith.constant 0 : index
    %c0_314 = arith.constant 0 : index
    %c208_315 = arith.constant 208 : index
    %668 = vector.load %arg1[%c0_313, %c0_314, %c208_315] : memref<1x4x256xf32, #tpu.memory_space<vmem>>, vector<1x4x16xf32>
    %669 = vector.shape_cast %668 : vector<1x4x16xf32> to vector<4x16xf32>
    %670 = vector.extract_strided_slice %576 {offsets = [0, 289], sizes = [4, 16], strides = [1, 1]} : vector<4x352xf32> to vector<4x16xf32>
    %671 = arith.addf %669, %670 : vector<4x16xf32>
    %c0_316 = arith.constant 0 : index
    %c0_317 = arith.constant 0 : index
    %c208_318 = arith.constant 208 : index
    %672 = vector.load %arg11[%c0_316, %c0_317, %c208_318] : memref<1x4x256xf32, #tpu.memory_space<vmem>>, vector<1x4x16xf32>
    %673 = vector.shape_cast %672 : vector<1x4x16xf32> to vector<4x16xf32>
    %674 = vector.shape_cast %671 : vector<4x16xf32> to vector<1x4x16xf32>
    tpu.vector_store %arg11[%c0_316, %c0_317, %c208_318], %674 {strides = array<i32>} : memref<1x4x256xf32, #tpu.memory_space<vmem>>, vector<1x4x16xf32>,
    %c0_319 = arith.constant 0 : index
    %c0_320 = arith.constant 0 : index
    %c224_321 = arith.constant 224 : index
    %675 = vector.load %arg1[%c0_319, %c0_320, %c224_321] : memref<1x4x256xf32, #tpu.memory_space<vmem>>, vector<1x4x16xf32>
    %676 = vector.shape_cast %675 : vector<1x4x16xf32> to vector<4x16xf32>
    %677 = vector.extract_strided_slice %576 {offsets = [0, 311], sizes = [4, 16], strides = [1, 1]} : vector<4x352xf32> to vector<4x16xf32>
    %678 = arith.addf %676, %677 : vector<4x16xf32>
    %c0_322 = arith.constant 0 : index
    %c0_323 = arith.constant 0 : index
    %c224_324 = arith.constant 224 : index
    %679 = vector.load %arg11[%c0_322, %c0_323, %c224_324] : memref<1x4x256xf32, #tpu.memory_space<vmem>>, vector<1x4x16xf32>
    %680 = vector.shape_cast %679 : vector<1x4x16xf32> to vector<4x16xf32>
    %681 = vector.shape_cast %678 : vector<4x16xf32> to vector<1x4x16xf32>
    tpu.vector_store %arg11[%c0_322, %c0_323, %c224_324], %681 {strides = array<i32>} : memref<1x4x256xf32, #tpu.memory_space<vmem>>, vector<1x4x16xf32>,
    %c0_325 = arith.constant 0 : index
    %c0_326 = arith.constant 0 : index
    %c240_327 = arith.constant 240 : index
    %682 = vector.load %arg1[%c0_325, %c0_326, %c240_327] : memref<1x4x256xf32, #tpu.memory_space<vmem>>, vector<1x4x16xf32>
    %683 = vector.shape_cast %682 : vector<1x4x16xf32> to vector<4x16xf32>
    %684 = vector.extract_strided_slice %576 {offsets = [0, 333], sizes = [4, 16], strides = [1, 1]} : vector<4x352xf32> to vector<4x16xf32>
    %685 = arith.addf %683, %684 : vector<4x16xf32>
    %c0_328 = arith.constant 0 : index
    %c0_329 = arith.constant 0 : index
    %c240_330 = arith.constant 240 : index
    %686 = vector.load %arg11[%c0_328, %c0_329, %c240_330] : memref<1x4x256xf32, #tpu.memory_space<vmem>>, vector<1x4x16xf32>
    %687 = vector.shape_cast %686 : vector<1x4x16xf32> to vector<4x16xf32>
    %688 = vector.shape_cast %685 : vector<4x16xf32> to vector<1x4x16xf32>
    tpu.vector_store %arg11[%c0_328, %c0_329, %c240_330], %688 {strides = array<i32>} : memref<1x4x256xf32, #tpu.memory_space<vmem>>, vector<1x4x16xf32>,
    return
  }
  func.func @transform_0(%arg0: i32) -> (i32, i32, i32) {
    %c0_i32 = arith.constant 0 : i32
    %c0_i32_0 = arith.constant 0 : i32
    %c0_i32_1 = arith.constant 0 : i32
    return %arg0, %c0_i32, %c0_i32_0 : i32, i32, i32
  }
  func.func @transform_1(%arg0: i32) -> (i32, i32) {
    %c0_i32 = arith.constant 0 : i32
    %c0_i32_0 = arith.constant 0 : i32
    %c0_i32_1 = arith.constant 0 : i32
    return %c0_i32, %c0_i32_0 : i32, i32
  }
  func.func @transform_2(%arg0: i32) -> (i32, i32) {
    %c0_i32 = arith.constant 0 : i32
    %c0_i32_0 = arith.constant 0 : i32
    %c0_i32_1 = arith.constant 0 : i32
    return %c0_i32, %c0_i32_0 : i32, i32
  }
  func.func @transform_3(%arg0: i32) -> (i32, i32) {
    %c0_i32 = arith.constant 0 : i32
    %c0_i32_0 = arith.constant 0 : i32
    %c0_i32_1 = arith.constant 0 : i32
    return %c0_i32, %c0_i32_0 : i32, i32
  }
  func.func @transform_4(%arg0: i32) -> (i32, i32) {
    %c0_i32 = arith.constant 0 : i32
    %c0_i32_0 = arith.constant 0 : i32
    %c0_i32_1 = arith.constant 0 : i32
    return %c0_i32, %c0_i32_0 : i32, i32
  }
  func.func @transform_5(%arg0: i32) -> (i32, i32) {
    %c0_i32 = arith.constant 0 : i32
    %c0_i32_0 = arith.constant 0 : i32
    %c0_i32_1 = arith.constant 0 : i32
    return %c0_i32, %c0_i32_0 : i32, i32
  }
  func.func @transform_6(%arg0: i32) -> (i32, i32) {
    %c0_i32 = arith.constant 0 : i32
    %c0_i32_0 = arith.constant 0 : i32
    %c0_i32_1 = arith.constant 0 : i32
    return %c0_i32, %c0_i32_0 : i32, i32
  }
  func.func @transform_7(%arg0: i32) -> (i32, i32) {
    %c0_i32 = arith.constant 0 : i32
    %c0_i32_0 = arith.constant 0 : i32
    %c0_i32_1 = arith.constant 0 : i32
    return %c0_i32, %c0_i32_0 : i32, i32
  }
  func.func @transform_8(%arg0: i32) -> (i32, i32) {
    %c0_i32 = arith.constant 0 : i32
    %c0_i32_0 = arith.constant 0 : i32
    %c0_i32_1 = arith.constant 0 : i32
    return %c0_i32, %c0_i32_0 : i32, i32
  }
  func.func @transform_9(%arg0: i32) -> (i32, i32) {
    %c0_i32 = arith.constant 0 : i32
    %c0_i32_0 = arith.constant 0 : i32
    %c0_i32_1 = arith.constant 0 : i32
    return %c0_i32, %c0_i32_0 : i32, i32
  }
  func.func @transform_10(%arg0: i32) -> (i32, i32, i32) {
    %c0_i32 = arith.constant 0 : i32
    %c0_i32_0 = arith.constant 0 : i32
    %c0_i32_1 = arith.constant 0 : i32
    return %arg0, %c0_i32, %c0_i32_0 : i32, i32, i32
  }
}

</mosaic_0001>

<llo_original>
// kernel: tpu_custom_call.1
$region0: #{tpu_custom_call.1}
  #allocation0 [shape = 'u32[]', space=smem, size = 0x4, offset = 0x4, fixed_abs, tag = 'smem constant byte address 0x4 - core index']
  #allocation1 [shape = 'u32[144,128]{1,0:T(1,128)}', space=vmem, size = 0x12000, scoped, tag = 'internal scratch']
  #allocation2 [shape = 'f32[4,640]{1,0:T(4,128)}', space=vmem, size = 0x2800, scoped, tag = 'scratch operand']
  #allocation3 [shape = 'f32[4,640]{1,0:T(4,128)}', space=vmem, size = 0x2800, scoped, tag = 'scratch operand']
  %s0 = inlined_call_operand.vmem [shape: f32[2,4,256], index: 0, kind: input, shape index: {}]
  %s1 = inlined_call_operand.vmem [shape: f32[4,49], index: 1, kind: input, shape index: {}]
  %s2 = inlined_call_operand.vmem [shape: f32[4,1], index: 2, kind: input, shape index: {}]
  %s3 = inlined_call_operand.vmem [shape: bf16[32,4], index: 3, kind: input, shape index: {}]
  %s4 = inlined_call_operand.vmem [shape: f32[32,1], index: 4, kind: input, shape index: {}]
  %s5 = inlined_call_operand.vmem [shape: bf16[4,16], index: 5, kind: input, shape index: {}]
  %s6 = inlined_call_operand.vmem [shape: f32[4,1], index: 6, kind: input, shape index: {}]
  %s7 = inlined_call_operand.vmem [shape: f32[4,49], index: 7, kind: input, shape index: {}]
  %s8 = inlined_call_operand.vmem [shape: f32[4,1], index: 8, kind: input, shape index: {}]
  %s9 = inlined_call_operand.vmem [shape: f32[1,352], index: 9, kind: input, shape index: {}]
  %s10 = inlined_call_operand.hbm [shape: f32[2,4,256], index: 10, kind: output, shape index: {}]
  %s11 = sld [smem:[#allocation0]]
  $region73: #{tpu_custom_call.1} parent=0
    _
  %s13 = ssub.s32 1, %s11
  %s14 = scalar_select 0, %s13, %s11
  $region1: #{tpu_custom_call.1} parent=0
    #allocation4 [shape = 'u8[8192]{0}', space=vmem, size = 0x2000, scoped, tag = 'output window, operand 0']
    #allocation5 [shape = 's32[2]{0}', space=sflag, size = 0x8, scoped, tag = 'scoped memory for tpu_custom_call.1']
    %15 = vsyncpa [#allocation5], 0
    %s16 = scalar_lea.sflag [#allocation5], 1
    %17 = vsyncpa %s16, 0
    loop: start=0, step=1, limit=4
    $region2: #{tpu_custom_call.1} parent=1 // loop_pre_header
      _
    $region3: #{tpu_custom_call.1} parent=1 // loop_header
      %s19 = sphi 0, %s23
      %p20 = scmp.ge.s32.totalorder %s19, 4
      %s29 = sphi 0, %s31
      %s32 = sphi 0, %s29
      %s33 = sphi 0, %s32
      %s49 = sphi 0, %s33
      %s53 = sphi 0, %s53
      %s55 = sphi 0, %s53
      %s56 = sphi 0, %s55
      %s70 = sphi 0, %s56
      %s74 = sphi 0, %s74
      %s76 = sphi 0, %s74
      %s77 = sphi 0, %s76
      %s91 = sphi 0, %s77
      %s95 = sphi 0, %s95
      %s97 = sphi 0, %s95
      %s98 = sphi 0, %s97
      %s112 = sphi 0, %s98
      %s116 = sphi 0, %s116
      %s118 = sphi 0, %s116
      %s119 = sphi 0, %s118
      %s133 = sphi 0, %s119
      %s137 = sphi 0, %s137
      %s139 = sphi 0, %s137
      %s140 = sphi 0, %s139
      %s154 = sphi 0, %s140
      %s158 = sphi 0, %s158
      %s160 = sphi 0, %s158
      %s161 = sphi 0, %s160
      %s175 = sphi 0, %s161
      %s179 = sphi 0, %s179
      %s181 = sphi 0, %s179
      %s182 = sphi 0, %s181
      %s196 = sphi 0, %s182
      %s200 = sphi 0, %s200
      %s202 = sphi 0, %s200
      %s203 = sphi 0, %s202
      %s217 = sphi 0, %s203
      %s221 = sphi 0, %s221
      %s223 = sphi 0, %s221
      %s224 = sphi 0, %s223
      %s238 = sphi 0, %s224
      %s244 = sphi 0, %s246
      %s247 = sphi 0, %s244
      %s248 = sphi 0, %s247
      %s264 = sphi 0, %s248
    $region4: #{tpu_custom_call.1} parent=1 // loop_header_branch
      %22 = sbr.rel (%p20) target = $region8
    $region5: #{tpu_custom_call.1} parent=1 // loop_body
      %s24 = ssub.s32 %s19, 1
      %s25 = ssub.s32 %s19, 2
      %s26 = sadd.s32 %s19, 1
      %s27 = ssub.s32 %s19, %s26
      %p28 = scmp.eq.s32.totalorder %s27, 0
      %s30 = sadd.s32 %s29, 1
      %s31 = scalar_select %p28, %s29, %s30
      %p34 = pneg %p28
      %p35 = scmp.eq.s32.totalorder %s19, 1
      %p36 = por %p34, %p35
      %p37 = scmp.ne.s32.totalorder %s29, %s32
      %p38 = scmp.eq.s32.totalorder %s19, 0
      %p39 = por %p37, %p38
      %p40 = scmp.ne.s32.totalorder %s29, %s32
      %p41 = scmp.eq.s32.totalorder %s24, 1
      %p42 = por %p40, %p41
      %p43 = scmp.ne.s32.totalorder %s32, %s33
      %p44 = scmp.eq.s32.totalorder %s24, 0
      %p45 = por %p43, %p44
      %p46 = scmp.ne.s32.totalorder %s32, %s33
      %p47 = scmp.eq.s32.totalorder %s25, 1
      %p48 = por %p46, %p47
      %p50 = scmp.ne.s32.totalorder %s33, %s49
      %p51 = scmp.eq.s32.totalorder %s25, 0
      %p52 = por %p50, %p51
      %s54 = sadd.s32 %s53, 1
      %p57 = scmp.eq.s32.totalorder %s19, 1
      %p58 = scmp.ne.s32.totalorder %s53, %s55
      %p59 = scmp.eq.s32.totalorder %s19, 0
      %p60 = por %p58, %p59
      %p61 = scmp.ne.s32.totalorder %s53, %s55
      %p62 = scmp.eq.s32.totalorder %s24, 1
      %p63 = por %p61, %p62
      %p64 = scmp.ne.s32.totalorder %s55, %s56
      %p65 = scmp.eq.s32.totalorder %s24, 0
      %p66 = por %p64, %p65
      %p67 = scmp.ne.s32.totalorder %s55, %s56
      %p68 = scmp.eq.s32.totalorder %s25, 1
      %p69 = por %p67, %p68
      %p71 = scmp.ne.s32.totalorder %s56, %s70
      %p72 = scmp.eq.s32.totalorder %s25, 0
      %p73 = por %p71, %p72
      %s75 = sadd.s32 %s74, 1
      %p78 = scmp.eq.s32.totalorder %s19, 1
      %p79 = scmp.ne.s32.totalorder %s74, %s76
      %p80 = scmp.eq.s32.totalorder %s19, 0
      %p81 = por %p79, %p80
      %p82 = scmp.ne.s32.totalorder %s74, %s76
      %p83 = scmp.eq.s32.totalorder %s24, 1
      %p84 = por %p82, %p83
      %p85 = scmp.ne.s32.totalorder %s76, %s77
      %p86 = scmp.eq.s32.totalorder %s24, 0
      %p87 = por %p85, %p86
      %p88 = scmp.ne.s32.totalorder %s76, %s77
      %p89 = scmp.eq.s32.totalorder %s25, 1
      %p90 = por %p88, %p89
      %p92 = scmp.ne.s32.totalorder %s77, %s91
      %p93 = scmp.eq.s32.totalorder %s25, 0
      %p94 = por %p92, %p93
      %s96 = sadd.s32 %s95, 1
      %p99 = scmp.eq.s32.totalorder %s19, 1
      %p100 = scmp.ne.s32.totalorder %s95, %s97
      %p101 = scmp.eq.s32.totalorder %s19, 0
      %p102 = por %p100, %p101
      %p103 = scmp.ne.s32.totalorder %s95, %s97
      %p104 = scmp.eq.s32.totalorder %s24, 1
      %p105 = por %p103, %p104
      %p106 = scmp.ne.s32.totalorder %s97, %s98
      %p107 = scmp.eq.s32.totalorder %s24, 0
      %p108 = por %p106, %p107
      %p109 = scmp.ne.s32.totalorder %s97, %s98
      %p110 = scmp.eq.s32.totalorder %s25, 1
      %p111 = por %p109, %p110
      %p113 = scmp.ne.s32.totalorder %s98, %s112
      %p114 = scmp.eq.s32.totalorder %s25, 0
      %p115 = por %p113, %p114
      %s117 = sadd.s32 %s116, 1
      %p120 = scmp.eq.s32.totalorder %s19, 1
      %p121 = scmp.ne.s32.totalorder %s116, %s118
      %p122 = scmp.eq.s32.totalorder %s19, 0
      %p123 = por %p121, %p122
      %p124 = scmp.ne.s32.totalorder %s116, %s118
      %p125 = scmp.eq.s32.totalorder %s24, 1
      %p126 = por %p124, %p125
      %p127 = scmp.ne.s32.totalorder %s118, %s119
      %p128 = scmp.eq.s32.totalorder %s24, 0
      %p129 = por %p127, %p128
      %p130 = scmp.ne.s32.totalorder %s118, %s119
      %p131 = scmp.eq.s32.totalorder %s25, 1
      %p132 = por %p130, %p131
      %p134 = scmp.ne.s32.totalorder %s119, %s133
      %p135 = scmp.eq.s32.totalorder %s25, 0
      %p136 = por %p134, %p135
      %s138 = sadd.s32 %s137, 1
      %p141 = scmp.eq.s32.totalorder %s19, 1
      %p142 = scmp.ne.s32.totalorder %s137, %s139
      %p143 = scmp.eq.s32.totalorder %s19, 0
      %p144 = por %p142, %p143
      %p145 = scmp.ne.s32.totalorder %s137, %s139
      %p146 = scmp.eq.s32.totalorder %s24, 1
      %p147 = por %p145, %p146
      %p148 = scmp.ne.s32.totalorder %s139, %s140
      %p149 = scmp.eq.s32.totalorder %s24, 0
      %p150 = por %p148, %p149
      %p151 = scmp.ne.s32.totalorder %s139, %s140
      %p152 = scmp.eq.s32.totalorder %s25, 1
      %p153 = por %p151, %p152
      %p155 = scmp.ne.s32.totalorder %s140, %s154
      %p156 = scmp.eq.s32.totalorder %s25, 0
      %p157 = por %p155, %p156
      %s159 = sadd.s32 %s158, 1
      %p162 = scmp.eq.s32.totalorder %s19, 1
      %p163 = scmp.ne.s32.totalorder %s158, %s160
      %p164 = scmp.eq.s32.totalorder %s19, 0
      %p165 = por %p163, %p164
      %p166 = scmp.ne.s32.totalorder %s158, %s160
      %p167 = scmp.eq.s32.totalorder %s24, 1
      %p168 = por %p166, %p167
      %p169 = scmp.ne.s32.totalorder %s160, %s161
      %p170 = scmp.eq.s32.totalorder %s24, 0
      %p171 = por %p169, %p170
      %p172 = scmp.ne.s32.totalorder %s160, %s161
      %p173 = scmp.eq.s32.totalorder %s25, 1
      %p174 = por %p172, %p173
      %p176 = scmp.ne.s32.totalorder %s161, %s175
      %p177 = scmp.eq.s32.totalorder %s25, 0
      %p178 = por %p176, %p177
      %s180 = sadd.s32 %s179, 1
      %p183 = scmp.eq.s32.totalorder %s19, 1
      %p184 = scmp.ne.s32.totalorder %s179, %s181
      %p185 = scmp.eq.s32.totalorder %s19, 0
      %p186 = por %p184, %p185
      %p187 = scmp.ne.s32.totalorder %s179, %s181
      %p188 = scmp.eq.s32.totalorder %s24, 1
      %p189 = por %p187, %p188
      %p190 = scmp.ne.s32.totalorder %s181, %s182
      %p191 = scmp.eq.s32.totalorder %s24, 0
      %p192 = por %p190, %p191
      %p193 = scmp.ne.s32.totalorder %s181, %s182
      %p194 = scmp.eq.s32.totalorder %s25, 1
      %p195 = por %p193, %p194
      %p197 = scmp.ne.s32.totalorder %s182, %s196
      %p198 = scmp.eq.s32.totalorder %s25, 0
      %p199 = por %p197, %p198
      %s201 = sadd.s32 %s200, 1
      %p204 = scmp.eq.s32.totalorder %s19, 1
      %p205 = scmp.ne.s32.totalorder %s200, %s202
      %p206 = scmp.eq.s32.totalorder %s19, 0
      %p207 = por %p205, %p206
      %p208 = scmp.ne.s32.totalorder %s200, %s202
      %p209 = scmp.eq.s32.totalorder %s24, 1
      %p210 = por %p208, %p209
      %p211 = scmp.ne.s32.totalorder %s202, %s203
      %p212 = scmp.eq.s32.totalorder %s24, 0
      %p213 = por %p211, %p212
      %p214 = scmp.ne.s32.totalorder %s202, %s203
      %p215 = scmp.eq.s32.totalorder %s25, 1
      %p216 = por %p214, %p215
      %p218 = scmp.ne.s32.totalorder %s203, %s217
      %p219 = scmp.eq.s32.totalorder %s25, 0
      %p220 = por %p218, %p219
      %s222 = sadd.s32 %s221, 1
      %p225 = scmp.eq.s32.totalorder %s19, 1
      %p226 = scmp.ne.s32.totalorder %s221, %s223
      %p227 = scmp.eq.s32.totalorder %s19, 0
      %p228 = por %p226, %p227
      %p229 = scmp.ne.s32.totalorder %s221, %s223
      %p230 = scmp.eq.s32.totalorder %s24, 1
      %p231 = por %p229, %p230
      %p232 = scmp.ne.s32.totalorder %s223, %s224
      %p233 = scmp.eq.s32.totalorder %s24, 0
      %p234 = por %p232, %p233
      %p235 = scmp.ne.s32.totalorder %s223, %s224
      %p236 = scmp.eq.s32.totalorder %s25, 1
      %p237 = por %p235, %p236
      %p239 = scmp.ne.s32.totalorder %s224, %s238
      %p240 = scmp.eq.s32.totalorder %s25, 0
      %p241 = por %p239, %p240
      %s242 = ssub.s32 %s19, %s26
      %p243 = scmp.eq.s32.totalorder %s242, 0
      %s245 = sadd.s32 %s244, 1
      %s246 = scalar_select %p243, %s244, %s245
      %p249 = pneg %p243
      %p250 = scmp.eq.s32.totalorder %s19, 1
      %p251 = por %p249, %p250
      %p252 = scmp.ne.s32.totalorder %s244, %s247
      %p253 = scmp.eq.s32.totalorder %s19, 0
      %p254 = por %p252, %p253
      %p255 = scmp.ne.s32.totalorder %s244, %s247
      %p256 = scmp.eq.s32.totalorder %s24, 1
      %p257 = por %p255, %p256
      %p258 = scmp.ne.s32.totalorder %s247, %s248
      %p259 = scmp.eq.s32.totalorder %s24, 0
      %p260 = por %p258, %p259
      %p261 = scmp.ne.s32.totalorder %s247, %s248
      %p262 = scmp.eq.s32.totalorder %s25, 1
      %p263 = por %p261, %p262
      %p265 = scmp.ne.s32.totalorder %s248, %s264
      %p266 = scmp.eq.s32.totalorder %s25, 0
      %p267 = por %p265, %p266
      %p268 = scmp.le.s32.totalorder 1, %s19
      %p269 = scmp.lt.s32.totalorder %s19, 3
      %p270 = pnand %p268, %p269
      %p271 = pneg %p270
      // Predicated region
      $region9: #{tpu_custom_call.1} parent=5 // pred_check
        _
      $region10: #{tpu_custom_call.1} parent=5 // pred_check_branch
        %273 = sbr.rel (%p270) target = $region12
      $region11: #{tpu_custom_call.1} parent=5 // pred_region
        %s274 = ssub.s32 %s19, 1
        // Predicated region
        $region13: #{tpu_custom_call.1} parent=11 // pred_check
          %p275 = pneg %p66
        $region14: #{tpu_custom_call.1} parent=11 // pred_check_branch
          %277 = sbr.rel (%p275) target = $region16
        $region15: #{tpu_custom_call.1} parent=11 // pred_region
          _
        $region16: #{tpu_custom_call.1} parent=11 // pred_fallthru
          _
        // Predicated region
        $region17: #{tpu_custom_call.1} parent=11 // pred_check
          %p278 = pneg %p87
        $region18: #{tpu_custom_call.1} parent=11 // pred_check_branch
          %280 = sbr.rel (%p278) target = $region20
        $region19: #{tpu_custom_call.1} parent=11 // pred_region
          _
        $region20: #{tpu_custom_call.1} parent=11 // pred_fallthru
          _
        // Predicated region
        $region21: #{tpu_custom_call.1} parent=11 // pred_check
          %p281 = pneg %p108
        $region22: #{tpu_custom_call.1} parent=11 // pred_check_branch
          %283 = sbr.rel (%p281) target = $region24
        $region23: #{tpu_custom_call.1} parent=11 // pred_region
          _
        $region24: #{tpu_custom_call.1} parent=11 // pred_fallthru
          _
        // Predicated region
        $region25: #{tpu_custom_call.1} parent=11 // pred_check
          %p284 = pneg %p129
        $region26: #{tpu_custom_call.1} parent=11 // pred_check_branch
          %286 = sbr.rel (%p284) target = $region28
        $region27: #{tpu_custom_call.1} parent=11 // pred_region
          _
        $region28: #{tpu_custom_call.1} parent=11 // pred_fallthru
          _
        // Predicated region
        $region29: #{tpu_custom_call.1} parent=11 // pred_check
          %p287 = pneg %p150
        $region30: #{tpu_custom_call.1} parent=11 // pred_check_branch
          %289 = sbr.rel (%p287) target = $region32
        $region31: #{tpu_custom_call.1} parent=11 // pred_region
          _
        $region32: #{tpu_custom_call.1} parent=11 // pred_fallthru
          _
        // Predicated region
        $region33: #{tpu_custom_call.1} parent=11 // pred_check
          %p290 = pneg %p171
        $region34: #{tpu_custom_call.1} parent=11 // pred_check_branch
          %292 = sbr.rel (%p290) target = $region36
        $region35: #{tpu_custom_call.1} parent=11 // pred_region
          _
        $region36: #{tpu_custom_call.1} parent=11 // pred_fallthru
          _
        // Predicated region
        $region37: #{tpu_custom_call.1} parent=11 // pred_check
          %p293 = pneg %p192
        $region38: #{tpu_custom_call.1} parent=11 // pred_check_branch
          %295 = sbr.rel (%p293) target = $region40
        $region39: #{tpu_custom_call.1} parent=11 // pred_region
          _
        $region40: #{tpu_custom_call.1} parent=11 // pred_fallthru
          _
        // Predicated region
        $region41: #{tpu_custom_call.1} parent=11 // pred_check
          %p296 = pneg %p213
        $region42: #{tpu_custom_call.1} parent=11 // pred_check_branch
          %298 = sbr.rel (%p296) target = $region44
        $region43: #{tpu_custom_call.1} parent=11 // pred_region
          _
        $region44: #{tpu_custom_call.1} parent=11 // pred_fallthru
          _
        // Predicated region
        $region45: #{tpu_custom_call.1} parent=11 // pred_check
          %p299 = pneg %p234
        $region46: #{tpu_custom_call.1} parent=11 // pred_check_branch
          %301 = sbr.rel (%p299) target = $region48
        $region47: #{tpu_custom_call.1} parent=11 // pred_region
          _
        $region48: #{tpu_custom_call.1} parent=11 // pred_fallthru
          _
      $region12: #{tpu_custom_call.1} parent=5 // pred_fallthru
        _
      %p302 = scmp.lt.s32.totalorder %s19, 2
      // Predicated region
      $region49: #{tpu_custom_call.1} parent=5 // pred_check
        %p303 = pneg %p302
      $region50: #{tpu_custom_call.1} parent=5 // pred_check_branch
        %305 = sbr.rel (%p303) target = $region52
      $region51: #{tpu_custom_call.1} parent=5 // pred_region
        // Predicated region
        $region53: #{tpu_custom_call.1} parent=51 // pred_check
          %p306 = pneg %p39
        $region54: #{tpu_custom_call.1} parent=51 // pred_check_branch
          %308 = sbr.rel (%p306) target = $region56
        $region55: #{tpu_custom_call.1} parent=51 // pred_region
          %p309 = scmp.lt.s32.totalorder %s19, 1
          %s310 = scalar_select %p309, %s19, 1
          %s311 = smul.addr %s310, 2
          %s312 = smul.addr %s311, 4
          %s313 = scalar_lea.vmem %s0, %s312
        $region56: #{tpu_custom_call.1} parent=51 // pred_fallthru
          _
      $region52: #{tpu_custom_call.1} parent=5 // pred_fallthru
        _
      %p314 = scmp.le.s32.totalorder 1, %s19
      %p315 = scmp.lt.s32.totalorder %s19, 3
      %p316 = pnand %p314, %p315
      %p317 = pneg %p316
      // Predicated region
      $region57: #{tpu_custom_call.1} parent=5 // pred_check
        _
      $region58: #{tpu_custom_call.1} parent=5 // pred_check_branch
        %319 = sbr.rel (%p316) target = $region60
      $region59: #{tpu_custom_call.1} parent=5 // pred_region
        %s320 = ssub.s32 %s19, 1
        %p321 = scmp.lt.s32.totalorder %s24, 1
        %s322 = scalar_select %p321, %s24, 1
        %s323 = smul.addr %s322, 2
        %s324 = smul.addr %s323, 4
        %s325 = scalar_lea.vmem %s0, %s324
        %p326 = pneg %p45
        %p327 = pneg %p42
        %p328 = pneg %p66
        %p329 = pneg %p63
        %p330 = pneg %p87
        %p331 = pneg %p84
        %p332 = pneg %p108
        %p333 = pneg %p105
        %p334 = pneg %p129
        %p335 = pneg %p126
        %p336 = pneg %p150
        %p337 = pneg %p147
        %p338 = pneg %p171
        %p339 = pneg %p168
        %p340 = pneg %p192
        %p341 = pneg %p189
        %p342 = pneg %p213
        %p343 = pneg %p210
        %p344 = pneg %p234
        %p345 = pneg %p231
        %p346 = pneg %p260
        %p347 = pneg %p257
        %s348 = sand.u32 %s247, 1
        %s349 = scalar_lea.sflag [#allocation5], %s348
        %s350 = sand.u32 %s247, 1
        %s351 = smul.addr %s350, 8
        %s352 = scalar_lea.vmem [#allocation4], %s351
        %p353 = scmp.lt.s32.totalorder %s24, 1
        %s354 = scalar_select %p353, %s24, 1
        %s355 = smul.addr %s354, 2
        %s356 = smul.addr %s355, 4
        %s357 = scalar_lea.vmem %s0, %s356
        %v359 = vld [vmem:[%s1] sm:$0xf]
        %v360 = vld [vmem:[%s2] sm:$0xf]
        %v361 = vld [vmem:[%s7] sm:$0xf]
        %v362 = vld [vmem:[%s8] sm:$0xf]
        %v363 = vld [vmem:[%s3] sm:$0xf]
        %v364 = vld [vmem:[%s3 + $0x4] sm:$0xf]
        %v365 = vld [vmem:[%s3 + $0x8] sm:$0xf]
        %v366 = vld [vmem:[%s3 + $0xc] sm:$0xf]
        %v367 = vld [vmem:[%s4] sm:$0xff]
        %v368 = vld [vmem:[%s4 + $0x8] sm:$0xff]
        %v369 = vld [vmem:[%s4 + $0x10] sm:$0xff]
        %v370 = vld [vmem:[%s4 + $0x18] sm:$0xff]
        %v371 = vld [vmem:[%s5] sm:$0x3]
        %v372 = vld [vmem:[%s6] sm:$0xf]
        %373 = vst [vmem:[#allocation2] sm:$0xff] 0.0
        %374 = vst [vmem:[#allocation2 + $0x8] sm:$0xff] 0.0
        %375 = vst [vmem:[#allocation2 + $0x10] sm:$0xf] 0.0
        %376 = vst [vmem:[#allocation3] sm:$0xf] 0.0
        %vm377 = vcmask 1044224
        %vm378 = vcmask 1047556
        %vm379 = vmor %vm378, %vm377
        %380 = vst.msk [vmem:[#allocation3 + $0xc] sm:$0xff] %vm379, 0.0
        %v381 = vld [vmem:[%s357] sm:$0xf]
        %383 = vrot.lane.b32.xlu0 %v381, 3
        %v384 = vpop.permute.xlu0 %383
        %vm386 = vcmask 150552
        %387 = vst.msk [vmem:[#allocation2 + $0x4] sm:$0xf] %vm386, %v384
        %v388 = vld [vmem:[%s357] sm:$0xf]
        %390 = vrot.lane.b32.xlu0 %v388, 9
        %v391 = vpop.permute.xlu0 %390
        %vm393 = vcmask 330952
        %394 = vst.msk [vmem:[#allocation2 + $0x4] sm:$0xf] %vm393, %v391
        %v395 = vld [vmem:[%s357] sm:$0xf]
        %397 = vrot.lane.b32.xlu0 %v395, 15
        %v398 = vpop.permute.xlu0 %397
        %vm400 = vcmask 511352
        %401 = vst.msk [vmem:[#allocation2 + $0x4] sm:$0xf] %vm400, %v398
        %v402 = vld [vmem:[%s357] sm:$0xf]
        %404 = vrot.lane.b32.xlu0 %v402, 21
        %v405 = vpop.permute.xlu0 %404
        %vm407 = vcmask 691752
        %408 = vst.msk [vmem:[#allocation2 + $0x4] sm:$0xf] %vm407, %v405
        %v409 = vld [vmem:[%s357] sm:$0xf]
        %411 = vrot.lane.b32.xlu0 %v409, 27
        %v412 = vpop.permute.xlu0 %411
        %vm414 = vcmask 872152
        %415 = vst.msk [vmem:[#allocation2 + $0x4] sm:$0xf] %vm414, %v412
        %v416 = vld [vmem:[%s357] sm:$0xf]
        %418 = vrot.lane.b32.xlu0 %v416, 33
        %v419 = vpop.permute.xlu0 %418
        %v420 = vrot.slane %v419, 4
        %vm421 = vcmask 269312
        %v422 = vsel %vm421, %v420, %v419
        %vm424 = vcmask 1044360
        %vm425 = vcmask 7172
        %vm426 = vmor %vm425, %vm424
        %427 = vst.msk [vmem:[#allocation2 + $0x4] sm:$0xff] %vm426, %v422
        %v428 = vld [vmem:[%s357] sm:$0xf]
        %430 = vrot.lane.b32.xlu0 %v428, 39
        %v431 = vpop.permute.xlu0 %430
        %vm433 = vcmask 183352
        %434 = vst.msk [vmem:[#allocation2 + $0x8] sm:$0xf] %vm433, %v431
        %v435 = vld [vmem:[%s357] sm:$0xf]
        %437 = vrot.lane.b32.xlu0 %v435, 45
        %v438 = vpop.permute.xlu0 %437
        %vm440 = vcmask 363752
        %441 = vst.msk [vmem:[#allocation2 + $0x8] sm:$0xf] %vm440, %v438
        %v442 = vld [vmem:[%s357 + $0x4] sm:$0xf]
        %444 = vrot.lane.b32.xlu0 %v442, 51
        %v445 = vpop.permute.xlu0 %444
        %vm447 = vcmask 544152
        %448 = vst.msk [vmem:[#allocation2 + $0x8] sm:$0xf] %vm447, %v445
        %v449 = vld [vmem:[%s357 + $0x4] sm:$0xf]
        %451 = vrot.lane.b32.xlu0 %v449, 57
        %v452 = vpop.permute.xlu0 %451
        %vm454 = vcmask 724552
        %455 = vst.msk [vmem:[#allocation2 + $0x8] sm:$0xf] %vm454, %v452
        %v456 = vld [vmem:[%s357 + $0x4] sm:$0xf]
        %458 = vrot.lane.b32.xlu0 %v456, 63
        %v459 = vpop.permute.xlu0 %458
        %vm461 = vcmask 904952
        %462 = vst.msk [vmem:[#allocation2 + $0x8] sm:$0xf] %vm461, %v459
        %v463 = vld [vmem:[%s357 + $0x4] sm:$0xf]
        %465 = vrot.lane.b32.xlu0 %v463, 69
        %v466 = vpop.permute.xlu0 %465
        %v467 = vrot.slane %v466, 4
        %vm468 = vcmask 564224
        %v469 = vsel %vm468, %v467, %v466
        %vm471 = vcmask 1044392
        %vm472 = vcmask 39940
        %vm473 = vmor %vm472, %vm471
        %474 = vst.msk [vmem:[#allocation2 + $0x8] sm:$0xff] %vm473, %v469
        %v475 = vld [vmem:[%s357 + $0x4] sm:$0xf]
        %477 = vrot.lane.b32.xlu0 %v475, 75
        %v478 = vpop.permute.xlu0 %477
        %vm480 = vcmask 216152
        %481 = vst.msk [vmem:[#allocation2 + $0xc] sm:$0xf] %vm480, %v478
        %v482 = vld [vmem:[%s357 + $0x4] sm:$0xf]
        %484 = vrot.lane.b32.xlu0 %v482, 81
        %v485 = vpop.permute.xlu0 %484
        %vm487 = vcmask 396552
        %488 = vst.msk [vmem:[#allocation2 + $0xc] sm:$0xf] %vm487, %v485
        %v489 = vld [vmem:[%s357 + $0x4] sm:$0xf]
        %491 = vrot.lane.b32.xlu0 %v489, 87
        %v492 = vpop.permute.xlu0 %491
        %vm494 = vcmask 576952
        %495 = vst.msk [vmem:[#allocation2 + $0xc] sm:$0xf] %vm494, %v492
        %v496 = vld [vmem:[%s357 + $0x4] sm:$0xf]
        %498 = vrot.lane.b32.xlu0 %v496, 93
        %v499 = vpop.permute.xlu0 %498
        %vm501 = vcmask 757352
        %502 = vst.msk [vmem:[#allocation2 + $0xc] sm:$0xf] %vm501, %v499
        %v503 = vld [vmem:[#allocation2] sm:$0xff]
        %v504 = vld [vmem:[#allocation2 + $0x8] sm:$0xff]
        %506 = vset.pattern.permute.xlu0 0
        %507 = vperm.xlu0 %506, %v359
        %v508 = vpop.permute.xlu0 %507
        %v510 = vunpack.c.l.s4 839922192
        %v511 = vunpack.c.0.s8 %v510
        %v512 = vlaneseq
        %v513 = vshrl.u32 %v512, 7
        %v514 = vsub.s32 %v511, %v513
        %v515 = vrot.slane %v508, %v514
        %v517 = vmul.f32 %v503, %v515
        %v518 = vmul.f32 %v504, %v515
        %v519 = vadd.f32 %v517, 0.0
        %v520 = vadd.f32 %v518, 0.0
        %521 = vset.pattern.permute.xlu0 1
        %522 = vperm.xlu0 %521, %v359
        %v523 = vpop.permute.xlu0 %522
        %v525 = vunpack.c.l.s4 839922192
        %v526 = vunpack.c.0.s8 %v525
        %v527 = vlaneseq
        %v528 = vshrl.u32 %v527, 7
        %v529 = vsub.s32 %v526, %v528
        %v530 = vrot.slane %v523, %v529
        %v532 = vmul.f32 %v503, %v530
        %v533 = vmul.f32 %v504, %v530
        %536 = vrot.lane.b32.xlu0 %v532, 127
        %v537 = vpop.permute.xlu0 %536
        %538 = vrot.lane.b32.xlu0 %v533, 127
        %v539 = vpop.permute.xlu0 %538
        %v540 = vrot.slane %v537, 4
        %v541 = vrot.slane %v539, 4
        %vm542 = vcmask 1043456
        %v543 = vsel %vm542, %v540, %v541
        %vm544 = vcmask 1039360
        %v545 = vsel %vm544, %v537, %v543
        %v546 = vsel %vm544, %v539, %v541
        %v549 = vadd.f32 %v519, %v545
        %v550 = vadd.f32 %v520, %v546
        %551 = vset.pattern.permute.xlu0 2
        %552 = vperm.xlu0 %551, %v359
        %v553 = vpop.permute.xlu0 %552
        %v555 = vunpack.c.l.s4 839922192
        %v556 = vunpack.c.0.s8 %v555
        %v557 = vlaneseq
        %v558 = vshrl.u32 %v557, 7
        %v559 = vsub.s32 %v556, %v558
        %v560 = vrot.slane %v553, %v559
        %v562 = vmul.f32 %v503, %v560
        %v563 = vmul.f32 %v504, %v560
        %566 = vrot.lane.b32.xlu0 %v562, 126
        %v567 = vpop.permute.xlu0 %566
        %568 = vrot.lane.b32.xlu0 %v563, 126
        %v569 = vpop.permute.xlu0 %568
        %v570 = vrot.slane %v567, 4
        %v571 = vrot.slane %v569, 4
        %v572 = vsel %vm542, %v570, %v571
        %vm573 = vcmask 1031168
        %v574 = vsel %vm573, %v567, %v572
        %v575 = vsel %vm573, %v569, %v571
        %v578 = vadd.f32 %v549, %v574
        %v579 = vadd.f32 %v550, %v575
        %580 = vset.pattern.permute.xlu0 3
        %581 = vperm.xlu0 %580, %v359
        %v582 = vpop.permute.xlu0 %581
        %v584 = vunpack.c.l.s4 839922192
        %v585 = vunpack.c.0.s8 %v584
        %v586 = vlaneseq
        %v587 = vshrl.u32 %v586, 7
        %v588 = vsub.s32 %v585, %v587
        %v589 = vrot.slane %v582, %v588
        %v591 = vmul.f32 %v503, %v589
        %v592 = vmul.f32 %v504, %v589
        %595 = vrot.lane.b32.xlu0 %v591, 125
        %v596 = vpop.permute.xlu0 %595
        %597 = vrot.lane.b32.xlu0 %v592, 125
        %v598 = vpop.permute.xlu0 %597
        %v599 = vrot.slane %v596, 4
        %v600 = vrot.slane %v598, 4
        %v601 = vsel %vm542, %v599, %v600
        %vm602 = vcmask 1022976
        %v603 = vsel %vm602, %v596, %v601
        %v604 = vsel %vm602, %v598, %v600
        %v607 = vadd.f32 %v578, %v603
        %v608 = vadd.f32 %v579, %v604
        %609 = vset.pattern.permute.xlu0 4
        %610 = vperm.xlu0 %609, %v359
        %v611 = vpop.permute.xlu0 %610
        %v613 = vunpack.c.l.s4 839922192
        %v614 = vunpack.c.0.s8 %v613
        %v615 = vlaneseq
        %v616 = vshrl.u32 %v615, 7
        %v617 = vsub.s32 %v614, %v616
        %v618 = vrot.slane %v611, %v617
        %v620 = vmul.f32 %v503, %v618
        %v621 = vmul.f32 %v504, %v618
        %624 = vrot.lane.b32.xlu0 %v620, 124
        %v625 = vpop.permute.xlu0 %624
        %626 = vrot.lane.b32.xlu0 %v621, 124
        %v627 = vpop.permute.xlu0 %626
        %v628 = vrot.slane %v625, 4
        %v629 = vrot.slane %v627, 4
        %v630 = vsel %vm542, %v628, %v629
        %vm631 = vcmask 1014784
        %v632 = vsel %vm631, %v625, %v630
        %v633 = vsel %vm631, %v627, %v629
        %v636 = vadd.f32 %v607, %v632
        %v637 = vadd.f32 %v608, %v633
        %638 = vset.pattern.permute.xlu0 5
        %639 = vperm.xlu0 %638, %v359
        %v640 = vpop.permute.xlu0 %639
        %v642 = vunpack.c.l.s4 839922192
        %v643 = vunpack.c.0.s8 %v642
        %v644 = vlaneseq
        %v645 = vshrl.u32 %v644, 7
        %v646 = vsub.s32 %v643, %v645
        %v647 = vrot.slane %v640, %v646
        %v649 = vmul.f32 %v503, %v647
        %v650 = vmul.f32 %v504, %v647
        %653 = vrot.lane.b32.xlu0 %v649, 123
        %v654 = vpop.permute.xlu0 %653
        %655 = vrot.lane.b32.xlu0 %v650, 123
        %v656 = vpop.permute.xlu0 %655
        %v657 = vrot.slane %v654, 4
        %v658 = vrot.slane %v656, 4
        %v659 = vsel %vm542, %v657, %v658
        %vm660 = vcmask 1006592
        %v661 = vsel %vm660, %v654, %v659
        %v662 = vsel %vm660, %v656, %v658
        %v665 = vadd.f32 %v636, %v661
        %v666 = vadd.f32 %v637, %v662
        %667 = vset.pattern.permute.xlu0 6
        %668 = vperm.xlu0 %667, %v359
        %v669 = vpop.permute.xlu0 %668
        %v671 = vunpack.c.l.s4 839922192
        %v672 = vunpack.c.0.s8 %v671
        %v673 = vlaneseq
        %v674 = vshrl.u32 %v673, 7
        %v675 = vsub.s32 %v672, %v674
        %v676 = vrot.slane %v669, %v675
        %v678 = vmul.f32 %v503, %v676
        %v679 = vmul.f32 %v504, %v676
        %682 = vrot.lane.b32.xlu0 %v678, 122
        %v683 = vpop.permute.xlu0 %682
        %684 = vrot.lane.b32.xlu0 %v679, 122
        %v685 = vpop.permute.xlu0 %684
        %v686 = vrot.slane %v683, 4
        %v687 = vrot.slane %v685, 4
        %v688 = vsel %vm542, %v686, %v687
        %vm689 = vcmask 998400
        %v690 = vsel %vm689, %v683, %v688
        %v691 = vsel %vm689, %v685, %v687
        %v694 = vadd.f32 %v665, %v690
        %v695 = vadd.f32 %v666, %v691
        %696 = vset.pattern.permute.xlu0 7
        %697 = vperm.xlu0 %696, %v359
        %v698 = vpop.permute.xlu0 %697
        %v700 = vunpack.c.l.s4 839922192
        %v701 = vunpack.c.0.s8 %v700
        %v702 = vlaneseq
        %v703 = vshrl.u32 %v702, 7
        %v704 = vsub.s32 %v701, %v703
        %v705 = vrot.slane %v698, %v704
        %v707 = vmul.f32 %v503, %v705
        %v708 = vmul.f32 %v504, %v705
        %711 = vrot.lane.b32.xlu0 %v707, 106
        %v712 = vpop.permute.xlu0 %711
        %713 = vrot.lane.b32.xlu0 %v708, 106
        %v714 = vpop.permute.xlu0 %713
        %v715 = vrot.slane %v712, 4
        %v716 = vrot.slane %v714, 4
        %v717 = vsel %vm542, %v715, %v716
        %vm718 = vcmask 867328
        %v719 = vsel %vm718, %v712, %v717
        %v720 = vsel %vm718, %v714, %v716
        %v723 = vadd.f32 %v694, %v719
        %v724 = vadd.f32 %v695, %v720
        %725 = vset.pattern.permute.xlu0 8
        %726 = vperm.xlu0 %725, %v359
        %v727 = vpop.permute.xlu0 %726
        %v729 = vunpack.c.l.s4 839922192
        %v730 = vunpack.c.0.s8 %v729
        %v731 = vlaneseq
        %v732 = vshrl.u32 %v731, 7
        %v733 = vsub.s32 %v730, %v732
        %v734 = vrot.slane %v727, %v733
        %v736 = vmul.f32 %v503, %v734
        %v737 = vmul.f32 %v504, %v734
        %740 = vrot.lane.b32.xlu0 %v736, 105
        %v741 = vpop.permute.xlu0 %740
        %742 = vrot.lane.b32.xlu0 %v737, 105
        %v743 = vpop.permute.xlu0 %742
        %v744 = vrot.slane %v741, 4
        %v745 = vrot.slane %v743, 4
        %v746 = vsel %vm542, %v744, %v745
        %vm747 = vcmask 859136
        %v748 = vsel %vm747, %v741, %v746
        %v749 = vsel %vm747, %v743, %v745
        %v752 = vadd.f32 %v723, %v748
        %v753 = vadd.f32 %v724, %v749
        %754 = vset.pattern.permute.xlu0 9
        %755 = vperm.xlu0 %754, %v359
        %v756 = vpop.permute.xlu0 %755
        %v758 = vunpack.c.l.s4 839922192
        %v759 = vunpack.c.0.s8 %v758
        %v760 = vlaneseq
        %v761 = vshrl.u32 %v760, 7
        %v762 = vsub.s32 %v759, %v761
        %v763 = vrot.slane %v756, %v762
        %v765 = vmul.f32 %v503, %v763
        %v766 = vmul.f32 %v504, %v763
        %769 = vrot.lane.b32.xlu0 %v765, 104
        %v770 = vpop.permute.xlu0 %769
        %771 = vrot.lane.b32.xlu0 %v766, 104
        %v772 = vpop.permute.xlu0 %771
        %v773 = vrot.slane %v770, 4
        %v774 = vrot.slane %v772, 4
        %v775 = vsel %vm542, %v773, %v774
        %vm776 = vcmask 850944
        %v777 = vsel %vm776, %v770, %v775
        %v778 = vsel %vm776, %v772, %v774
        %v781 = vadd.f32 %v752, %v777
        %v782 = vadd.f32 %v753, %v778
        %783 = vset.pattern.permute.xlu0 10
        %784 = vperm.xlu0 %783, %v359
        %v785 = vpop.permute.xlu0 %784
        %v787 = vunpack.c.l.s4 839922192
        %v788 = vunpack.c.0.s8 %v787
        %v789 = vlaneseq
        %v790 = vshrl.u32 %v789, 7
        %v791 = vsub.s32 %v788, %v790
        %v792 = vrot.slane %v785, %v791
        %v794 = vmul.f32 %v503, %v792
        %v795 = vmul.f32 %v504, %v792
        %798 = vrot.lane.b32.xlu0 %v794, 103
        %v799 = vpop.permute.xlu0 %798
        %800 = vrot.lane.b32.xlu0 %v795, 103
        %v801 = vpop.permute.xlu0 %800
        %v802 = vrot.slane %v799, 4
        %v803 = vrot.slane %v801, 4
        %v804 = vsel %vm542, %v802, %v803
        %vm805 = vcmask 842752
        %v806 = vsel %vm805, %v799, %v804
        %v807 = vsel %vm805, %v801, %v803
        %v810 = vadd.f32 %v781, %v806
        %v811 = vadd.f32 %v782, %v807
        %812 = vset.pattern.permute.xlu0 11
        %813 = vperm.xlu0 %812, %v359
        %v814 = vpop.permute.xlu0 %813
        %v816 = vunpack.c.l.s4 839922192
        %v817 = vunpack.c.0.s8 %v816
        %v818 = vlaneseq
        %v819 = vshrl.u32 %v818, 7
        %v820 = vsub.s32 %v817, %v819
        %v821 = vrot.slane %v814, %v820
        %v823 = vmul.f32 %v503, %v821
        %v824 = vmul.f32 %v504, %v821
        %827 = vrot.lane.b32.xlu0 %v823, 102
        %v828 = vpop.permute.xlu0 %827
        %829 = vrot.lane.b32.xlu0 %v824, 102
        %v830 = vpop.permute.xlu0 %829
        %v831 = vrot.slane %v828, 4
        %v832 = vrot.slane %v830, 4
        %v833 = vsel %vm542, %v831, %v832
        %vm834 = vcmask 834560
        %v835 = vsel %vm834, %v828, %v833
        %v836 = vsel %vm834, %v830, %v832
        %v839 = vadd.f32 %v810, %v835
        %v840 = vadd.f32 %v811, %v836
        %841 = vset.pattern.permute.xlu0 12
        %842 = vperm.xlu0 %841, %v359
        %v843 = vpop.permute.xlu0 %842
        %v845 = vunpack.c.l.s4 839922192
        %v846 = vunpack.c.0.s8 %v845
        %v847 = vlaneseq
        %v848 = vshrl.u32 %v847, 7
        %v849 = vsub.s32 %v846, %v848
        %v850 = vrot.slane %v843, %v849
        %v852 = vmul.f32 %v503, %v850
        %v853 = vmul.f32 %v504, %v850
        %856 = vrot.lane.b32.xlu0 %v852, 101
        %v857 = vpop.permute.xlu0 %856
        %858 = vrot.lane.b32.xlu0 %v853, 101
        %v859 = vpop.permute.xlu0 %858
        %v860 = vrot.slane %v857, 4
        %v861 = vrot.slane %v859, 4
        %v862 = vsel %vm542, %v860, %v861
        %vm863 = vcmask 826368
        %v864 = vsel %vm863, %v857, %v862
        %v865 = vsel %vm863, %v859, %v861
        %v868 = vadd.f32 %v839, %v864
        %v869 = vadd.f32 %v840, %v865
        %870 = vset.pattern.permute.xlu0 13
        %871 = vperm.xlu0 %870, %v359
        %v872 = vpop.permute.xlu0 %871
        %v874 = vunpack.c.l.s4 839922192
        %v875 = vunpack.c.0.s8 %v874
        %v876 = vlaneseq
        %v877 = vshrl.u32 %v876, 7
        %v878 = vsub.s32 %v875, %v877
        %v879 = vrot.slane %v872, %v878
        %v881 = vmul.f32 %v503, %v879
        %v882 = vmul.f32 %v504, %v879
        %885 = vrot.lane.b32.xlu0 %v881, 100
        %v886 = vpop.permute.xlu0 %885
        %887 = vrot.lane.b32.xlu0 %v882, 100
        %v888 = vpop.permute.xlu0 %887
        %v889 = vrot.slane %v886, 4
        %v890 = vrot.slane %v888, 4
        %v891 = vsel %vm542, %v889, %v890
        %vm892 = vcmask 818176
        %v893 = vsel %vm892, %v886, %v891
        %v894 = vsel %vm892, %v888, %v890
        %v897 = vadd.f32 %v868, %v893
        %v898 = vadd.f32 %v869, %v894
        %899 = vset.pattern.permute.xlu0 14
        %900 = vperm.xlu0 %899, %v359
        %v901 = vpop.permute.xlu0 %900
        %v903 = vunpack.c.l.s4 839922192
        %v904 = vunpack.c.0.s8 %v903
        %v905 = vlaneseq
        %v906 = vshrl.u32 %v905, 7
        %v907 = vsub.s32 %v904, %v906
        %v908 = vrot.slane %v901, %v907
        %v910 = vmul.f32 %v503, %v908
        %v911 = vmul.f32 %v504, %v908
        %914 = vrot.lane.b32.xlu0 %v910, 84
        %v915 = vpop.permute.xlu0 %914
        %916 = vrot.lane.b32.xlu0 %v911, 84
        %v917 = vpop.permute.xlu0 %916
        %v918 = vrot.slane %v915, 4
        %v919 = vrot.slane %v917, 4
        %v920 = vsel %vm542, %v918, %v919
        %vm921 = vcmask 687104
        %v922 = vsel %vm921, %v915, %v920
        %v923 = vsel %vm921, %v917, %v919
        %v926 = vadd.f32 %v897, %v922
        %v927 = vadd.f32 %v898, %v923
        %928 = vset.pattern.permute.xlu0 15
        %929 = vperm.xlu0 %928, %v359
        %v930 = vpop.permute.xlu0 %929
        %v932 = vunpack.c.l.s4 839922192
        %v933 = vunpack.c.0.s8 %v932
        %v934 = vlaneseq
        %v935 = vshrl.u32 %v934, 7
        %v936 = vsub.s32 %v933, %v935
        %v937 = vrot.slane %v930, %v936
        %v939 = vmul.f32 %v503, %v937
        %v940 = vmul.f32 %v504, %v937
        %943 = vrot.lane.b32.xlu0 %v939, 83
        %v944 = vpop.permute.xlu0 %943
        %945 = vrot.lane.b32.xlu0 %v940, 83
        %v946 = vpop.permute.xlu0 %945
        %v947 = vrot.slane %v944, 4
        %v948 = vrot.slane %v946, 4
        %v949 = vsel %vm542, %v947, %v948
        %vm950 = vcmask 678912
        %v951 = vsel %vm950, %v944, %v949
        %v952 = vsel %vm950, %v946, %v948
        %v955 = vadd.f32 %v926, %v951
        %v956 = vadd.f32 %v927, %v952
        %957 = vset.pattern.permute.xlu0 16
        %958 = vperm.xlu0 %957, %v359
        %v959 = vpop.permute.xlu0 %958
        %v961 = vunpack.c.l.s4 839922192
        %v962 = vunpack.c.0.s8 %v961
        %v963 = vlaneseq
        %v964 = vshrl.u32 %v963, 7
        %v965 = vsub.s32 %v962, %v964
        %v966 = vrot.slane %v959, %v965
        %v968 = vmul.f32 %v503, %v966
        %v969 = vmul.f32 %v504, %v966
        %972 = vrot.lane.b32.xlu0 %v968, 82
        %v973 = vpop.permute.xlu0 %972
        %974 = vrot.lane.b32.xlu0 %v969, 82
        %v975 = vpop.permute.xlu0 %974
        %v976 = vrot.slane %v973, 4
        %v977 = vrot.slane %v975, 4
        %v978 = vsel %vm542, %v976, %v977
        %vm979 = vcmask 670720
        %v980 = vsel %vm979, %v973, %v978
        %v981 = vsel %vm979, %v975, %v977
        %v984 = vadd.f32 %v955, %v980
        %v985 = vadd.f32 %v956, %v981
        %986 = vset.pattern.permute.xlu0 17
        %987 = vperm.xlu0 %986, %v359
        %v988 = vpop.permute.xlu0 %987
        %v990 = vunpack.c.l.s4 839922192
        %v991 = vunpack.c.0.s8 %v990
        %v992 = vlaneseq
        %v993 = vshrl.u32 %v992, 7
        %v994 = vsub.s32 %v991, %v993
        %v995 = vrot.slane %v988, %v994
        %v997 = vmul.f32 %v503, %v995
        %v998 = vmul.f32 %v504, %v995
        %1001 = vrot.lane.b32.xlu0 %v997, 81
        %v1002 = vpop.permute.xlu0 %1001
        %1003 = vrot.lane.b32.xlu0 %v998, 81
        %v1004 = vpop.permute.xlu0 %1003
        %v1005 = vrot.slane %v1002, 4
        %v1006 = vrot.slane %v1004, 4
        %v1007 = vsel %vm542, %v1005, %v1006
        %vm1008 = vcmask 662528
        %v1009 = vsel %vm1008, %v1002, %v1007
        %v1010 = vsel %vm1008, %v1004, %v1006
        %v1013 = vadd.f32 %v984, %v1009
        %v1014 = vadd.f32 %v985, %v1010
        %1015 = vset.pattern.permute.xlu0 18
        %1016 = vperm.xlu0 %1015, %v359
        %v1017 = vpop.permute.xlu0 %1016
        %v1019 = vunpack.c.l.s4 839922192
        %v1020 = vunpack.c.0.s8 %v1019
        %v1021 = vlaneseq
        %v1022 = vshrl.u32 %v1021, 7
        %v1023 = vsub.s32 %v1020, %v1022
        %v1024 = vrot.slane %v1017, %v1023
        %v1026 = vmul.f32 %v503, %v1024
        %v1027 = vmul.f32 %v504, %v1024
        %1030 = vrot.lane.b32.xlu0 %v1026, 80
        %v1031 = vpop.permute.xlu0 %1030
        %1032 = vrot.lane.b32.xlu0 %v1027, 80
        %v1033 = vpop.permute.xlu0 %1032
        %v1034 = vrot.slane %v1031, 4
        %v1035 = vrot.slane %v1033, 4
        %v1036 = vsel %vm542, %v1034, %v1035
        %vm1037 = vcmask 654336
        %v1038 = vsel %vm1037, %v1031, %v1036
        %v1039 = vsel %vm1037, %v1033, %v1035
        %v1042 = vadd.f32 %v1013, %v1038
        %v1043 = vadd.f32 %v1014, %v1039
        %1044 = vset.pattern.permute.xlu0 19
        %1045 = vperm.xlu0 %1044, %v359
        %v1046 = vpop.permute.xlu0 %1045
        %v1048 = vunpack.c.l.s4 839922192
        %v1049 = vunpack.c.0.s8 %v1048
        %v1050 = vlaneseq
        %v1051 = vshrl.u32 %v1050, 7
        %v1052 = vsub.s32 %v1049, %v1051
        %v1053 = vrot.slane %v1046, %v1052
        %v1055 = vmul.f32 %v503, %v1053
        %v1056 = vmul.f32 %v504, %v1053
        %1059 = vrot.lane.b32.xlu0 %v1055, 79
        %v1060 = vpop.permute.xlu0 %1059
        %1061 = vrot.lane.b32.xlu0 %v1056, 79
        %v1062 = vpop.permute.xlu0 %1061
        %v1063 = vrot.slane %v1060, 4
        %v1064 = vrot.slane %v1062, 4
        %v1065 = vsel %vm542, %v1063, %v1064
        %vm1066 = vcmask 646144
        %v1067 = vsel %vm1066, %v1060, %v1065
        %v1068 = vsel %vm1066, %v1062, %v1064
        %v1071 = vadd.f32 %v1042, %v1067
        %v1072 = vadd.f32 %v1043, %v1068
        %1073 = vset.pattern.permute.xlu0 20
        %1074 = vperm.xlu0 %1073, %v359
        %v1075 = vpop.permute.xlu0 %1074
        %v1077 = vunpack.c.l.s4 839922192
        %v1078 = vunpack.c.0.s8 %v1077
        %v1079 = vlaneseq
        %v1080 = vshrl.u32 %v1079, 7
        %v1081 = vsub.s32 %v1078, %v1080
        %v1082 = vrot.slane %v1075, %v1081
        %v1084 = vmul.f32 %v503, %v1082
        %v1085 = vmul.f32 %v504, %v1082
        %1088 = vrot.lane.b32.xlu0 %v1084, 78
        %v1089 = vpop.permute.xlu0 %1088
        %1090 = vrot.lane.b32.xlu0 %v1085, 78
        %v1091 = vpop.permute.xlu0 %1090
        %v1092 = vrot.slane %v1089, 4
        %v1093 = vrot.slane %v1091, 4
        %v1094 = vsel %vm542, %v1092, %v1093
        %vm1095 = vcmask 637952
        %v1096 = vsel %vm1095, %v1089, %v1094
        %v1097 = vsel %vm1095, %v1091, %v1093
        %v1100 = vadd.f32 %v1071, %v1096
        %v1101 = vadd.f32 %v1072, %v1097
        %1102 = vset.pattern.permute.xlu0 21
        %1103 = vperm.xlu0 %1102, %v359
        %v1104 = vpop.permute.xlu0 %1103
        %v1106 = vunpack.c.l.s4 839922192
        %v1107 = vunpack.c.0.s8 %v1106
        %v1108 = vlaneseq
        %v1109 = vshrl.u32 %v1108, 7
        %v1110 = vsub.s32 %v1107, %v1109
        %v1111 = vrot.slane %v1104, %v1110
        %v1113 = vmul.f32 %v503, %v1111
        %v1114 = vmul.f32 %v504, %v1111
        %1117 = vrot.lane.b32.xlu0 %v1113, 62
        %v1118 = vpop.permute.xlu0 %1117
        %1119 = vrot.lane.b32.xlu0 %v1114, 62
        %v1120 = vpop.permute.xlu0 %1119
        %v1121 = vrot.slane %v1118, 4
        %v1122 = vrot.slane %v1120, 4
        %v1123 = vsel %vm542, %v1121, %v1122
        %vm1124 = vcmask 506880
        %v1125 = vsel %vm1124, %v1118, %v1123
        %v1126 = vsel %vm1124, %v1120, %v1122
        %v1129 = vadd.f32 %v1100, %v1125
        %v1130 = vadd.f32 %v1101, %v1126
        %1131 = vset.pattern.permute.xlu0 22
        %1132 = vperm.xlu0 %1131, %v359
        %v1133 = vpop.permute.xlu0 %1132
        %v1135 = vunpack.c.l.s4 839922192
        %v1136 = vunpack.c.0.s8 %v1135
        %v1137 = vlaneseq
        %v1138 = vshrl.u32 %v1137, 7
        %v1139 = vsub.s32 %v1136, %v1138
        %v1140 = vrot.slane %v1133, %v1139
        %v1142 = vmul.f32 %v503, %v1140
        %v1143 = vmul.f32 %v504, %v1140
        %1146 = vrot.lane.b32.xlu0 %v1142, 61
        %v1147 = vpop.permute.xlu0 %1146
        %1148 = vrot.lane.b32.xlu0 %v1143, 61
        %v1149 = vpop.permute.xlu0 %1148
        %v1150 = vrot.slane %v1147, 4
        %v1151 = vrot.slane %v1149, 4
        %v1152 = vsel %vm542, %v1150, %v1151
        %vm1153 = vcmask 498688
        %v1154 = vsel %vm1153, %v1147, %v1152
        %v1155 = vsel %vm1153, %v1149, %v1151
        %v1158 = vadd.f32 %v1129, %v1154
        %v1159 = vadd.f32 %v1130, %v1155
        %1160 = vset.pattern.permute.xlu0 23
        %1161 = vperm.xlu0 %1160, %v359
        %v1162 = vpop.permute.xlu0 %1161
        %v1164 = vunpack.c.l.s4 839922192
        %v1165 = vunpack.c.0.s8 %v1164
        %v1166 = vlaneseq
        %v1167 = vshrl.u32 %v1166, 7
        %v1168 = vsub.s32 %v1165, %v1167
        %v1169 = vrot.slane %v1162, %v1168
        %v1171 = vmul.f32 %v503, %v1169
        %v1172 = vmul.f32 %v504, %v1169
        %1175 = vrot.lane.b32.xlu0 %v1171, 60
        %v1176 = vpop.permute.xlu0 %1175
        %1177 = vrot.lane.b32.xlu0 %v1172, 60
        %v1178 = vpop.permute.xlu0 %1177
        %v1179 = vrot.slane %v1176, 4
        %v1180 = vrot.slane %v1178, 4
        %v1181 = vsel %vm542, %v1179, %v1180
        %vm1182 = vcmask 490496
        %v1183 = vsel %vm1182, %v1176, %v1181
        %v1184 = vsel %vm1182, %v1178, %v1180
        %v1187 = vadd.f32 %v1158, %v1183
        %v1188 = vadd.f32 %v1159, %v1184
        %v1189 = vld [vmem:[#allocation2 + $0x4] sm:$0xff]
        %v1190 = vld [vmem:[#allocation2 + $0xc] sm:$0xf]
        %1191 = vset.pattern.permute.xlu0 24
        %1192 = vperm.xlu0 %1191, %v359
        %v1193 = vpop.permute.xlu0 %1192
        %v1195 = vunpack.c.l.s4 839922192
        %v1196 = vunpack.c.0.s8 %v1195
        %v1197 = vlaneseq
        %v1198 = vshrl.u32 %v1197, 7
        %v1199 = vsub.s32 %v1196, %v1198
        %v1200 = vrot.slane %v1193, %v1199
        %v1202 = vmul.f32 %v1189, %v1200
        %v1203 = vmul.f32 %v1190, %v1200
        %1206 = vrot.lane.b32.xlu0 %v1202, 59
        %v1207 = vpop.permute.xlu0 %1206
        %1208 = vrot.lane.b32.xlu0 %v1203, 59
        %v1209 = vpop.permute.xlu0 %1208
        %v1210 = vrot.slane %v1207, 4
        %v1211 = vrot.slane %v1209, 4
        %vm1212 = vcmask 482304
        %v1213 = vsel %vm1212, %v1210, %v1207
        %v1214 = vsel %vm542, %v1210, %v1211
        %v1215 = vsel %vm1212, %v1214, %v1209
        %v1218 = vadd.f32 %v1187, %v1213
        %v1219 = vadd.f32 %v1188, %v1215
        %1220 = vset.pattern.permute.xlu0 25
        %1221 = vperm.xlu0 %1220, %v359
        %v1222 = vpop.permute.xlu0 %1221
        %v1224 = vunpack.c.l.s4 839922192
        %v1225 = vunpack.c.0.s8 %v1224
        %v1226 = vlaneseq
        %v1227 = vshrl.u32 %v1226, 7
        %v1228 = vsub.s32 %v1225, %v1227
        %v1229 = vrot.slane %v1222, %v1228
        %v1231 = vmul.f32 %v1189, %v1229
        %v1232 = vmul.f32 %v1190, %v1229
        %1235 = vrot.lane.b32.xlu0 %v1231, 58
        %v1236 = vpop.permute.xlu0 %1235
        %1237 = vrot.lane.b32.xlu0 %v1232, 58
        %v1238 = vpop.permute.xlu0 %1237
        %v1239 = vrot.slane %v1236, 4
        %v1240 = vrot.slane %v1238, 4
        %vm1241 = vcmask 474112
        %v1242 = vsel %vm1241, %v1239, %v1236
        %v1243 = vsel %vm542, %v1239, %v1240
        %v1244 = vsel %vm1241, %v1243, %v1238
        %v1247 = vadd.f32 %v1218, %v1242
        %v1248 = vadd.f32 %v1219, %v1244
        %1249 = vset.pattern.permute.xlu0 26
        %1250 = vperm.xlu0 %1249, %v359
        %v1251 = vpop.permute.xlu0 %1250
        %v1253 = vunpack.c.l.s4 839922192
        %v1254 = vunpack.c.0.s8 %v1253
        %v1255 = vlaneseq
        %v1256 = vshrl.u32 %v1255, 7
        %v1257 = vsub.s32 %v1254, %v1256
        %v1258 = vrot.slane %v1251, %v1257
        %v1260 = vmul.f32 %v1189, %v1258
        %v1261 = vmul.f32 %v1190, %v1258
        %1264 = vrot.lane.b32.xlu0 %v1260, 57
        %v1265 = vpop.permute.xlu0 %1264
        %1266 = vrot.lane.b32.xlu0 %v1261, 57
        %v1267 = vpop.permute.xlu0 %1266
        %v1268 = vrot.slane %v1265, 4
        %v1269 = vrot.slane %v1267, 4
        %vm1270 = vcmask 465920
        %v1271 = vsel %vm1270, %v1268, %v1265
        %v1272 = vsel %vm542, %v1268, %v1269
        %v1273 = vsel %vm1270, %v1272, %v1267
        %v1276 = vadd.f32 %v1247, %v1271
        %v1277 = vadd.f32 %v1248, %v1273
        %1278 = vset.pattern.permute.xlu0 27
        %1279 = vperm.xlu0 %1278, %v359
        %v1280 = vpop.permute.xlu0 %1279
        %v1282 = vunpack.c.l.s4 839922192
        %v1283 = vunpack.c.0.s8 %v1282
        %v1284 = vlaneseq
        %v1285 = vshrl.u32 %v1284, 7
        %v1286 = vsub.s32 %v1283, %v1285
        %v1287 = vrot.slane %v1280, %v1286
        %v1289 = vmul.f32 %v1189, %v1287
        %v1290 = vmul.f32 %v1190, %v1287
        %1293 = vrot.lane.b32.xlu0 %v1289, 56
        %v1294 = vpop.permute.xlu0 %1293
        %1295 = vrot.lane.b32.xlu0 %v1290, 56
        %v1296 = vpop.permute.xlu0 %1295
        %v1297 = vrot.slane %v1294, 4
        %v1298 = vrot.slane %v1296, 4
        %vm1299 = vcmask 457728
        %v1300 = vsel %vm1299, %v1297, %v1294
        %v1301 = vsel %vm542, %v1297, %v1298
        %v1302 = vsel %vm1299, %v1301, %v1296
        %v1305 = vadd.f32 %v1276, %v1300
        %v1306 = vadd.f32 %v1277, %v1302
        %1307 = vset.pattern.permute.xlu0 28
        %1308 = vperm.xlu0 %1307, %v359
        %v1309 = vpop.permute.xlu0 %1308
        %v1311 = vunpack.c.l.s4 839922192
        %v1312 = vunpack.c.0.s8 %v1311
        %v1313 = vlaneseq
        %v1314 = vshrl.u32 %v1313, 7
        %v1315 = vsub.s32 %v1312, %v1314
        %v1316 = vrot.slane %v1309, %v1315
        %v1318 = vmul.f32 %v1189, %v1316
        %v1319 = vmul.f32 %v1190, %v1316
        %1322 = vrot.lane.b32.xlu0 %v1318, 40
        %v1323 = vpop.permute.xlu0 %1322
        %1324 = vrot.lane.b32.xlu0 %v1319, 40
        %v1325 = vpop.permute.xlu0 %1324
        %v1326 = vrot.slane %v1323, 4
        %v1327 = vrot.slane %v1325, 4
        %vm1328 = vcmask 326656
        %v1329 = vsel %vm1328, %v1326, %v1323
        %v1330 = vsel %vm542, %v1326, %v1327
        %v1331 = vsel %vm1328, %v1330, %v1325
        %v1334 = vadd.f32 %v1305, %v1329
        %v1335 = vadd.f32 %v1306, %v1331
        %1336 = vset.pattern.permute.xlu0 29
        %1337 = vperm.xlu0 %1336, %v359
        %v1338 = vpop.permute.xlu0 %1337
        %v1340 = vunpack.c.l.s4 839922192
        %v1341 = vunpack.c.0.s8 %v1340
        %v1342 = vlaneseq
        %v1343 = vshrl.u32 %v1342, 7
        %v1344 = vsub.s32 %v1341, %v1343
        %v1345 = vrot.slane %v1338, %v1344
        %v1347 = vmul.f32 %v1189, %v1345
        %v1348 = vmul.f32 %v1190, %v1345
        %1351 = vrot.lane.b32.xlu0 %v1347, 39
        %v1352 = vpop.permute.xlu0 %1351
        %1353 = vrot.lane.b32.xlu0 %v1348, 39
        %v1354 = vpop.permute.xlu0 %1353
        %v1355 = vrot.slane %v1352, 4
        %v1356 = vrot.slane %v1354, 4
        %vm1357 = vcmask 318464
        %v1358 = vsel %vm1357, %v1355, %v1352
        %v1359 = vsel %vm542, %v1355, %v1356
        %v1360 = vsel %vm1357, %v1359, %v1354
        %v1363 = vadd.f32 %v1334, %v1358
        %v1364 = vadd.f32 %v1335, %v1360
        %1365 = vset.pattern.permute.xlu0 30
        %1366 = vperm.xlu0 %1365, %v359
        %v1367 = vpop.permute.xlu0 %1366
        %v1369 = vunpack.c.l.s4 839922192
        %v1370 = vunpack.c.0.s8 %v1369
        %v1371 = vlaneseq
        %v1372 = vshrl.u32 %v1371, 7
        %v1373 = vsub.s32 %v1370, %v1372
        %v1374 = vrot.slane %v1367, %v1373
        %v1376 = vmul.f32 %v1189, %v1374
        %v1377 = vmul.f32 %v1190, %v1374
        %1380 = vrot.lane.b32.xlu0 %v1376, 38
        %v1381 = vpop.permute.xlu0 %1380
        %1382 = vrot.lane.b32.xlu0 %v1377, 38
        %v1383 = vpop.permute.xlu0 %1382
        %v1384 = vrot.slane %v1381, 4
        %v1385 = vrot.slane %v1383, 4
        %vm1386 = vcmask 310272
        %v1387 = vsel %vm1386, %v1384, %v1381
        %v1388 = vsel %vm542, %v1384, %v1385
        %v1389 = vsel %vm1386, %v1388, %v1383
        %v1392 = vadd.f32 %v1363, %v1387
        %v1393 = vadd.f32 %v1364, %v1389
        %1394 = vset.pattern.permute.xlu0 31
        %1395 = vperm.xlu0 %1394, %v359
        %v1396 = vpop.permute.xlu0 %1395
        %v1398 = vunpack.c.l.s4 839922192
        %v1399 = vunpack.c.0.s8 %v1398
        %v1400 = vlaneseq
        %v1401 = vshrl.u32 %v1400, 7
        %v1402 = vsub.s32 %v1399, %v1401
        %v1403 = vrot.slane %v1396, %v1402
        %v1405 = vmul.f32 %v1189, %v1403
        %v1406 = vmul.f32 %v1190, %v1403
        %1409 = vrot.lane.b32.xlu0 %v1405, 37
        %v1410 = vpop.permute.xlu0 %1409
        %1411 = vrot.lane.b32.xlu0 %v1406, 37
        %v1412 = vpop.permute.xlu0 %1411
        %v1413 = vrot.slane %v1410, 4
        %v1414 = vrot.slane %v1412, 4
        %vm1415 = vcmask 302080
        %v1416 = vsel %vm1415, %v1413, %v1410
        %v1417 = vsel %vm542, %v1413, %v1414
        %v1418 = vsel %vm1415, %v1417, %v1412
        %v1421 = vadd.f32 %v1392, %v1416
        %v1422 = vadd.f32 %v1393, %v1418
        %1423 = vset.pattern.permute.xlu0 32
        %1424 = vperm.xlu0 %1423, %v359
        %v1425 = vpop.permute.xlu0 %1424
        %v1427 = vunpack.c.l.s4 839922192
        %v1428 = vunpack.c.0.s8 %v1427
        %v1429 = vlaneseq
        %v1430 = vshrl.u32 %v1429, 7
        %v1431 = vsub.s32 %v1428, %v1430
        %v1432 = vrot.slane %v1425, %v1431
        %v1434 = vmul.f32 %v1189, %v1432
        %v1435 = vmul.f32 %v1190, %v1432
        %1438 = vrot.lane.b32.xlu0 %v1434, 36
        %v1439 = vpop.permute.xlu0 %1438
        %1440 = vrot.lane.b32.xlu0 %v1435, 36
        %v1441 = vpop.permute.xlu0 %1440
        %v1442 = vrot.slane %v1439, 4
        %v1443 = vrot.slane %v1441, 4
        %vm1444 = vcmask 293888
        %v1445 = vsel %vm1444, %v1442, %v1439
        %v1446 = vsel %vm542, %v1442, %v1443
        %v1447 = vsel %vm1444, %v1446, %v1441
        %v1450 = vadd.f32 %v1421, %v1445
        %v1451 = vadd.f32 %v1422, %v1447
        %1452 = vset.pattern.permute.xlu0 33
        %1453 = vperm.xlu0 %1452, %v359
        %v1454 = vpop.permute.xlu0 %1453
        %v1456 = vunpack.c.l.s4 839922192
        %v1457 = vunpack.c.0.s8 %v1456
        %v1458 = vlaneseq
        %v1459 = vshrl.u32 %v1458, 7
        %v1460 = vsub.s32 %v1457, %v1459
        %v1461 = vrot.slane %v1454, %v1460
        %v1463 = vmul.f32 %v1189, %v1461
        %v1464 = vmul.f32 %v1190, %v1461
        %1467 = vrot.lane.b32.xlu0 %v1463, 35
        %v1468 = vpop.permute.xlu0 %1467
        %1469 = vrot.lane.b32.xlu0 %v1464, 35
        %v1470 = vpop.permute.xlu0 %1469
        %v1471 = vrot.slane %v1468, 4
        %v1472 = vrot.slane %v1470, 4
        %vm1473 = vcmask 285696
        %v1474 = vsel %vm1473, %v1471, %v1468
        %v1475 = vsel %vm542, %v1471, %v1472
        %v1476 = vsel %vm1473, %v1475, %v1470
        %v1479 = vadd.f32 %v1450, %v1474
        %v1480 = vadd.f32 %v1451, %v1476
        %1481 = vset.pattern.permute.xlu0 34
        %1482 = vperm.xlu0 %1481, %v359
        %v1483 = vpop.permute.xlu0 %1482
        %v1485 = vunpack.c.l.s4 839922192
        %v1486 = vunpack.c.0.s8 %v1485
        %v1487 = vlaneseq
        %v1488 = vshrl.u32 %v1487, 7
        %v1489 = vsub.s32 %v1486, %v1488
        %v1490 = vrot.slane %v1483, %v1489
        %v1492 = vmul.f32 %v1189, %v1490
        %v1493 = vmul.f32 %v1190, %v1490
        %1496 = vrot.lane.b32.xlu0 %v1492, 34
        %v1497 = vpop.permute.xlu0 %1496
        %1498 = vrot.lane.b32.xlu0 %v1493, 34
        %v1499 = vpop.permute.xlu0 %1498
        %v1500 = vrot.slane %v1497, 4
        %v1501 = vrot.slane %v1499, 4
        %vm1502 = vcmask 277504
        %v1503 = vsel %vm1502, %v1500, %v1497
        %v1504 = vsel %vm542, %v1500, %v1501
        %v1505 = vsel %vm1502, %v1504, %v1499
        %v1508 = vadd.f32 %v1479, %v1503
        %v1509 = vadd.f32 %v1480, %v1505
        %v1510 = vld [vmem:[#allocation2 + $0x4] sm:$0xff]
        %v1511 = vld [vmem:[#allocation2 + $0xc] sm:$0xff]
        %1512 = vset.pattern.permute.xlu0 35
        %1513 = vperm.xlu0 %1512, %v359
        %v1514 = vpop.permute.xlu0 %1513
        %v1516 = vunpack.c.l.s4 839922192
        %v1517 = vunpack.c.0.s8 %v1516
        %v1518 = vlaneseq
        %v1519 = vshrl.u32 %v1518, 7
        %v1520 = vsub.s32 %v1517, %v1519
        %v1521 = vrot.slane %v1514, %v1520
        %v1523 = vmul.f32 %v1510, %v1521
        %v1524 = vmul.f32 %v1511, %v1521
        %1527 = vrot.lane.b32.xlu0 %v1523, 18
        %v1528 = vpop.permute.xlu0 %1527
        %1529 = vrot.lane.b32.xlu0 %v1524, 18
        %v1530 = vpop.permute.xlu0 %1529
        %v1531 = vrot.slane %v1528, 4
        %v1532 = vrot.slane %v1530, 4
        %vm1533 = vcmask 146432
        %v1534 = vsel %vm1533, %v1531, %v1528
        %v1535 = vsel %vm542, %v1531, %v1532
        %v1536 = vsel %vm1533, %v1535, %v1530
        %v1539 = vadd.f32 %v1508, %v1534
        %v1540 = vadd.f32 %v1509, %v1536
        %1541 = vset.pattern.permute.xlu0 36
        %1542 = vperm.xlu0 %1541, %v359
        %v1543 = vpop.permute.xlu0 %1542
        %v1545 = vunpack.c.l.s4 839922192
        %v1546 = vunpack.c.0.s8 %v1545
        %v1547 = vlaneseq
        %v1548 = vshrl.u32 %v1547, 7
        %v1549 = vsub.s32 %v1546, %v1548
        %v1550 = vrot.slane %v1543, %v1549
        %v1552 = vmul.f32 %v1510, %v1550
        %v1553 = vmul.f32 %v1511, %v1550
        %1556 = vrot.lane.b32.xlu0 %v1552, 17
        %v1557 = vpop.permute.xlu0 %1556
        %1558 = vrot.lane.b32.xlu0 %v1553, 17
        %v1559 = vpop.permute.xlu0 %1558
        %v1560 = vrot.slane %v1557, 4
        %v1561 = vrot.slane %v1559, 4
        %vm1562 = vcmask 138240
        %v1563 = vsel %vm1562, %v1560, %v1557
        %v1564 = vsel %vm542, %v1560, %v1561
        %v1565 = vsel %vm1562, %v1564, %v1559
        %v1568 = vadd.f32 %v1539, %v1563
        %v1569 = vadd.f32 %v1540, %v1565
        %1570 = vset.pattern.permute.xlu0 37
        %1571 = vperm.xlu0 %1570, %v359
        %v1572 = vpop.permute.xlu0 %1571
        %v1574 = vunpack.c.l.s4 839922192
        %v1575 = vunpack.c.0.s8 %v1574
        %v1576 = vlaneseq
        %v1577 = vshrl.u32 %v1576, 7
        %v1578 = vsub.s32 %v1575, %v1577
        %v1579 = vrot.slane %v1572, %v1578
        %v1581 = vmul.f32 %v1510, %v1579
        %v1582 = vmul.f32 %v1511, %v1579
        %1585 = vrot.lane.b32.xlu0 %v1581, 16
        %v1586 = vpop.permute.xlu0 %1585
        %1587 = vrot.lane.b32.xlu0 %v1582, 16
        %v1588 = vpop.permute.xlu0 %1587
        %v1589 = vrot.slane %v1586, 4
        %v1590 = vrot.slane %v1588, 4
        %vm1591 = vcmask 130048
        %v1592 = vsel %vm1591, %v1589, %v1586
        %v1593 = vsel %vm542, %v1589, %v1590
        %v1594 = vsel %vm1591, %v1593, %v1588
        %v1597 = vadd.f32 %v1568, %v1592
        %v1598 = vadd.f32 %v1569, %v1594
        %1599 = vset.pattern.permute.xlu0 38
        %1600 = vperm.xlu0 %1599, %v359
        %v1601 = vpop.permute.xlu0 %1600
        %v1603 = vunpack.c.l.s4 839922192
        %v1604 = vunpack.c.0.s8 %v1603
        %v1605 = vlaneseq
        %v1606 = vshrl.u32 %v1605, 7
        %v1607 = vsub.s32 %v1604, %v1606
        %v1608 = vrot.slane %v1601, %v1607
        %v1610 = vmul.f32 %v1510, %v1608
        %v1611 = vmul.f32 %v1511, %v1608
        %1614 = vrot.lane.b32.xlu0 %v1610, 15
        %v1615 = vpop.permute.xlu0 %1614
        %1616 = vrot.lane.b32.xlu0 %v1611, 15
        %v1617 = vpop.permute.xlu0 %1616
        %v1618 = vrot.slane %v1615, 4
        %v1619 = vrot.slane %v1617, 4
        %vm1620 = vcmask 121856
        %v1621 = vsel %vm1620, %v1618, %v1615
        %v1622 = vsel %vm542, %v1618, %v1619
        %v1623 = vsel %vm1620, %v1622, %v1617
        %v1626 = vadd.f32 %v1597, %v1621
        %v1627 = vadd.f32 %v1598, %v1623
        %1628 = vset.pattern.permute.xlu0 39
        %1629 = vperm.xlu0 %1628, %v359
        %v1630 = vpop.permute.xlu0 %1629
        %v1632 = vunpack.c.l.s4 839922192
        %v1633 = vunpack.c.0.s8 %v1632
        %v1634 = vlaneseq
        %v1635 = vshrl.u32 %v1634, 7
        %v1636 = vsub.s32 %v1633, %v1635
        %v1637 = vrot.slane %v1630, %v1636
        %v1639 = vmul.f32 %v1510, %v1637
        %v1640 = vmul.f32 %v1511, %v1637
        %1643 = vrot.lane.b32.xlu0 %v1639, 14
        %v1644 = vpop.permute.xlu0 %1643
        %1645 = vrot.lane.b32.xlu0 %v1640, 14
        %v1646 = vpop.permute.xlu0 %1645
        %v1647 = vrot.slane %v1644, 4
        %v1648 = vrot.slane %v1646, 4
        %vm1649 = vcmask 113664
        %v1650 = vsel %vm1649, %v1647, %v1644
        %v1651 = vsel %vm542, %v1647, %v1648
        %v1652 = vsel %vm1649, %v1651, %v1646
        %v1655 = vadd.f32 %v1626, %v1650
        %v1656 = vadd.f32 %v1627, %v1652
        %1657 = vset.pattern.permute.xlu0 40
        %1658 = vperm.xlu0 %1657, %v359
        %v1659 = vpop.permute.xlu0 %1658
        %v1661 = vunpack.c.l.s4 839922192
        %v1662 = vunpack.c.0.s8 %v1661
        %v1663 = vlaneseq
        %v1664 = vshrl.u32 %v1663, 7
        %v1665 = vsub.s32 %v1662, %v1664
        %v1666 = vrot.slane %v1659, %v1665
        %v1668 = vmul.f32 %v1510, %v1666
        %v1669 = vmul.f32 %v1511, %v1666
        %1672 = vrot.lane.b32.xlu0 %v1668, 13
        %v1673 = vpop.permute.xlu0 %1672
        %1674 = vrot.lane.b32.xlu0 %v1669, 13
        %v1675 = vpop.permute.xlu0 %1674
        %v1676 = vrot.slane %v1673, 4
        %v1677 = vrot.slane %v1675, 4
        %vm1678 = vcmask 105472
        %v1679 = vsel %vm1678, %v1676, %v1673
        %v1680 = vsel %vm542, %v1676, %v1677
        %v1681 = vsel %vm1678, %v1680, %v1675
        %v1684 = vadd.f32 %v1655, %v1679
        %v1685 = vadd.f32 %v1656, %v1681
        %1686 = vset.pattern.permute.xlu0 41
        %1687 = vperm.xlu0 %1686, %v359
        %v1688 = vpop.permute.xlu0 %1687
        %v1690 = vunpack.c.l.s4 839922192
        %v1691 = vunpack.c.0.s8 %v1690
        %v1692 = vlaneseq
        %v1693 = vshrl.u32 %v1692, 7
        %v1694 = vsub.s32 %v1691, %v1693
        %v1695 = vrot.slane %v1688, %v1694
        %v1697 = vmul.f32 %v1510, %v1695
        %v1698 = vmul.f32 %v1511, %v1695
        %1701 = vrot.lane.b32.xlu0 %v1697, 12
        %v1702 = vpop.permute.xlu0 %1701
        %1703 = vrot.lane.b32.xlu0 %v1698, 12
        %v1704 = vpop.permute.xlu0 %1703
        %v1705 = vrot.slane %v1702, 4
        %v1706 = vrot.slane %v1704, 4
        %vm1707 = vcmask 97280
        %v1708 = vsel %vm1707, %v1705, %v1702
        %v1709 = vsel %vm542, %v1705, %v1706
        %v1710 = vsel %vm1707, %v1709, %v1704
        %v1713 = vadd.f32 %v1684, %v1708
        %v1714 = vadd.f32 %v1685, %v1710
        %1715 = vset.pattern.permute.xlu0 42
        %1716 = vperm.xlu0 %1715, %v359
        %v1717 = vpop.permute.xlu0 %1716
        %v1719 = vunpack.c.l.s4 839922192
        %v1720 = vunpack.c.0.s8 %v1719
        %v1721 = vlaneseq
        %v1722 = vshrl.u32 %v1721, 7
        %v1723 = vsub.s32 %v1720, %v1722
        %v1724 = vrot.slane %v1717, %v1723
        %v1726 = vmul.f32 %v1510, %v1724
        %v1727 = vmul.f32 %v1511, %v1724
        %1730 = vrot.lane.b32.xlu0 %v1726, 124
        %v1731 = vpop.permute.xlu0 %1730
        %1732 = vrot.lane.b32.xlu0 %v1727, 124
        %v1733 = vpop.permute.xlu0 %1732
        %v1734 = vrot.slane %v1731, 4
        %v1735 = vrot.slane %v1733, 4
        %v1736 = vsel %vm542, %v1734, %v1735
        %v1737 = vsel %vm631, %v1731, %v1736
        %v1738 = vsel %vm631, %v1733, %v1735
        %v1741 = vadd.f32 %v1713, %v1737
        %v1742 = vadd.f32 %v1714, %v1738
        %1743 = vset.pattern.permute.xlu0 43
        %1744 = vperm.xlu0 %1743, %v359
        %v1745 = vpop.permute.xlu0 %1744
        %v1747 = vunpack.c.l.s4 839922192
        %v1748 = vunpack.c.0.s8 %v1747
        %v1749 = vlaneseq
        %v1750 = vshrl.u32 %v1749, 7
        %v1751 = vsub.s32 %v1748, %v1750
        %v1752 = vrot.slane %v1745, %v1751
        %v1754 = vmul.f32 %v1510, %v1752
        %v1755 = vmul.f32 %v1511, %v1752
        %1758 = vrot.lane.b32.xlu0 %v1754, 123
        %v1759 = vpop.permute.xlu0 %1758
        %1760 = vrot.lane.b32.xlu0 %v1755, 123
        %v1761 = vpop.permute.xlu0 %1760
        %v1762 = vrot.slane %v1759, 4
        %v1763 = vrot.slane %v1761, 4
        %v1764 = vsel %vm542, %v1762, %v1763
        %v1765 = vsel %vm660, %v1759, %v1764
        %v1766 = vsel %vm660, %v1761, %v1763
        %v1769 = vadd.f32 %v1741, %v1765
        %v1770 = vadd.f32 %v1742, %v1766
        %1771 = vset.pattern.permute.xlu0 44
        %1772 = vperm.xlu0 %1771, %v359
        %v1773 = vpop.permute.xlu0 %1772
        %v1775 = vunpack.c.l.s4 839922192
        %v1776 = vunpack.c.0.s8 %v1775
        %v1777 = vlaneseq
        %v1778 = vshrl.u32 %v1777, 7
        %v1779 = vsub.s32 %v1776, %v1778
        %v1780 = vrot.slane %v1773, %v1779
        %v1782 = vmul.f32 %v1510, %v1780
        %v1783 = vmul.f32 %v1511, %v1780
        %1786 = vrot.lane.b32.xlu0 %v1782, 122
        %v1787 = vpop.permute.xlu0 %1786
        %1788 = vrot.lane.b32.xlu0 %v1783, 122
        %v1789 = vpop.permute.xlu0 %1788
        %v1790 = vrot.slane %v1787, 4
        %v1791 = vrot.slane %v1789, 4
        %v1792 = vsel %vm542, %v1790, %v1791
        %v1793 = vsel %vm689, %v1787, %v1792
        %v1794 = vsel %vm689, %v1789, %v1791
        %v1797 = vadd.f32 %v1769, %v1793
        %v1798 = vadd.f32 %v1770, %v1794
        %1799 = vset.pattern.permute.xlu0 45
        %1800 = vperm.xlu0 %1799, %v359
        %v1801 = vpop.permute.xlu0 %1800
        %v1803 = vunpack.c.l.s4 839922192
        %v1804 = vunpack.c.0.s8 %v1803
        %v1805 = vlaneseq
        %v1806 = vshrl.u32 %v1805, 7
        %v1807 = vsub.s32 %v1804, %v1806
        %v1808 = vrot.slane %v1801, %v1807
        %v1810 = vmul.f32 %v1510, %v1808
        %v1811 = vmul.f32 %v1511, %v1808
        %1814 = vrot.lane.b32.xlu0 %v1810, 121
        %v1815 = vpop.permute.xlu0 %1814
        %1816 = vrot.lane.b32.xlu0 %v1811, 121
        %v1817 = vpop.permute.xlu0 %1816
        %v1818 = vrot.slane %v1815, 4
        %v1819 = vrot.slane %v1817, 4
        %v1820 = vsel %vm542, %v1818, %v1819
        %vm1821 = vcmask 990208
        %v1822 = vsel %vm1821, %v1815, %v1820
        %v1823 = vsel %vm1821, %v1817, %v1819
        %v1826 = vadd.f32 %v1797, %v1822
        %v1827 = vadd.f32 %v1798, %v1823
        %1828 = vset.pattern.permute.xlu0 46
        %1829 = vperm.xlu0 %1828, %v359
        %v1830 = vpop.permute.xlu0 %1829
        %v1832 = vunpack.c.l.s4 839922192
        %v1833 = vunpack.c.0.s8 %v1832
        %v1834 = vlaneseq
        %v1835 = vshrl.u32 %v1834, 7
        %v1836 = vsub.s32 %v1833, %v1835
        %v1837 = vrot.slane %v1830, %v1836
        %v1839 = vmul.f32 %v1510, %v1837
        %v1840 = vmul.f32 %v1511, %v1837
        %1843 = vrot.lane.b32.xlu0 %v1839, 120
        %v1844 = vpop.permute.xlu0 %1843
        %1845 = vrot.lane.b32.xlu0 %v1840, 120
        %v1846 = vpop.permute.xlu0 %1845
        %v1847 = vrot.slane %v1844, 4
        %v1848 = vrot.slane %v1846, 4
        %v1849 = vsel %vm542, %v1847, %v1848
        %vm1850 = vcmask 982016
        %v1851 = vsel %vm1850, %v1844, %v1849
        %v1852 = vsel %vm1850, %v1846, %v1848
        %v1855 = vadd.f32 %v1826, %v1851
        %v1856 = vadd.f32 %v1827, %v1852
        %1857 = vset.pattern.permute.xlu0 47
        %1858 = vperm.xlu0 %1857, %v359
        %v1859 = vpop.permute.xlu0 %1858
        %v1861 = vunpack.c.l.s4 839922192
        %v1862 = vunpack.c.0.s8 %v1861
        %v1863 = vlaneseq
        %v1864 = vshrl.u32 %v1863, 7
        %v1865 = vsub.s32 %v1862, %v1864
        %v1866 = vrot.slane %v1859, %v1865
        %v1868 = vmul.f32 %v1510, %v1866
        %v1869 = vmul.f32 %v1511, %v1866
        %1872 = vrot.lane.b32.xlu0 %v1868, 119
        %v1873 = vpop.permute.xlu0 %1872
        %1874 = vrot.lane.b32.xlu0 %v1869, 119
        %v1875 = vpop.permute.xlu0 %1874
        %v1876 = vrot.slane %v1873, 4
        %v1877 = vrot.slane %v1875, 4
        %v1878 = vsel %vm542, %v1876, %v1877
        %vm1879 = vcmask 973824
        %v1880 = vsel %vm1879, %v1873, %v1878
        %v1881 = vsel %vm1879, %v1875, %v1877
        %v1884 = vadd.f32 %v1855, %v1880
        %v1885 = vadd.f32 %v1856, %v1881
        %1886 = vset.pattern.permute.xlu0 48
        %1887 = vperm.xlu0 %1886, %v359
        %v1888 = vpop.permute.xlu0 %1887
        %v1890 = vunpack.c.l.s4 839922192
        %v1891 = vunpack.c.0.s8 %v1890
        %v1892 = vlaneseq
        %v1893 = vshrl.u32 %v1892, 7
        %v1894 = vsub.s32 %v1891, %v1893
        %v1895 = vrot.slane %v1888, %v1894
        %v1897 = vmul.f32 %v1510, %v1895
        %v1898 = vmul.f32 %v1511, %v1895
        %1901 = vrot.lane.b32.xlu0 %v1897, 118
        %v1902 = vpop.permute.xlu0 %1901
        %1903 = vrot.lane.b32.xlu0 %v1898, 118
        %v1904 = vpop.permute.xlu0 %1903
        %v1905 = vrot.slane %v1902, 4
        %v1906 = vrot.slane %v1904, 4
        %v1907 = vsel %vm542, %v1905, %v1906
        %vm1908 = vcmask 965632
        %v1909 = vsel %vm1908, %v1902, %v1907
        %v1910 = vsel %vm1908, %v1904, %v1906
        %v1913 = vadd.f32 %v1884, %v1909
        %v1914 = vadd.f32 %v1885, %v1910
        %1916 = vset.pattern.permute.xlu0 0
        %1917 = vperm.xlu0 %1916, %v360
        %v1918 = vpop.permute.xlu0 %1917
        %v1920 = vunpack.c.l.s4 839922192
        %v1921 = vunpack.c.0.s8 %v1920
        %v1922 = vlaneseq
        %v1923 = vshrl.u32 %v1922, 7
        %v1924 = vsub.s32 %v1921, %v1923
        %v1925 = vrot.slane %v1918, %v1924
        %v1927 = vadd.f32 %v1913, %v1925
        %v1928 = vadd.f32 %v1914, %v1925
        %v1931 = vcombine.high %v1927, %v1927
        %v1932 = vcombine.high %v1928, %v1928
        %v1935 = vpack.c.bf16 %v1927, %v1927
        %v1936 = vpack.c.bf16 %v1931, %v1931
        %v1937 = vpack.c.bf16 %v1928, %v1928
        %v1938 = vpack.c.bf16 %v1932, %v1932
        %1940 = vset.pattern.permute.xlu0 0
        %1941 = vperm.xlu0 %1940, %v367
        %v1942 = vpop.permute.xlu0 %1941
        %1945 = vset.pattern.permute.xlu0 0
        %1946 = vperm.xlu0 %1945, %v368
        %v1947 = vpop.permute.xlu0 %1946
        %1950 = vset.pattern.permute.xlu0 0
        %1951 = vperm.xlu0 %1950, %v369
        %v1952 = vpop.permute.xlu0 %1951
        %1955 = vset.pattern.permute.xlu0 0
        %1956 = vperm.xlu0 %1955, %v370
        %v1957 = vpop.permute.xlu0 %1956
        %v1963 = vunpack.c.l.b16 %v363
        %v1964 = vunpack.c.l.b16 %v364
        %v1965 = vunpack.c.l.b16 %v365
        %v1966 = vunpack.c.l.b16 %v366
        %v1967 = vpack.c.b16 %v1964, %v1963
        %v1968 = vpack.c.b16 %v1966, %v1965
        %1973 = vrot.lane.b32.xlu0 %v1935, 69
        %v1974 = vpop.permute.xlu0 %1973
        %1975 = vrot.lane.b32.xlu0 %v1936, 69
        %v1976 = vpop.permute.xlu0 %1975
        %1977 = vrot.lane.b32.xlu0 %v1937, 69
        %v1978 = vpop.permute.xlu0 %1977
        %1979 = vrot.lane.b32.xlu0 %v1938, 69
        %v1980 = vpop.permute.xlu0 %1979
        %vm1981 = vcmask 564224
        %v1982 = vsel %vm1981, %v1974, %v1976
        %v1983 = vsel %vm1981, %v1976, %v1978
        %v1984 = vsel %vm1981, %v1978, %v1980
        %vm1985 = vcmask 31744
        %v1987 = vsel %vm1985, %v1967, 0
        %v1990 = vsel %vm1985, %v1968, 0
        %vm1992 = vcmask 1041408
        %v1994 = vsel %vm1992, %v1982, 0
        %v1997 = vsel %vm1992, %v1983, 0
        %v2000 = vsel %vm1992, %v1984, 0
        %2002 = vmatprep.subr.bf16.mxu0 %v1997
        %2003 = vmatpush1.bf16.msra.mxu0 %v1994
        %2004 = vmatprep.subr.bf16.mxu0 0
        %2005 = vmatpush1.bf16.msra.mxu0 0
        %2006 = vmatprep.subr.bf16.mxu0 0
        %2007 = vmatpush1.bf16.msra.mxu0 0
        %2008 = vmatprep.subr.bf16.mxu0 0
        %2009 = vmatpush1.bf16.msra.mxu0 0
        %2010 = vmatprep.subr.bf16.mxu0 0
        %2011 = vmatpush1.bf16.msra.mxu0 0
        %2012 = vmatprep.subr.bf16.mxu0 0
        %2013 = vmatpush1.bf16.msra.mxu0 0
        %2014 = vmatprep.subr.bf16.mxu0 0
        %2015 = vmatpush1.bf16.msra.mxu0 0
        %2016 = vmatprep.subr.bf16.mxu0 0
        %2017 = vmatpush1.bf16.msra.mxu0 0
        %2018 = vmatprep.subr.bf16.mxu0 0
        %2019 = vmatpush1.bf16.msra.mxu0 0
        %2020 = vmatprep.subr.bf16.mxu0 0
        %2021 = vmatpush1.bf16.msra.mxu0 0
        %2022 = vmatprep.subr.bf16.mxu0 0
        %2023 = vmatpush1.bf16.msra.mxu0 0
        %2024 = vmatprep.subr.bf16.mxu0 0
        %2025 = vmatpush1.bf16.msra.mxu0 0
        %2026 = vmatprep.subr.bf16.mxu0 0
        %2027 = vmatpush1.bf16.msra.mxu0 0
        %2028 = vmatprep.subr.bf16.mxu0 0
        %2029 = vmatpush1.bf16.msra.mxu0 0
        %2030 = vmatprep.subr.bf16.mxu0 0
        %2031 = vmatpush1.bf16.msra.mxu0 0
        %2032 = vmatprep.subr.bf16.mxu0 0
        %2033 = vmatpush1.bf16.msra.mxu0 0
        %2034 = vmatprep.mubr.bf16.mxu0 0
        %2035 = vmatmul.mubr.bf16.gmra.mrb[0].mxu0 %v1987
        %v2036 = vpop.f32.mrb[0].mxu0
        %v2037 = vadd.f32 %v1942, %v2036
        %v2038 = vpop.f32.mrb[0].mxu0
        %v2039 = vadd.f32 %v1942, %v2038
        %v2040 = vpop.f32.mrb[0].mxu0
        %v2041 = vadd.f32 %v1947, %v2040
        %v2042 = vpop.f32.mrb[0].mxu0
        %v2043 = vadd.f32 %v1947, %v2042
        %2044 = vmatprep.mubr.bf16.mxu0 0
        %2045 = vmatmul.mubr.bf16.gmra.mrb[0].mxu0 %v1990
        %v2046 = vpop.f32.mrb[0].mxu0
        %v2047 = vadd.f32 %v1952, %v2046
        %v2048 = vpop.f32.mrb[0].mxu0
        %v2049 = vadd.f32 %v1952, %v2048
        %v2050 = vpop.f32.mrb[0].mxu0
        %v2051 = vadd.f32 %v1957, %v2050
        %v2052 = vpop.f32.mrb[0].mxu0
        %v2053 = vadd.f32 %v1957, %v2052
        %2054 = vdwg.mxu0
        %2055 = vmatprep.subr.bf16.mxu0 0
        %2056 = vmatpush1.bf16.msra.mxu0 %v2000
        %2057 = vmatprep.subr.bf16.mxu0 0
        %2058 = vmatpush1.bf16.msra.mxu0 0
        %2059 = vmatprep.subr.bf16.mxu0 0
        %2060 = vmatpush1.bf16.msra.mxu0 0
        %2061 = vmatprep.subr.bf16.mxu0 0
        %2062 = vmatpush1.bf16.msra.mxu0 0
        %2063 = vmatprep.subr.bf16.mxu0 0
        %2064 = vmatpush1.bf16.msra.mxu0 0
        %2065 = vmatprep.subr.bf16.mxu0 0
        %2066 = vmatpush1.bf16.msra.mxu0 0
        %2067 = vmatprep.subr.bf16.mxu0 0
        %2068 = vmatpush1.bf16.msra.mxu0 0
        %2069 = vmatprep.subr.bf16.mxu0 0
        %2070 = vmatpush1.bf16.msra.mxu0 0
        %2071 = vmatprep.subr.bf16.mxu0 0
        %2072 = vmatpush1.bf16.msra.mxu0 0
        %2073 = vmatprep.subr.bf16.mxu0 0
        %2074 = vmatpush1.bf16.msra.mxu0 0
        %2075 = vmatprep.subr.bf16.mxu0 0
        %2076 = vmatpush1.bf16.msra.mxu0 0
        %2077 = vmatprep.subr.bf16.mxu0 0
        %2078 = vmatpush1.bf16.msra.mxu0 0
        %2079 = vmatprep.subr.bf16.mxu0 0
        %2080 = vmatpush1.bf16.msra.mxu0 0
        %2081 = vmatprep.subr.bf16.mxu0 0
        %2082 = vmatpush1.bf16.msra.mxu0 0
        %2083 = vmatprep.subr.bf16.mxu0 0
        %2084 = vmatpush1.bf16.msra.mxu0 0
        %2085 = vmatprep.subr.bf16.mxu0 0
        %2086 = vmatpush1.bf16.msra.mxu0 0
        %2087 = vmatprep.mubr.bf16.mxu0 0
        %2088 = vmatmul.mubr.bf16.gmra.mrb[0].mxu0 %v1987
        %v2089 = vpop.f32.mrb[0].mxu0
        %v2090 = vadd.f32 %v1942, %v2089
        %v2091 = vpop.f32.mrb[0].mxu0
        %v2092 = vpop.f32.mrb[0].mxu0
        %v2093 = vadd.f32 %v1947, %v2092
        %v2094 = vpop.f32.mrb[0].mxu0
        %2095 = vmatprep.mubr.bf16.mxu0 0
        %2096 = vmatmul.mubr.bf16.gmra.mrb[0].mxu0 %v1990
        %v2097 = vpop.f32.mrb[0].mxu0
        %v2098 = vadd.f32 %v1952, %v2097
        %v2099 = vpop.f32.mrb[0].mxu0
        %v2100 = vpop.f32.mrb[0].mxu0
        %v2101 = vadd.f32 %v1957, %v2100
        %v2102 = vpop.f32.mrb[0].mxu0
        %2103 = vdwg.mxu0
        %v2104 = vmax.f32 %v2037, 0.0
        %v2105 = vmax.f32 %v2039, 0.0
        %v2106 = vmax.f32 %v2090, 0.0
        %v2107 = vmax.f32 %v2041, 0.0
        %v2108 = vmax.f32 %v2043, 0.0
        %v2109 = vmax.f32 %v2093, 0.0
        %v2110 = vmin.f32 %v2104, 6.0
        %v2111 = vmin.f32 %v2105, 6.0
        %v2112 = vmin.f32 %v2106, 6.0
        %v2113 = vmin.f32 %v2107, 6.0
        %v2114 = vmin.f32 %v2108, 6.0
        %v2115 = vmin.f32 %v2109, 6.0
        %v2116 = vmul.f32 %v2110, %v2047
        %v2117 = vmul.f32 %v2111, %v2049
        %v2118 = vmul.f32 %v2112, %v2098
        %v2119 = vmul.f32 %v2113, %v2051
        %v2120 = vmul.f32 %v2114, %v2053
        %v2121 = vmul.f32 %v2115, %v2101
        %v2122 = vpack.c.bf16 %v2119, %v2116
        %v2123 = vpack.c.bf16 %v2120, %v2117
        %v2124 = vpack.c.bf16 %v2121, %v2118
        %2126 = vset.pattern.permute.xlu0 0
        %2127 = vperm.xlu0 %2126, %v372
        %v2128 = vpop.permute.xlu0 %2127
        %v2131 = vsel %vm1591, %v371, 0
        %2133 = vmatprep.subr.bf16.mxu0 %v2123
        %2134 = vmatpush1.bf16.msra.mxu0 %v2122
        %2135 = vmatprep.subr.bf16.mxu0 0
        %2136 = vmatpush1.bf16.msra.mxu0 0
        %2137 = vmatprep.subr.bf16.mxu0 0
        %2138 = vmatpush1.bf16.msra.mxu0 0
        %2139 = vmatprep.subr.bf16.mxu0 0
        %2140 = vmatpush1.bf16.msra.mxu0 0
        %2141 = vmatprep.subr.bf16.mxu0 0
        %2142 = vmatpush1.bf16.msra.mxu0 0
        %2143 = vmatprep.subr.bf16.mxu0 0
        %2144 = vmatpush1.bf16.msra.mxu0 0
        %2145 = vmatprep.subr.bf16.mxu0 0
        %2146 = vmatpush1.bf16.msra.mxu0 0
        %2147 = vmatprep.subr.bf16.mxu0 0
        %2148 = vmatpush1.bf16.msra.mxu0 0
        %2149 = vmatprep.subr.bf16.mxu0 0
        %2150 = vmatpush1.bf16.msra.mxu0 0
        %2151 = vmatprep.subr.bf16.mxu0 0
        %2152 = vmatpush1.bf16.msra.mxu0 0
        %2153 = vmatprep.subr.bf16.mxu0 0
        %2154 = vmatpush1.bf16.msra.mxu0 0
        %2155 = vmatprep.subr.bf16.mxu0 0
        %2156 = vmatpush1.bf16.msra.mxu0 0
        %2157 = vmatprep.subr.bf16.mxu0 0
        %2158 = vmatpush1.bf16.msra.mxu0 0
        %2159 = vmatprep.subr.bf16.mxu0 0
        %2160 = vmatpush1.bf16.msra.mxu0 0
        %2161 = vmatprep.subr.bf16.mxu0 0
        %2162 = vmatpush1.bf16.msra.mxu0 0
        %2163 = vmatprep.subr.bf16.mxu0 0
        %2164 = vmatpush1.bf16.msra.mxu0 0
        %2165 = vmatprep.mubr.bf16.mxu0 0
        %2166 = vmatmul.mubr.bf16.gmra.mrb[0].mxu0 %v2131
        %v2167 = vpop.f32.mrb[0].mxu0
        %v2168 = vadd.f32 %v2128, %v2167
        %v2169 = vpop.f32.mrb[0].mxu0
        %v2170 = vadd.f32 %v2128, %v2169
        %v2171 = vpop.f32.mrb[0].mxu0
        %v2172 = vpop.f32.mrb[0].mxu0
        %2173 = vdwg.mxu0
        %2174 = vmatprep.subr.bf16.mxu0 0
        %2175 = vmatpush1.bf16.msra.mxu0 %v2124
        %2176 = vmatprep.subr.bf16.mxu0 0
        %2177 = vmatpush1.bf16.msra.mxu0 0
        %2178 = vmatprep.subr.bf16.mxu0 0
        %2179 = vmatpush1.bf16.msra.mxu0 0
        %2180 = vmatprep.subr.bf16.mxu0 0
        %2181 = vmatpush1.bf16.msra.mxu0 0
        %2182 = vmatprep.subr.bf16.mxu0 0
        %2183 = vmatpush1.bf16.msra.mxu0 0
        %2184 = vmatprep.subr.bf16.mxu0 0
        %2185 = vmatpush1.bf16.msra.mxu0 0
        %2186 = vmatprep.subr.bf16.mxu0 0
        %2187 = vmatpush1.bf16.msra.mxu0 0
        %2188 = vmatprep.subr.bf16.mxu0 0
        %2189 = vmatpush1.bf16.msra.mxu0 0
        %2190 = vmatprep.subr.bf16.mxu0 0
        %2191 = vmatpush1.bf16.msra.mxu0 0
        %2192 = vmatprep.subr.bf16.mxu0 0
        %2193 = vmatpush1.bf16.msra.mxu0 0
        %2194 = vmatprep.subr.bf16.mxu0 0
        %2195 = vmatpush1.bf16.msra.mxu0 0
        %2196 = vmatprep.subr.bf16.mxu0 0
        %2197 = vmatpush1.bf16.msra.mxu0 0
        %2198 = vmatprep.subr.bf16.mxu0 0
        %2199 = vmatpush1.bf16.msra.mxu0 0
        %2200 = vmatprep.subr.bf16.mxu0 0
        %2201 = vmatpush1.bf16.msra.mxu0 0
        %2202 = vmatprep.subr.bf16.mxu0 0
        %2203 = vmatpush1.bf16.msra.mxu0 0
        %2204 = vmatprep.subr.bf16.mxu0 0
        %2205 = vmatpush1.bf16.msra.mxu0 0
        %2206 = vmatprep.mubr.bf16.mxu0 0
        %2207 = vmatmul.mubr.bf16.gmra.mrb[0].mxu0 %v2131
        %v2208 = vpop.f32.mrb[0].mxu0
        %v2209 = vadd.f32 %v2128, %v2208
        %v2210 = vpop.f32.mrb[0].mxu0
        %v2211 = vpop.f32.mrb[0].mxu0
        %v2212 = vpop.f32.mrb[0].mxu0
        %2213 = vdwg.mxu0
        %v2214 = vld [vmem:[%s9] sm:$0x7]
        %v2216 = vlaneseq
        %v2217 = vshrl.u32 %v2216, 7
        %v2218 = vsub.s32 0, %v2217
        %v2219 = vrot.slane %v2214, %v2218
        %v2220 = vlaneseq
        %v2221 = vshrl.u32 %v2220, 7
        %v2222 = vsub.s32 1, %v2221
        %v2223 = vrot.slane %v2214, %v2222
        %v2224 = vlaneseq
        %v2225 = vshrl.u32 %v2224, 7
        %v2226 = vsub.s32 2, %v2225
        %v2227 = vrot.slane %v2214, %v2226
        %v2231 = vmul.f32 %v2168, %v2219
        %v2232 = vmul.f32 %v2170, %v2223
        %v2233 = vmul.f32 %v2209, %v2227
        %v2236 = vcombine.low %v2231, %v2232
        %2238 = vst [vmem:[#allocation3 + $0x4] sm:$0xff] %v2236
        %vm2239 = vcmask 781312
        %2240 = vst.msk [vmem:[#allocation3 + $0xc] sm:$0xf] %vm2239, %v2233
        %v2241 = vld [vmem:[#allocation3] sm:$0xff]
        %v2242 = vld [vmem:[#allocation3 + $0x8] sm:$0xff]
        %2244 = vset.pattern.permute.xlu0 0
        %2245 = vperm.xlu0 %2244, %v361
        %v2246 = vpop.permute.xlu0 %2245
        %v2248 = vunpack.c.l.s4 839922192
        %v2249 = vunpack.c.0.s8 %v2248
        %v2250 = vlaneseq
        %v2251 = vshrl.u32 %v2250, 7
        %v2252 = vsub.s32 %v2249, %v2251
        %v2253 = vrot.slane %v2246, %v2252
        %v2255 = vmul.f32 %v2241, %v2253
        %v2256 = vmul.f32 %v2242, %v2253
        %v2257 = vadd.f32 %v2255, 0.0
        %v2258 = vadd.f32 %v2256, 0.0
        %2259 = vset.pattern.permute.xlu0 1
        %2260 = vperm.xlu0 %2259, %v361
        %v2261 = vpop.permute.xlu0 %2260
        %v2263 = vunpack.c.l.s4 839922192
        %v2264 = vunpack.c.0.s8 %v2263
        %v2265 = vlaneseq
        %v2266 = vshrl.u32 %v2265, 7
        %v2267 = vsub.s32 %v2264, %v2266
        %v2268 = vrot.slane %v2261, %v2267
        %v2270 = vmul.f32 %v2241, %v2268
        %v2271 = vmul.f32 %v2242, %v2268
        %2274 = vrot.lane.b32.xlu0 %v2270, 127
        %v2275 = vpop.permute.xlu0 %2274
        %2276 = vrot.lane.b32.xlu0 %v2271, 127
        %v2277 = vpop.permute.xlu0 %2276
        %v2278 = vrot.slane %v2275, 4
        %v2279 = vrot.slane %v2277, 4
        %v2280 = vsel %vm542, %v2278, %v2279
        %v2281 = vsel %vm544, %v2275, %v2280
        %v2282 = vsel %vm544, %v2277, %v2279
        %v2285 = vadd.f32 %v2257, %v2281
        %v2286 = vadd.f32 %v2258, %v2282
        %2287 = vset.pattern.permute.xlu0 2
        %2288 = vperm.xlu0 %2287, %v361
        %v2289 = vpop.permute.xlu0 %2288
        %v2291 = vunpack.c.l.s4 839922192
        %v2292 = vunpack.c.0.s8 %v2291
        %v2293 = vlaneseq
        %v2294 = vshrl.u32 %v2293, 7
        %v2295 = vsub.s32 %v2292, %v2294
        %v2296 = vrot.slane %v2289, %v2295
        %v2298 = vmul.f32 %v2241, %v2296
        %v2299 = vmul.f32 %v2242, %v2296
        %2302 = vrot.lane.b32.xlu0 %v2298, 126
        %v2303 = vpop.permute.xlu0 %2302
        %2304 = vrot.lane.b32.xlu0 %v2299, 126
        %v2305 = vpop.permute.xlu0 %2304
        %v2306 = vrot.slane %v2303, 4
        %v2307 = vrot.slane %v2305, 4
        %v2308 = vsel %vm542, %v2306, %v2307
        %v2309 = vsel %vm573, %v2303, %v2308
        %v2310 = vsel %vm573, %v2305, %v2307
        %v2313 = vadd.f32 %v2285, %v2309
        %v2314 = vadd.f32 %v2286, %v2310
        %2315 = vset.pattern.permute.xlu0 3
        %2316 = vperm.xlu0 %2315, %v361
        %v2317 = vpop.permute.xlu0 %2316
        %v2319 = vunpack.c.l.s4 839922192
        %v2320 = vunpack.c.0.s8 %v2319
        %v2321 = vlaneseq
        %v2322 = vshrl.u32 %v2321, 7
        %v2323 = vsub.s32 %v2320, %v2322
        %v2324 = vrot.slane %v2317, %v2323
        %v2326 = vmul.f32 %v2241, %v2324
        %v2327 = vmul.f32 %v2242, %v2324
        %2330 = vrot.lane.b32.xlu0 %v2326, 125
        %v2331 = vpop.permute.xlu0 %2330
        %2332 = vrot.lane.b32.xlu0 %v2327, 125
        %v2333 = vpop.permute.xlu0 %2332
        %v2334 = vrot.slane %v2331, 4
        %v2335 = vrot.slane %v2333, 4
        %v2336 = vsel %vm542, %v2334, %v2335
        %v2337 = vsel %vm602, %v2331, %v2336
        %v2338 = vsel %vm602, %v2333, %v2335
        %v2341 = vadd.f32 %v2313, %v2337
        %v2342 = vadd.f32 %v2314, %v2338
        %2343 = vset.pattern.permute.xlu0 4
        %2344 = vperm.xlu0 %2343, %v361
        %v2345 = vpop.permute.xlu0 %2344
        %v2347 = vunpack.c.l.s4 839922192
        %v2348 = vunpack.c.0.s8 %v2347
        %v2349 = vlaneseq
        %v2350 = vshrl.u32 %v2349, 7
        %v2351 = vsub.s32 %v2348, %v2350
        %v2352 = vrot.slane %v2345, %v2351
        %v2354 = vmul.f32 %v2241, %v2352
        %v2355 = vmul.f32 %v2242, %v2352
        %2358 = vrot.lane.b32.xlu0 %v2354, 124
        %v2359 = vpop.permute.xlu0 %2358
        %2360 = vrot.lane.b32.xlu0 %v2355, 124
        %v2361 = vpop.permute.xlu0 %2360
        %v2362 = vrot.slane %v2359, 4
        %v2363 = vrot.slane %v2361, 4
        %v2364 = vsel %vm542, %v2362, %v2363
        %v2365 = vsel %vm631, %v2359, %v2364
        %v2366 = vsel %vm631, %v2361, %v2363
        %v2369 = vadd.f32 %v2341, %v2365
        %v2370 = vadd.f32 %v2342, %v2366
        %2371 = vset.pattern.permute.xlu0 5
        %2372 = vperm.xlu0 %2371, %v361
        %v2373 = vpop.permute.xlu0 %2372
        %v2375 = vunpack.c.l.s4 839922192
        %v2376 = vunpack.c.0.s8 %v2375
        %v2377 = vlaneseq
        %v2378 = vshrl.u32 %v2377, 7
        %v2379 = vsub.s32 %v2376, %v2378
        %v2380 = vrot.slane %v2373, %v2379
        %v2382 = vmul.f32 %v2241, %v2380
        %v2383 = vmul.f32 %v2242, %v2380
        %2386 = vrot.lane.b32.xlu0 %v2382, 123
        %v2387 = vpop.permute.xlu0 %2386
        %2388 = vrot.lane.b32.xlu0 %v2383, 123
        %v2389 = vpop.permute.xlu0 %2388
        %v2390 = vrot.slane %v2387, 4
        %v2391 = vrot.slane %v2389, 4
        %v2392 = vsel %vm542, %v2390, %v2391
        %v2393 = vsel %vm660, %v2387, %v2392
        %v2394 = vsel %vm660, %v2389, %v2391
        %v2397 = vadd.f32 %v2369, %v2393
        %v2398 = vadd.f32 %v2370, %v2394
        %2399 = vset.pattern.permute.xlu0 6
        %2400 = vperm.xlu0 %2399, %v361
        %v2401 = vpop.permute.xlu0 %2400
        %v2403 = vunpack.c.l.s4 839922192
        %v2404 = vunpack.c.0.s8 %v2403
        %v2405 = vlaneseq
        %v2406 = vshrl.u32 %v2405, 7
        %v2407 = vsub.s32 %v2404, %v2406
        %v2408 = vrot.slane %v2401, %v2407
        %v2410 = vmul.f32 %v2241, %v2408
        %v2411 = vmul.f32 %v2242, %v2408
        %2414 = vrot.lane.b32.xlu0 %v2410, 122
        %v2415 = vpop.permute.xlu0 %2414
        %2416 = vrot.lane.b32.xlu0 %v2411, 122
        %v2417 = vpop.permute.xlu0 %2416
        %v2418 = vrot.slane %v2415, 4
        %v2419 = vrot.slane %v2417, 4
        %v2420 = vsel %vm542, %v2418, %v2419
        %v2421 = vsel %vm689, %v2415, %v2420
        %v2422 = vsel %vm689, %v2417, %v2419
        %v2425 = vadd.f32 %v2397, %v2421
        %v2426 = vadd.f32 %v2398, %v2422
        %2427 = vset.pattern.permute.xlu0 7
        %2428 = vperm.xlu0 %2427, %v361
        %v2429 = vpop.permute.xlu0 %2428
        %v2431 = vunpack.c.l.s4 839922192
        %v2432 = vunpack.c.0.s8 %v2431
        %v2433 = vlaneseq
        %v2434 = vshrl.u32 %v2433, 7
        %v2435 = vsub.s32 %v2432, %v2434
        %v2436 = vrot.slane %v2429, %v2435
        %v2438 = vmul.f32 %v2241, %v2436
        %v2439 = vmul.f32 %v2242, %v2436
        %2442 = vrot.lane.b32.xlu0 %v2438, 106
        %v2443 = vpop.permute.xlu0 %2442
        %2444 = vrot.lane.b32.xlu0 %v2439, 106
        %v2445 = vpop.permute.xlu0 %2444
        %v2446 = vrot.slane %v2443, 4
        %v2447 = vrot.slane %v2445, 4
        %v2448 = vsel %vm542, %v2446, %v2447
        %v2449 = vsel %vm718, %v2443, %v2448
        %v2450 = vsel %vm718, %v2445, %v2447
        %v2453 = vadd.f32 %v2425, %v2449
        %v2454 = vadd.f32 %v2426, %v2450
        %2455 = vset.pattern.permute.xlu0 8
        %2456 = vperm.xlu0 %2455, %v361
        %v2457 = vpop.permute.xlu0 %2456
        %v2459 = vunpack.c.l.s4 839922192
        %v2460 = vunpack.c.0.s8 %v2459
        %v2461 = vlaneseq
        %v2462 = vshrl.u32 %v2461, 7
        %v2463 = vsub.s32 %v2460, %v2462
        %v2464 = vrot.slane %v2457, %v2463
        %v2466 = vmul.f32 %v2241, %v2464
        %v2467 = vmul.f32 %v2242, %v2464
        %2470 = vrot.lane.b32.xlu0 %v2466, 105
        %v2471 = vpop.permute.xlu0 %2470
        %2472 = vrot.lane.b32.xlu0 %v2467, 105
        %v2473 = vpop.permute.xlu0 %2472
        %v2474 = vrot.slane %v2471, 4
        %v2475 = vrot.slane %v2473, 4
        %v2476 = vsel %vm542, %v2474, %v2475
        %v2477 = vsel %vm747, %v2471, %v2476
        %v2478 = vsel %vm747, %v2473, %v2475
        %v2481 = vadd.f32 %v2453, %v2477
        %v2482 = vadd.f32 %v2454, %v2478
        %2483 = vset.pattern.permute.xlu0 9
        %2484 = vperm.xlu0 %2483, %v361
        %v2485 = vpop.permute.xlu0 %2484
        %v2487 = vunpack.c.l.s4 839922192
        %v2488 = vunpack.c.0.s8 %v2487
        %v2489 = vlaneseq
        %v2490 = vshrl.u32 %v2489, 7
        %v2491 = vsub.s32 %v2488, %v2490
        %v2492 = vrot.slane %v2485, %v2491
        %v2494 = vmul.f32 %v2241, %v2492
        %v2495 = vmul.f32 %v2242, %v2492
        %2498 = vrot.lane.b32.xlu0 %v2494, 104
        %v2499 = vpop.permute.xlu0 %2498
        %2500 = vrot.lane.b32.xlu0 %v2495, 104
        %v2501 = vpop.permute.xlu0 %2500
        %v2502 = vrot.slane %v2499, 4
        %v2503 = vrot.slane %v2501, 4
        %v2504 = vsel %vm542, %v2502, %v2503
        %v2505 = vsel %vm776, %v2499, %v2504
        %v2506 = vsel %vm776, %v2501, %v2503
        %v2509 = vadd.f32 %v2481, %v2505
        %v2510 = vadd.f32 %v2482, %v2506
        %2511 = vset.pattern.permute.xlu0 10
        %2512 = vperm.xlu0 %2511, %v361
        %v2513 = vpop.permute.xlu0 %2512
        %v2515 = vunpack.c.l.s4 839922192
        %v2516 = vunpack.c.0.s8 %v2515
        %v2517 = vlaneseq
        %v2518 = vshrl.u32 %v2517, 7
        %v2519 = vsub.s32 %v2516, %v2518
        %v2520 = vrot.slane %v2513, %v2519
        %v2522 = vmul.f32 %v2241, %v2520
        %v2523 = vmul.f32 %v2242, %v2520
        %2526 = vrot.lane.b32.xlu0 %v2522, 103
        %v2527 = vpop.permute.xlu0 %2526
        %2528 = vrot.lane.b32.xlu0 %v2523, 103
        %v2529 = vpop.permute.xlu0 %2528
        %v2530 = vrot.slane %v2527, 4
        %v2531 = vrot.slane %v2529, 4
        %v2532 = vsel %vm542, %v2530, %v2531
        %v2533 = vsel %vm805, %v2527, %v2532
        %v2534 = vsel %vm805, %v2529, %v2531
        %v2537 = vadd.f32 %v2509, %v2533
        %v2538 = vadd.f32 %v2510, %v2534
        %2539 = vset.pattern.permute.xlu0 11
        %2540 = vperm.xlu0 %2539, %v361
        %v2541 = vpop.permute.xlu0 %2540
        %v2543 = vunpack.c.l.s4 839922192
        %v2544 = vunpack.c.0.s8 %v2543
        %v2545 = vlaneseq
        %v2546 = vshrl.u32 %v2545, 7
        %v2547 = vsub.s32 %v2544, %v2546
        %v2548 = vrot.slane %v2541, %v2547
        %v2550 = vmul.f32 %v2241, %v2548
        %v2551 = vmul.f32 %v2242, %v2548
        %2554 = vrot.lane.b32.xlu0 %v2550, 102
        %v2555 = vpop.permute.xlu0 %2554
        %2556 = vrot.lane.b32.xlu0 %v2551, 102
        %v2557 = vpop.permute.xlu0 %2556
        %v2558 = vrot.slane %v2555, 4
        %v2559 = vrot.slane %v2557, 4
        %v2560 = vsel %vm542, %v2558, %v2559
        %v2561 = vsel %vm834, %v2555, %v2560
        %v2562 = vsel %vm834, %v2557, %v2559
        %v2565 = vadd.f32 %v2537, %v2561
        %v2566 = vadd.f32 %v2538, %v2562
        %2567 = vset.pattern.permute.xlu0 12
        %2568 = vperm.xlu0 %2567, %v361
        %v2569 = vpop.permute.xlu0 %2568
        %v2571 = vunpack.c.l.s4 839922192
        %v2572 = vunpack.c.0.s8 %v2571
        %v2573 = vlaneseq
        %v2574 = vshrl.u32 %v2573, 7
        %v2575 = vsub.s32 %v2572, %v2574
        %v2576 = vrot.slane %v2569, %v2575
        %v2578 = vmul.f32 %v2241, %v2576
        %v2579 = vmul.f32 %v2242, %v2576
        %2582 = vrot.lane.b32.xlu0 %v2578, 101
        %v2583 = vpop.permute.xlu0 %2582
        %2584 = vrot.lane.b32.xlu0 %v2579, 101
        %v2585 = vpop.permute.xlu0 %2584
        %v2586 = vrot.slane %v2583, 4
        %v2587 = vrot.slane %v2585, 4
        %v2588 = vsel %vm542, %v2586, %v2587
        %v2589 = vsel %vm863, %v2583, %v2588
        %v2590 = vsel %vm863, %v2585, %v2587
        %v2593 = vadd.f32 %v2565, %v2589
        %v2594 = vadd.f32 %v2566, %v2590
        %2595 = vset.pattern.permute.xlu0 13
        %2596 = vperm.xlu0 %2595, %v361
        %v2597 = vpop.permute.xlu0 %2596
        %v2599 = vunpack.c.l.s4 839922192
        %v2600 = vunpack.c.0.s8 %v2599
        %v2601 = vlaneseq
        %v2602 = vshrl.u32 %v2601, 7
        %v2603 = vsub.s32 %v2600, %v2602
        %v2604 = vrot.slane %v2597, %v2603
        %v2606 = vmul.f32 %v2241, %v2604
        %v2607 = vmul.f32 %v2242, %v2604
        %2610 = vrot.lane.b32.xlu0 %v2606, 100
        %v2611 = vpop.permute.xlu0 %2610
        %2612 = vrot.lane.b32.xlu0 %v2607, 100
        %v2613 = vpop.permute.xlu0 %2612
        %v2614 = vrot.slane %v2611, 4
        %v2615 = vrot.slane %v2613, 4
        %v2616 = vsel %vm542, %v2614, %v2615
        %v2617 = vsel %vm892, %v2611, %v2616
        %v2618 = vsel %vm892, %v2613, %v2615
        %v2621 = vadd.f32 %v2593, %v2617
        %v2622 = vadd.f32 %v2594, %v2618
        %2623 = vset.pattern.permute.xlu0 14
        %2624 = vperm.xlu0 %2623, %v361
        %v2625 = vpop.permute.xlu0 %2624
        %v2627 = vunpack.c.l.s4 839922192
        %v2628 = vunpack.c.0.s8 %v2627
        %v2629 = vlaneseq
        %v2630 = vshrl.u32 %v2629, 7
        %v2631 = vsub.s32 %v2628, %v2630
        %v2632 = vrot.slane %v2625, %v2631
        %v2634 = vmul.f32 %v2241, %v2632
        %v2635 = vmul.f32 %v2242, %v2632
        %2638 = vrot.lane.b32.xlu0 %v2634, 84
        %v2639 = vpop.permute.xlu0 %2638
        %2640 = vrot.lane.b32.xlu0 %v2635, 84
        %v2641 = vpop.permute.xlu0 %2640
        %v2642 = vrot.slane %v2639, 4
        %v2643 = vrot.slane %v2641, 4
        %v2644 = vsel %vm542, %v2642, %v2643
        %v2645 = vsel %vm921, %v2639, %v2644
        %v2646 = vsel %vm921, %v2641, %v2643
        %v2649 = vadd.f32 %v2621, %v2645
        %v2650 = vadd.f32 %v2622, %v2646
        %2651 = vset.pattern.permute.xlu0 15
        %2652 = vperm.xlu0 %2651, %v361
        %v2653 = vpop.permute.xlu0 %2652
        %v2655 = vunpack.c.l.s4 839922192
        %v2656 = vunpack.c.0.s8 %v2655
        %v2657 = vlaneseq
        %v2658 = vshrl.u32 %v2657, 7
        %v2659 = vsub.s32 %v2656, %v2658
        %v2660 = vrot.slane %v2653, %v2659
        %v2662 = vmul.f32 %v2241, %v2660
        %v2663 = vmul.f32 %v2242, %v2660
        %2666 = vrot.lane.b32.xlu0 %v2662, 83
        %v2667 = vpop.permute.xlu0 %2666
        %2668 = vrot.lane.b32.xlu0 %v2663, 83
        %v2669 = vpop.permute.xlu0 %2668
        %v2670 = vrot.slane %v2667, 4
        %v2671 = vrot.slane %v2669, 4
        %v2672 = vsel %vm542, %v2670, %v2671
        %v2673 = vsel %vm950, %v2667, %v2672
        %v2674 = vsel %vm950, %v2669, %v2671
        %v2677 = vadd.f32 %v2649, %v2673
        %v2678 = vadd.f32 %v2650, %v2674
        %2679 = vset.pattern.permute.xlu0 16
        %2680 = vperm.xlu0 %2679, %v361
        %v2681 = vpop.permute.xlu0 %2680
        %v2683 = vunpack.c.l.s4 839922192
        %v2684 = vunpack.c.0.s8 %v2683
        %v2685 = vlaneseq
        %v2686 = vshrl.u32 %v2685, 7
        %v2687 = vsub.s32 %v2684, %v2686
        %v2688 = vrot.slane %v2681, %v2687
        %v2690 = vmul.f32 %v2241, %v2688
        %v2691 = vmul.f32 %v2242, %v2688
        %2694 = vrot.lane.b32.xlu0 %v2690, 82
        %v2695 = vpop.permute.xlu0 %2694
        %2696 = vrot.lane.b32.xlu0 %v2691, 82
        %v2697 = vpop.permute.xlu0 %2696
        %v2698 = vrot.slane %v2695, 4
        %v2699 = vrot.slane %v2697, 4
        %v2700 = vsel %vm542, %v2698, %v2699
        %v2701 = vsel %vm979, %v2695, %v2700
        %v2702 = vsel %vm979, %v2697, %v2699
        %v2705 = vadd.f32 %v2677, %v2701
        %v2706 = vadd.f32 %v2678, %v2702
        %2707 = vset.pattern.permute.xlu0 17
        %2708 = vperm.xlu0 %2707, %v361
        %v2709 = vpop.permute.xlu0 %2708
        %v2711 = vunpack.c.l.s4 839922192
        %v2712 = vunpack.c.0.s8 %v2711
        %v2713 = vlaneseq
        %v2714 = vshrl.u32 %v2713, 7
        %v2715 = vsub.s32 %v2712, %v2714
        %v2716 = vrot.slane %v2709, %v2715
        %v2718 = vmul.f32 %v2241, %v2716
        %v2719 = vmul.f32 %v2242, %v2716
        %2722 = vrot.lane.b32.xlu0 %v2718, 81
        %v2723 = vpop.permute.xlu0 %2722
        %2724 = vrot.lane.b32.xlu0 %v2719, 81
        %v2725 = vpop.permute.xlu0 %2724
        %v2726 = vrot.slane %v2723, 4
        %v2727 = vrot.slane %v2725, 4
        %v2728 = vsel %vm542, %v2726, %v2727
        %v2729 = vsel %vm1008, %v2723, %v2728
        %v2730 = vsel %vm1008, %v2725, %v2727
        %v2733 = vadd.f32 %v2705, %v2729
        %v2734 = vadd.f32 %v2706, %v2730
        %2735 = vset.pattern.permute.xlu0 18
        %2736 = vperm.xlu0 %2735, %v361
        %v2737 = vpop.permute.xlu0 %2736
        %v2739 = vunpack.c.l.s4 839922192
        %v2740 = vunpack.c.0.s8 %v2739
        %v2741 = vlaneseq
        %v2742 = vshrl.u32 %v2741, 7
        %v2743 = vsub.s32 %v2740, %v2742
        %v2744 = vrot.slane %v2737, %v2743
        %v2746 = vmul.f32 %v2241, %v2744
        %v2747 = vmul.f32 %v2242, %v2744
        %2750 = vrot.lane.b32.xlu0 %v2746, 80
        %v2751 = vpop.permute.xlu0 %2750
        %2752 = vrot.lane.b32.xlu0 %v2747, 80
        %v2753 = vpop.permute.xlu0 %2752
        %v2754 = vrot.slane %v2751, 4
        %v2755 = vrot.slane %v2753, 4
        %v2756 = vsel %vm542, %v2754, %v2755
        %v2757 = vsel %vm1037, %v2751, %v2756
        %v2758 = vsel %vm1037, %v2753, %v2755
        %v2761 = vadd.f32 %v2733, %v2757
        %v2762 = vadd.f32 %v2734, %v2758
        %2763 = vset.pattern.permute.xlu0 19
        %2764 = vperm.xlu0 %2763, %v361
        %v2765 = vpop.permute.xlu0 %2764
        %v2767 = vunpack.c.l.s4 839922192
        %v2768 = vunpack.c.0.s8 %v2767
        %v2769 = vlaneseq
        %v2770 = vshrl.u32 %v2769, 7
        %v2771 = vsub.s32 %v2768, %v2770
        %v2772 = vrot.slane %v2765, %v2771
        %v2774 = vmul.f32 %v2241, %v2772
        %v2775 = vmul.f32 %v2242, %v2772
        %2778 = vrot.lane.b32.xlu0 %v2774, 79
        %v2779 = vpop.permute.xlu0 %2778
        %2780 = vrot.lane.b32.xlu0 %v2775, 79
        %v2781 = vpop.permute.xlu0 %2780
        %v2782 = vrot.slane %v2779, 4
        %v2783 = vrot.slane %v2781, 4
        %v2784 = vsel %vm542, %v2782, %v2783
        %v2785 = vsel %vm1066, %v2779, %v2784
        %v2786 = vsel %vm1066, %v2781, %v2783
        %v2789 = vadd.f32 %v2761, %v2785
        %v2790 = vadd.f32 %v2762, %v2786
        %2791 = vset.pattern.permute.xlu0 20
        %2792 = vperm.xlu0 %2791, %v361
        %v2793 = vpop.permute.xlu0 %2792
        %v2795 = vunpack.c.l.s4 839922192
        %v2796 = vunpack.c.0.s8 %v2795
        %v2797 = vlaneseq
        %v2798 = vshrl.u32 %v2797, 7
        %v2799 = vsub.s32 %v2796, %v2798
        %v2800 = vrot.slane %v2793, %v2799
        %v2802 = vmul.f32 %v2241, %v2800
        %v2803 = vmul.f32 %v2242, %v2800
        %2806 = vrot.lane.b32.xlu0 %v2802, 78
        %v2807 = vpop.permute.xlu0 %2806
        %2808 = vrot.lane.b32.xlu0 %v2803, 78
        %v2809 = vpop.permute.xlu0 %2808
        %v2810 = vrot.slane %v2807, 4
        %v2811 = vrot.slane %v2809, 4
        %v2812 = vsel %vm542, %v2810, %v2811
        %v2813 = vsel %vm1095, %v2807, %v2812
        %v2814 = vsel %vm1095, %v2809, %v2811
        %v2817 = vadd.f32 %v2789, %v2813
        %v2818 = vadd.f32 %v2790, %v2814
        %2819 = vset.pattern.permute.xlu0 21
        %2820 = vperm.xlu0 %2819, %v361
        %v2821 = vpop.permute.xlu0 %2820
        %v2823 = vunpack.c.l.s4 839922192
        %v2824 = vunpack.c.0.s8 %v2823
        %v2825 = vlaneseq
        %v2826 = vshrl.u32 %v2825, 7
        %v2827 = vsub.s32 %v2824, %v2826
        %v2828 = vrot.slane %v2821, %v2827
        %v2830 = vmul.f32 %v2241, %v2828
        %v2831 = vmul.f32 %v2242, %v2828
        %2834 = vrot.lane.b32.xlu0 %v2830, 62
        %v2835 = vpop.permute.xlu0 %2834
        %2836 = vrot.lane.b32.xlu0 %v2831, 62
        %v2837 = vpop.permute.xlu0 %2836
        %v2838 = vrot.slane %v2835, 4
        %v2839 = vrot.slane %v2837, 4
        %v2840 = vsel %vm542, %v2838, %v2839
        %v2841 = vsel %vm1124, %v2835, %v2840
        %v2842 = vsel %vm1124, %v2837, %v2839
        %v2845 = vadd.f32 %v2817, %v2841
        %v2846 = vadd.f32 %v2818, %v2842
        %2847 = vset.pattern.permute.xlu0 22
        %2848 = vperm.xlu0 %2847, %v361
        %v2849 = vpop.permute.xlu0 %2848
        %v2851 = vunpack.c.l.s4 839922192
        %v2852 = vunpack.c.0.s8 %v2851
        %v2853 = vlaneseq
        %v2854 = vshrl.u32 %v2853, 7
        %v2855 = vsub.s32 %v2852, %v2854
        %v2856 = vrot.slane %v2849, %v2855
        %v2858 = vmul.f32 %v2241, %v2856
        %v2859 = vmul.f32 %v2242, %v2856
        %2862 = vrot.lane.b32.xlu0 %v2858, 61
        %v2863 = vpop.permute.xlu0 %2862
        %2864 = vrot.lane.b32.xlu0 %v2859, 61
        %v2865 = vpop.permute.xlu0 %2864
        %v2866 = vrot.slane %v2863, 4
        %v2867 = vrot.slane %v2865, 4
        %v2868 = vsel %vm542, %v2866, %v2867
        %v2869 = vsel %vm1153, %v2863, %v2868
        %v2870 = vsel %vm1153, %v2865, %v2867
        %v2873 = vadd.f32 %v2845, %v2869
        %v2874 = vadd.f32 %v2846, %v2870
        %2875 = vset.pattern.permute.xlu0 23
        %2876 = vperm.xlu0 %2875, %v361
        %v2877 = vpop.permute.xlu0 %2876
        %v2879 = vunpack.c.l.s4 839922192
        %v2880 = vunpack.c.0.s8 %v2879
        %v2881 = vlaneseq
        %v2882 = vshrl.u32 %v2881, 7
        %v2883 = vsub.s32 %v2880, %v2882
        %v2884 = vrot.slane %v2877, %v2883
        %v2886 = vmul.f32 %v2241, %v2884
        %v2887 = vmul.f32 %v2242, %v2884
        %2890 = vrot.lane.b32.xlu0 %v2886, 60
        %v2891 = vpop.permute.xlu0 %2890
        %2892 = vrot.lane.b32.xlu0 %v2887, 60
        %v2893 = vpop.permute.xlu0 %2892
        %v2894 = vrot.slane %v2891, 4
        %v2895 = vrot.slane %v2893, 4
        %v2896 = vsel %vm542, %v2894, %v2895
        %v2897 = vsel %vm1182, %v2891, %v2896
        %v2898 = vsel %vm1182, %v2893, %v2895
        %v2901 = vadd.f32 %v2873, %v2897
        %v2902 = vadd.f32 %v2874, %v2898
        %v2903 = vld [vmem:[#allocation3 + $0x4] sm:$0xff]
        %v2904 = vld [vmem:[#allocation3 + $0xc] sm:$0xf]
        %2905 = vset.pattern.permute.xlu0 24
        %2906 = vperm.xlu0 %2905, %v361
        %v2907 = vpop.permute.xlu0 %2906
        %v2909 = vunpack.c.l.s4 839922192
        %v2910 = vunpack.c.0.s8 %v2909
        %v2911 = vlaneseq
        %v2912 = vshrl.u32 %v2911, 7
        %v2913 = vsub.s32 %v2910, %v2912
        %v2914 = vrot.slane %v2907, %v2913
        %v2916 = vmul.f32 %v2903, %v2914
        %v2917 = vmul.f32 %v2904, %v2914
        %2920 = vrot.lane.b32.xlu0 %v2916, 59
        %v2921 = vpop.permute.xlu0 %2920
        %2922 = vrot.lane.b32.xlu0 %v2917, 59
        %v2923 = vpop.permute.xlu0 %2922
        %v2924 = vrot.slane %v2921, 4
        %v2925 = vrot.slane %v2923, 4
        %v2926 = vsel %vm1212, %v2924, %v2921
        %v2927 = vsel %vm542, %v2924, %v2925
        %v2928 = vsel %vm1212, %v2927, %v2923
        %v2931 = vadd.f32 %v2901, %v2926
        %v2932 = vadd.f32 %v2902, %v2928
        %2933 = vset.pattern.permute.xlu0 25
        %2934 = vperm.xlu0 %2933, %v361
        %v2935 = vpop.permute.xlu0 %2934
        %v2937 = vunpack.c.l.s4 839922192
        %v2938 = vunpack.c.0.s8 %v2937
        %v2939 = vlaneseq
        %v2940 = vshrl.u32 %v2939, 7
        %v2941 = vsub.s32 %v2938, %v2940
        %v2942 = vrot.slane %v2935, %v2941
        %v2944 = vmul.f32 %v2903, %v2942
        %v2945 = vmul.f32 %v2904, %v2942
        %2948 = vrot.lane.b32.xlu0 %v2944, 58
        %v2949 = vpop.permute.xlu0 %2948
        %2950 = vrot.lane.b32.xlu0 %v2945, 58
        %v2951 = vpop.permute.xlu0 %2950
        %v2952 = vrot.slane %v2949, 4
        %v2953 = vrot.slane %v2951, 4
        %v2954 = vsel %vm1241, %v2952, %v2949
        %v2955 = vsel %vm542, %v2952, %v2953
        %v2956 = vsel %vm1241, %v2955, %v2951
        %v2959 = vadd.f32 %v2931, %v2954
        %v2960 = vadd.f32 %v2932, %v2956
        %2961 = vset.pattern.permute.xlu0 26
        %2962 = vperm.xlu0 %2961, %v361
        %v2963 = vpop.permute.xlu0 %2962
        %v2965 = vunpack.c.l.s4 839922192
        %v2966 = vunpack.c.0.s8 %v2965
        %v2967 = vlaneseq
        %v2968 = vshrl.u32 %v2967, 7
        %v2969 = vsub.s32 %v2966, %v2968
        %v2970 = vrot.slane %v2963, %v2969
        %v2972 = vmul.f32 %v2903, %v2970
        %v2973 = vmul.f32 %v2904, %v2970
        %2976 = vrot.lane.b32.xlu0 %v2972, 57
        %v2977 = vpop.permute.xlu0 %2976
        %2978 = vrot.lane.b32.xlu0 %v2973, 57
        %v2979 = vpop.permute.xlu0 %2978
        %v2980 = vrot.slane %v2977, 4
        %v2981 = vrot.slane %v2979, 4
        %v2982 = vsel %vm1270, %v2980, %v2977
        %v2983 = vsel %vm542, %v2980, %v2981
        %v2984 = vsel %vm1270, %v2983, %v2979
        %v2987 = vadd.f32 %v2959, %v2982
        %v2988 = vadd.f32 %v2960, %v2984
        %2989 = vset.pattern.permute.xlu0 27
        %2990 = vperm.xlu0 %2989, %v361
        %v2991 = vpop.permute.xlu0 %2990
        %v2993 = vunpack.c.l.s4 839922192
        %v2994 = vunpack.c.0.s8 %v2993
        %v2995 = vlaneseq
        %v2996 = vshrl.u32 %v2995, 7
        %v2997 = vsub.s32 %v2994, %v2996
        %v2998 = vrot.slane %v2991, %v2997
        %v3000 = vmul.f32 %v2903, %v2998
        %v3001 = vmul.f32 %v2904, %v2998
        %3004 = vrot.lane.b32.xlu0 %v3000, 56
        %v3005 = vpop.permute.xlu0 %3004
        %3006 = vrot.lane.b32.xlu0 %v3001, 56
        %v3007 = vpop.permute.xlu0 %3006
        %v3008 = vrot.slane %v3005, 4
        %v3009 = vrot.slane %v3007, 4
        %v3010 = vsel %vm1299, %v3008, %v3005
        %v3011 = vsel %vm542, %v3008, %v3009
        %v3012 = vsel %vm1299, %v3011, %v3007
        %v3015 = vadd.f32 %v2987, %v3010
        %v3016 = vadd.f32 %v2988, %v3012
        %3017 = vset.pattern.permute.xlu0 28
        %3018 = vperm.xlu0 %3017, %v361
        %v3019 = vpop.permute.xlu0 %3018
        %v3021 = vunpack.c.l.s4 839922192
        %v3022 = vunpack.c.0.s8 %v3021
        %v3023 = vlaneseq
        %v3024 = vshrl.u32 %v3023, 7
        %v3025 = vsub.s32 %v3022, %v3024
        %v3026 = vrot.slane %v3019, %v3025
        %v3028 = vmul.f32 %v2903, %v3026
        %v3029 = vmul.f32 %v2904, %v3026
        %3032 = vrot.lane.b32.xlu0 %v3028, 40
        %v3033 = vpop.permute.xlu0 %3032
        %3034 = vrot.lane.b32.xlu0 %v3029, 40
        %v3035 = vpop.permute.xlu0 %3034
        %v3036 = vrot.slane %v3033, 4
        %v3037 = vrot.slane %v3035, 4
        %v3038 = vsel %vm1328, %v3036, %v3033
        %v3039 = vsel %vm542, %v3036, %v3037
        %v3040 = vsel %vm1328, %v3039, %v3035
        %v3043 = vadd.f32 %v3015, %v3038
        %v3044 = vadd.f32 %v3016, %v3040
        %3045 = vset.pattern.permute.xlu0 29
        %3046 = vperm.xlu0 %3045, %v361
        %v3047 = vpop.permute.xlu0 %3046
        %v3049 = vunpack.c.l.s4 839922192
        %v3050 = vunpack.c.0.s8 %v3049
        %v3051 = vlaneseq
        %v3052 = vshrl.u32 %v3051, 7
        %v3053 = vsub.s32 %v3050, %v3052
        %v3054 = vrot.slane %v3047, %v3053
        %v3056 = vmul.f32 %v2903, %v3054
        %v3057 = vmul.f32 %v2904, %v3054
        %3060 = vrot.lane.b32.xlu0 %v3056, 39
        %v3061 = vpop.permute.xlu0 %3060
        %3062 = vrot.lane.b32.xlu0 %v3057, 39
        %v3063 = vpop.permute.xlu0 %3062
        %v3064 = vrot.slane %v3061, 4
        %v3065 = vrot.slane %v3063, 4
        %v3066 = vsel %vm1357, %v3064, %v3061
        %v3067 = vsel %vm542, %v3064, %v3065
        %v3068 = vsel %vm1357, %v3067, %v3063
        %v3071 = vadd.f32 %v3043, %v3066
        %v3072 = vadd.f32 %v3044, %v3068
        %3073 = vset.pattern.permute.xlu0 30
        %3074 = vperm.xlu0 %3073, %v361
        %v3075 = vpop.permute.xlu0 %3074
        %v3077 = vunpack.c.l.s4 839922192
        %v3078 = vunpack.c.0.s8 %v3077
        %v3079 = vlaneseq
        %v3080 = vshrl.u32 %v3079, 7
        %v3081 = vsub.s32 %v3078, %v3080
        %v3082 = vrot.slane %v3075, %v3081
        %v3084 = vmul.f32 %v2903, %v3082
        %v3085 = vmul.f32 %v2904, %v3082
        %3088 = vrot.lane.b32.xlu0 %v3084, 38
        %v3089 = vpop.permute.xlu0 %3088
        %3090 = vrot.lane.b32.xlu0 %v3085, 38
        %v3091 = vpop.permute.xlu0 %3090
        %v3092 = vrot.slane %v3089, 4
        %v3093 = vrot.slane %v3091, 4
        %v3094 = vsel %vm1386, %v3092, %v3089
        %v3095 = vsel %vm542, %v3092, %v3093
        %v3096 = vsel %vm1386, %v3095, %v3091
        %v3099 = vadd.f32 %v3071, %v3094
        %v3100 = vadd.f32 %v3072, %v3096
        %3101 = vset.pattern.permute.xlu0 31
        %3102 = vperm.xlu0 %3101, %v361
        %v3103 = vpop.permute.xlu0 %3102
        %v3105 = vunpack.c.l.s4 839922192
        %v3106 = vunpack.c.0.s8 %v3105
        %v3107 = vlaneseq
        %v3108 = vshrl.u32 %v3107, 7
        %v3109 = vsub.s32 %v3106, %v3108
        %v3110 = vrot.slane %v3103, %v3109
        %v3112 = vmul.f32 %v2903, %v3110
        %v3113 = vmul.f32 %v2904, %v3110
        %3116 = vrot.lane.b32.xlu0 %v3112, 37
        %v3117 = vpop.permute.xlu0 %3116
        %3118 = vrot.lane.b32.xlu0 %v3113, 37
        %v3119 = vpop.permute.xlu0 %3118
        %v3120 = vrot.slane %v3117, 4
        %v3121 = vrot.slane %v3119, 4
        %v3122 = vsel %vm1415, %v3120, %v3117
        %v3123 = vsel %vm542, %v3120, %v3121
        %v3124 = vsel %vm1415, %v3123, %v3119
        %v3127 = vadd.f32 %v3099, %v3122
        %v3128 = vadd.f32 %v3100, %v3124
        %3129 = vset.pattern.permute.xlu0 32
        %3130 = vperm.xlu0 %3129, %v361
        %v3131 = vpop.permute.xlu0 %3130
        %v3133 = vunpack.c.l.s4 839922192
        %v3134 = vunpack.c.0.s8 %v3133
        %v3135 = vlaneseq
        %v3136 = vshrl.u32 %v3135, 7
        %v3137 = vsub.s32 %v3134, %v3136
        %v3138 = vrot.slane %v3131, %v3137
        %v3140 = vmul.f32 %v2903, %v3138
        %v3141 = vmul.f32 %v2904, %v3138
        %3144 = vrot.lane.b32.xlu0 %v3140, 36
        %v3145 = vpop.permute.xlu0 %3144
        %3146 = vrot.lane.b32.xlu0 %v3141, 36
        %v3147 = vpop.permute.xlu0 %3146
        %v3148 = vrot.slane %v3145, 4
        %v3149 = vrot.slane %v3147, 4
        %v3150 = vsel %vm1444, %v3148, %v3145
        %v3151 = vsel %vm542, %v3148, %v3149
        %v3152 = vsel %vm1444, %v3151, %v3147
        %v3155 = vadd.f32 %v3127, %v3150
        %v3156 = vadd.f32 %v3128, %v3152
        %3157 = vset.pattern.permute.xlu0 33
        %3158 = vperm.xlu0 %3157, %v361
        %v3159 = vpop.permute.xlu0 %3158
        %v3161 = vunpack.c.l.s4 839922192
        %v3162 = vunpack.c.0.s8 %v3161
        %v3163 = vlaneseq
        %v3164 = vshrl.u32 %v3163, 7
        %v3165 = vsub.s32 %v3162, %v3164
        %v3166 = vrot.slane %v3159, %v3165
        %v3168 = vmul.f32 %v2903, %v3166
        %v3169 = vmul.f32 %v2904, %v3166
        %3172 = vrot.lane.b32.xlu0 %v3168, 35
        %v3173 = vpop.permute.xlu0 %3172
        %3174 = vrot.lane.b32.xlu0 %v3169, 35
        %v3175 = vpop.permute.xlu0 %3174
        %v3176 = vrot.slane %v3173, 4
        %v3177 = vrot.slane %v3175, 4
        %v3178 = vsel %vm1473, %v3176, %v3173
        %v3179 = vsel %vm542, %v3176, %v3177
        %v3180 = vsel %vm1473, %v3179, %v3175
        %v3183 = vadd.f32 %v3155, %v3178
        %v3184 = vadd.f32 %v3156, %v3180
        %3185 = vset.pattern.permute.xlu0 34
        %3186 = vperm.xlu0 %3185, %v361
        %v3187 = vpop.permute.xlu0 %3186
        %v3189 = vunpack.c.l.s4 839922192
        %v3190 = vunpack.c.0.s8 %v3189
        %v3191 = vlaneseq
        %v3192 = vshrl.u32 %v3191, 7
        %v3193 = vsub.s32 %v3190, %v3192
        %v3194 = vrot.slane %v3187, %v3193
        %v3196 = vmul.f32 %v2903, %v3194
        %v3197 = vmul.f32 %v2904, %v3194
        %3200 = vrot.lane.b32.xlu0 %v3196, 34
        %v3201 = vpop.permute.xlu0 %3200
        %3202 = vrot.lane.b32.xlu0 %v3197, 34
        %v3203 = vpop.permute.xlu0 %3202
        %v3204 = vrot.slane %v3201, 4
        %v3205 = vrot.slane %v3203, 4
        %v3206 = vsel %vm1502, %v3204, %v3201
        %v3207 = vsel %vm542, %v3204, %v3205
        %v3208 = vsel %vm1502, %v3207, %v3203
        %v3211 = vadd.f32 %v3183, %v3206
        %v3212 = vadd.f32 %v3184, %v3208
        %v3213 = vld [vmem:[#allocation3 + $0x4] sm:$0xff]
        %v3214 = vld [vmem:[#allocation3 + $0xc] sm:$0xff]
        %3215 = vset.pattern.permute.xlu0 35
        %3216 = vperm.xlu0 %3215, %v361
        %v3217 = vpop.permute.xlu0 %3216
        %v3219 = vunpack.c.l.s4 839922192
        %v3220 = vunpack.c.0.s8 %v3219
        %v3221 = vlaneseq
        %v3222 = vshrl.u32 %v3221, 7
        %v3223 = vsub.s32 %v3220, %v3222
        %v3224 = vrot.slane %v3217, %v3223
        %v3226 = vmul.f32 %v3213, %v3224
        %v3227 = vmul.f32 %v3214, %v3224
        %3230 = vrot.lane.b32.xlu0 %v3226, 18
        %v3231 = vpop.permute.xlu0 %3230
        %3232 = vrot.lane.b32.xlu0 %v3227, 18
        %v3233 = vpop.permute.xlu0 %3232
        %v3234 = vrot.slane %v3231, 4
        %v3235 = vrot.slane %v3233, 4
        %v3236 = vsel %vm1533, %v3234, %v3231
        %v3237 = vsel %vm542, %v3234, %v3235
        %v3238 = vsel %vm1533, %v3237, %v3233
        %v3241 = vadd.f32 %v3211, %v3236
        %v3242 = vadd.f32 %v3212, %v3238
        %3243 = vset.pattern.permute.xlu0 36
        %3244 = vperm.xlu0 %3243, %v361
        %v3245 = vpop.permute.xlu0 %3244
        %v3247 = vunpack.c.l.s4 839922192
        %v3248 = vunpack.c.0.s8 %v3247
        %v3249 = vlaneseq
        %v3250 = vshrl.u32 %v3249, 7
        %v3251 = vsub.s32 %v3248, %v3250
        %v3252 = vrot.slane %v3245, %v3251
        %v3254 = vmul.f32 %v3213, %v3252
        %v3255 = vmul.f32 %v3214, %v3252
        %3258 = vrot.lane.b32.xlu0 %v3254, 17
        %v3259 = vpop.permute.xlu0 %3258
        %3260 = vrot.lane.b32.xlu0 %v3255, 17
        %v3261 = vpop.permute.xlu0 %3260
        %v3262 = vrot.slane %v3259, 4
        %v3263 = vrot.slane %v3261, 4
        %v3264 = vsel %vm1562, %v3262, %v3259
        %v3265 = vsel %vm542, %v3262, %v3263
        %v3266 = vsel %vm1562, %v3265, %v3261
        %v3269 = vadd.f32 %v3241, %v3264
        %v3270 = vadd.f32 %v3242, %v3266
        %3271 = vset.pattern.permute.xlu0 37
        %3272 = vperm.xlu0 %3271, %v361
        %v3273 = vpop.permute.xlu0 %3272
        %v3275 = vunpack.c.l.s4 839922192
        %v3276 = vunpack.c.0.s8 %v3275
        %v3277 = vlaneseq
        %v3278 = vshrl.u32 %v3277, 7
        %v3279 = vsub.s32 %v3276, %v3278
        %v3280 = vrot.slane %v3273, %v3279
        %v3282 = vmul.f32 %v3213, %v3280
        %v3283 = vmul.f32 %v3214, %v3280
        %3286 = vrot.lane.b32.xlu0 %v3282, 16
        %v3287 = vpop.permute.xlu0 %3286
        %3288 = vrot.lane.b32.xlu0 %v3283, 16
        %v3289 = vpop.permute.xlu0 %3288
        %v3290 = vrot.slane %v3287, 4
        %v3291 = vrot.slane %v3289, 4
        %v3292 = vsel %vm1591, %v3290, %v3287
        %v3293 = vsel %vm542, %v3290, %v3291
        %v3294 = vsel %vm1591, %v3293, %v3289
        %v3297 = vadd.f32 %v3269, %v3292
        %v3298 = vadd.f32 %v3270, %v3294
        %3299 = vset.pattern.permute.xlu0 38
        %3300 = vperm.xlu0 %3299, %v361
        %v3301 = vpop.permute.xlu0 %3300
        %v3303 = vunpack.c.l.s4 839922192
        %v3304 = vunpack.c.0.s8 %v3303
        %v3305 = vlaneseq
        %v3306 = vshrl.u32 %v3305, 7
        %v3307 = vsub.s32 %v3304, %v3306
        %v3308 = vrot.slane %v3301, %v3307
        %v3310 = vmul.f32 %v3213, %v3308
        %v3311 = vmul.f32 %v3214, %v3308
        %3314 = vrot.lane.b32.xlu0 %v3310, 15
        %v3315 = vpop.permute.xlu0 %3314
        %3316 = vrot.lane.b32.xlu0 %v3311, 15
        %v3317 = vpop.permute.xlu0 %3316
        %v3318 = vrot.slane %v3315, 4
        %v3319 = vrot.slane %v3317, 4
        %v3320 = vsel %vm1620, %v3318, %v3315
        %v3321 = vsel %vm542, %v3318, %v3319
        %v3322 = vsel %vm1620, %v3321, %v3317
        %v3325 = vadd.f32 %v3297, %v3320
        %v3326 = vadd.f32 %v3298, %v3322
        %3327 = vset.pattern.permute.xlu0 39
        %3328 = vperm.xlu0 %3327, %v361
        %v3329 = vpop.permute.xlu0 %3328
        %v3331 = vunpack.c.l.s4 839922192
        %v3332 = vunpack.c.0.s8 %v3331
        %v3333 = vlaneseq
        %v3334 = vshrl.u32 %v3333, 7
        %v3335 = vsub.s32 %v3332, %v3334
        %v3336 = vrot.slane %v3329, %v3335
        %v3338 = vmul.f32 %v3213, %v3336
        %v3339 = vmul.f32 %v3214, %v3336
        %3342 = vrot.lane.b32.xlu0 %v3338, 14
        %v3343 = vpop.permute.xlu0 %3342
        %3344 = vrot.lane.b32.xlu0 %v3339, 14
        %v3345 = vpop.permute.xlu0 %3344
        %v3346 = vrot.slane %v3343, 4
        %v3347 = vrot.slane %v3345, 4
        %v3348 = vsel %vm1649, %v3346, %v3343
        %v3349 = vsel %vm542, %v3346, %v3347
        %v3350 = vsel %vm1649, %v3349, %v3345
        %v3353 = vadd.f32 %v3325, %v3348
        %v3354 = vadd.f32 %v3326, %v3350
        %3355 = vset.pattern.permute.xlu0 40
        %3356 = vperm.xlu0 %3355, %v361
        %v3357 = vpop.permute.xlu0 %3356
        %v3359 = vunpack.c.l.s4 839922192
        %v3360 = vunpack.c.0.s8 %v3359
        %v3361 = vlaneseq
        %v3362 = vshrl.u32 %v3361, 7
        %v3363 = vsub.s32 %v3360, %v3362
        %v3364 = vrot.slane %v3357, %v3363
        %v3366 = vmul.f32 %v3213, %v3364
        %v3367 = vmul.f32 %v3214, %v3364
        %3370 = vrot.lane.b32.xlu0 %v3366, 13
        %v3371 = vpop.permute.xlu0 %3370
        %3372 = vrot.lane.b32.xlu0 %v3367, 13
        %v3373 = vpop.permute.xlu0 %3372
        %v3374 = vrot.slane %v3371, 4
        %v3375 = vrot.slane %v3373, 4
        %v3376 = vsel %vm1678, %v3374, %v3371
        %v3377 = vsel %vm542, %v3374, %v3375
        %v3378 = vsel %vm1678, %v3377, %v3373
        %v3381 = vadd.f32 %v3353, %v3376
        %v3382 = vadd.f32 %v3354, %v3378
        %3383 = vset.pattern.permute.xlu0 41
        %3384 = vperm.xlu0 %3383, %v361
        %v3385 = vpop.permute.xlu0 %3384
        %v3387 = vunpack.c.l.s4 839922192
        %v3388 = vunpack.c.0.s8 %v3387
        %v3389 = vlaneseq
        %v3390 = vshrl.u32 %v3389, 7
        %v3391 = vsub.s32 %v3388, %v3390
        %v3392 = vrot.slane %v3385, %v3391
        %v3394 = vmul.f32 %v3213, %v3392
        %v3395 = vmul.f32 %v3214, %v3392
        %3398 = vrot.lane.b32.xlu0 %v3394, 12
        %v3399 = vpop.permute.xlu0 %3398
        %3400 = vrot.lane.b32.xlu0 %v3395, 12
        %v3401 = vpop.permute.xlu0 %3400
        %v3402 = vrot.slane %v3399, 4
        %v3403 = vrot.slane %v3401, 4
        %v3404 = vsel %vm1707, %v3402, %v3399
        %v3405 = vsel %vm542, %v3402, %v3403
        %v3406 = vsel %vm1707, %v3405, %v3401
        %v3409 = vadd.f32 %v3381, %v3404
        %v3410 = vadd.f32 %v3382, %v3406
        %3411 = vset.pattern.permute.xlu0 42
        %3412 = vperm.xlu0 %3411, %v361
        %v3413 = vpop.permute.xlu0 %3412
        %v3415 = vunpack.c.l.s4 839922192
        %v3416 = vunpack.c.0.s8 %v3415
        %v3417 = vlaneseq
        %v3418 = vshrl.u32 %v3417, 7
        %v3419 = vsub.s32 %v3416, %v3418
        %v3420 = vrot.slane %v3413, %v3419
        %v3422 = vmul.f32 %v3213, %v3420
        %v3423 = vmul.f32 %v3214, %v3420
        %3426 = vrot.lane.b32.xlu0 %v3422, 124
        %v3427 = vpop.permute.xlu0 %3426
        %3428 = vrot.lane.b32.xlu0 %v3423, 124
        %v3429 = vpop.permute.xlu0 %3428
        %v3430 = vrot.slane %v3427, 4
        %v3431 = vrot.slane %v3429, 4
        %v3432 = vsel %vm542, %v3430, %v3431
        %v3433 = vsel %vm631, %v3427, %v3432
        %v3434 = vsel %vm631, %v3429, %v3431
        %v3437 = vadd.f32 %v3409, %v3433
        %v3438 = vadd.f32 %v3410, %v3434
        %3439 = vset.pattern.permute.xlu0 43
        %3440 = vperm.xlu0 %3439, %v361
        %v3441 = vpop.permute.xlu0 %3440
        %v3443 = vunpack.c.l.s4 839922192
        %v3444 = vunpack.c.0.s8 %v3443
        %v3445 = vlaneseq
        %v3446 = vshrl.u32 %v3445, 7
        %v3447 = vsub.s32 %v3444, %v3446
        %v3448 = vrot.slane %v3441, %v3447
        %v3450 = vmul.f32 %v3213, %v3448
        %v3451 = vmul.f32 %v3214, %v3448
        %3454 = vrot.lane.b32.xlu0 %v3450, 123
        %v3455 = vpop.permute.xlu0 %3454
        %3456 = vrot.lane.b32.xlu0 %v3451, 123
        %v3457 = vpop.permute.xlu0 %3456
        %v3458 = vrot.slane %v3455, 4
        %v3459 = vrot.slane %v3457, 4
        %v3460 = vsel %vm542, %v3458, %v3459
        %v3461 = vsel %vm660, %v3455, %v3460
        %v3462 = vsel %vm660, %v3457, %v3459
        %v3465 = vadd.f32 %v3437, %v3461
        %v3466 = vadd.f32 %v3438, %v3462
        %3467 = vset.pattern.permute.xlu0 44
        %3468 = vperm.xlu0 %3467, %v361
        %v3469 = vpop.permute.xlu0 %3468
        %v3471 = vunpack.c.l.s4 839922192
        %v3472 = vunpack.c.0.s8 %v3471
        %v3473 = vlaneseq
        %v3474 = vshrl.u32 %v3473, 7
        %v3475 = vsub.s32 %v3472, %v3474
        %v3476 = vrot.slane %v3469, %v3475
        %v3478 = vmul.f32 %v3213, %v3476
        %v3479 = vmul.f32 %v3214, %v3476
        %3482 = vrot.lane.b32.xlu0 %v3478, 122
        %v3483 = vpop.permute.xlu0 %3482
        %3484 = vrot.lane.b32.xlu0 %v3479, 122
        %v3485 = vpop.permute.xlu0 %3484
        %v3486 = vrot.slane %v3483, 4
        %v3487 = vrot.slane %v3485, 4
        %v3488 = vsel %vm542, %v3486, %v3487
        %v3489 = vsel %vm689, %v3483, %v3488
        %v3490 = vsel %vm689, %v3485, %v3487
        %v3493 = vadd.f32 %v3465, %v3489
        %v3494 = vadd.f32 %v3466, %v3490
        %3495 = vset.pattern.permute.xlu0 45
        %3496 = vperm.xlu0 %3495, %v361
        %v3497 = vpop.permute.xlu0 %3496
        %v3499 = vunpack.c.l.s4 839922192
        %v3500 = vunpack.c.0.s8 %v3499
        %v3501 = vlaneseq
        %v3502 = vshrl.u32 %v3501, 7
        %v3503 = vsub.s32 %v3500, %v3502
        %v3504 = vrot.slane %v3497, %v3503
        %v3506 = vmul.f32 %v3213, %v3504
        %v3507 = vmul.f32 %v3214, %v3504
        %3510 = vrot.lane.b32.xlu0 %v3506, 121
        %v3511 = vpop.permute.xlu0 %3510
        %3512 = vrot.lane.b32.xlu0 %v3507, 121
        %v3513 = vpop.permute.xlu0 %3512
        %v3514 = vrot.slane %v3511, 4
        %v3515 = vrot.slane %v3513, 4
        %v3516 = vsel %vm542, %v3514, %v3515
        %v3517 = vsel %vm1821, %v3511, %v3516
        %v3518 = vsel %vm1821, %v3513, %v3515
        %v3521 = vadd.f32 %v3493, %v3517
        %v3522 = vadd.f32 %v3494, %v3518
        %3523 = vset.pattern.permute.xlu0 46
        %3524 = vperm.xlu0 %3523, %v361
        %v3525 = vpop.permute.xlu0 %3524
        %v3527 = vunpack.c.l.s4 839922192
        %v3528 = vunpack.c.0.s8 %v3527
        %v3529 = vlaneseq
        %v3530 = vshrl.u32 %v3529, 7
        %v3531 = vsub.s32 %v3528, %v3530
        %v3532 = vrot.slane %v3525, %v3531
        %v3534 = vmul.f32 %v3213, %v3532
        %v3535 = vmul.f32 %v3214, %v3532
        %3538 = vrot.lane.b32.xlu0 %v3534, 120
        %v3539 = vpop.permute.xlu0 %3538
        %3540 = vrot.lane.b32.xlu0 %v3535, 120
        %v3541 = vpop.permute.xlu0 %3540
        %v3542 = vrot.slane %v3539, 4
        %v3543 = vrot.slane %v3541, 4
        %v3544 = vsel %vm542, %v3542, %v3543
        %v3545 = vsel %vm1850, %v3539, %v3544
        %v3546 = vsel %vm1850, %v3541, %v3543
        %v3549 = vadd.f32 %v3521, %v3545
        %v3550 = vadd.f32 %v3522, %v3546
        %3551 = vset.pattern.permute.xlu0 47
        %3552 = vperm.xlu0 %3551, %v361
        %v3553 = vpop.permute.xlu0 %3552
        %v3555 = vunpack.c.l.s4 839922192
        %v3556 = vunpack.c.0.s8 %v3555
        %v3557 = vlaneseq
        %v3558 = vshrl.u32 %v3557, 7
        %v3559 = vsub.s32 %v3556, %v3558
        %v3560 = vrot.slane %v3553, %v3559
        %v3562 = vmul.f32 %v3213, %v3560
        %v3563 = vmul.f32 %v3214, %v3560
        %3566 = vrot.lane.b32.xlu0 %v3562, 119
        %v3567 = vpop.permute.xlu0 %3566
        %3568 = vrot.lane.b32.xlu0 %v3563, 119
        %v3569 = vpop.permute.xlu0 %3568
        %v3570 = vrot.slane %v3567, 4
        %v3571 = vrot.slane %v3569, 4
        %v3572 = vsel %vm542, %v3570, %v3571
        %v3573 = vsel %vm1879, %v3567, %v3572
        %v3574 = vsel %vm1879, %v3569, %v3571
        %v3577 = vadd.f32 %v3549, %v3573
        %v3578 = vadd.f32 %v3550, %v3574
        %3579 = vset.pattern.permute.xlu0 48
        %3580 = vperm.xlu0 %3579, %v361
        %v3581 = vpop.permute.xlu0 %3580
        %v3583 = vunpack.c.l.s4 839922192
        %v3584 = vunpack.c.0.s8 %v3583
        %v3585 = vlaneseq
        %v3586 = vshrl.u32 %v3585, 7
        %v3587 = vsub.s32 %v3584, %v3586
        %v3588 = vrot.slane %v3581, %v3587
        %v3590 = vmul.f32 %v3213, %v3588
        %v3591 = vmul.f32 %v3214, %v3588
        %3594 = vrot.lane.b32.xlu0 %v3590, 118
        %v3595 = vpop.permute.xlu0 %3594
        %3596 = vrot.lane.b32.xlu0 %v3591, 118
        %v3597 = vpop.permute.xlu0 %3596
        %v3598 = vrot.slane %v3595, 4
        %v3599 = vrot.slane %v3597, 4
        %v3600 = vsel %vm542, %v3598, %v3599
        %v3601 = vsel %vm1908, %v3595, %v3600
        %v3602 = vsel %vm1908, %v3597, %v3599
        %v3605 = vadd.f32 %v3577, %v3601
        %v3606 = vadd.f32 %v3578, %v3602
        %3608 = vset.pattern.permute.xlu0 0
        %3609 = vperm.xlu0 %3608, %v362
        %v3610 = vpop.permute.xlu0 %3609
        %v3612 = vunpack.c.l.s4 839922192
        %v3613 = vunpack.c.0.s8 %v3612
        %v3614 = vlaneseq
        %v3615 = vshrl.u32 %v3614, 7
        %v3616 = vsub.s32 %v3613, %v3615
        %v3617 = vrot.slane %v3610, %v3616
        %v3619 = vadd.f32 %v3605, %v3617
        %v3620 = vadd.f32 %v3606, %v3617
        %v3621 = vld [vmem:[%s357] sm:$0xf]
        %3623 = vrot.lane.b32.xlu0 %v3619, 66
        %v3624 = vpop.permute.xlu0 %3623
        %v3626 = vadd.f32 %v3621, %v3624
        %vm3627 = vcmask 125952
        %3628 = vst.msk [vmem:[%s352] sm:$0xf] %vm3627, %v3626
        %v3629 = vld [vmem:[%s357] sm:$0xf]
        %3630 = vrot.lane.b32.xlu0 %v3619, 60
        %v3631 = vpop.permute.xlu0 %3630
        %v3633 = vadd.f32 %v3629, %v3631
        %vm3634 = vcmask 257152
        %3635 = vst.msk [vmem:[%s352] sm:$0xf] %vm3634, %v3633
        %v3636 = vld [vmem:[%s357] sm:$0xf]
        %3637 = vrot.lane.b32.xlu0 %v3619, 54
        %v3638 = vpop.permute.xlu0 %3637
        %v3640 = vadd.f32 %v3636, %v3638
        %vm3641 = vcmask 388352
        %3642 = vst.msk [vmem:[%s352] sm:$0xf] %vm3641, %v3640
        %v3643 = vld [vmem:[%s357] sm:$0xf]
        %3644 = vrot.lane.b32.xlu0 %v3619, 48
        %v3645 = vpop.permute.xlu0 %3644
        %v3646 = vrot.slane %v3645, 4
        %vm3647 = vcmask 392192
        %v3648 = vsel %vm3647, %v3645, %v3646
        %v3650 = vadd.f32 %v3643, %v3648
        %vm3651 = vcmask 519552
        %3652 = vst.msk [vmem:[%s352] sm:$0xf] %vm3651, %v3650
        %v3653 = vld [vmem:[%s357] sm:$0xf]
        %3654 = vrot.lane.b32.xlu0 %v3619, 42
        %v3655 = vpop.permute.xlu0 %3654
        %v3656 = vrot.slane %v3655, 4
        %vm3657 = vcmask 343040
        %v3658 = vsel %vm3657, %v3655, %v3656
        %v3660 = vadd.f32 %v3653, %v3658
        %vm3661 = vcmask 650752
        %3662 = vst.msk [vmem:[%s352] sm:$0xf] %vm3661, %v3660
        %v3663 = vld [vmem:[%s357] sm:$0xf]
        %3664 = vrot.lane.b32.xlu0 %v3619, 36
        %v3665 = vpop.permute.xlu0 %3664
        %v3666 = vrot.slane %v3665, 4
        %v3667 = vsel %vm1444, %v3665, %v3666
        %v3669 = vadd.f32 %v3663, %v3667
        %vm3670 = vcmask 781952
        %3671 = vst.msk [vmem:[%s352] sm:$0xf] %vm3670, %v3669
        %v3672 = vld [vmem:[%s357] sm:$0xf]
        %3673 = vrot.lane.b32.xlu0 %v3619, 30
        %v3674 = vpop.permute.xlu0 %3673
        %v3675 = vrot.slane %v3674, 4
        %vm3676 = vcmask 244736
        %v3677 = vsel %vm3676, %v3674, %v3675
        %v3679 = vadd.f32 %v3672, %v3677
        %vm3680 = vcmask 913152
        %3681 = vst.msk [vmem:[%s352] sm:$0xf] %vm3680, %v3679
        %v3682 = vld [vmem:[%s357] sm:$0xf]
        %3683 = vrot.lane.b32.xlu0 %v3619, 24
        %v3684 = vpop.permute.xlu0 %3683
        %v3685 = vrot.slane %v3684, 4
        %vm3686 = vcmask 195584
        %v3687 = vsel %vm3686, %v3684, %v3685
        %v3689 = vadd.f32 %v3682, %v3687
        %vm3690 = vcmask 1044352
        %3691 = vst.msk [vmem:[%s352] sm:$0xf] %vm3690, %v3689
        %v3692 = vld [vmem:[%s357 + $0x4] sm:$0xf]
        %3693 = vrot.lane.b32.xlu0 %v3619, 18
        %v3694 = vpop.permute.xlu0 %3693
        %v3695 = vrot.slane %v3694, 4
        %v3697 = vadd.f32 %v3692, %v3695
        %3698 = vst.msk [vmem:[%s352 + $0x4] sm:$0xf] %vm3627, %v3697
        %v3699 = vld [vmem:[%s357 + $0x4] sm:$0xf]
        %3701 = vrot.lane.b32.xlu0 %v3620, 12
        %v3702 = vpop.permute.xlu0 %3701
        %v3704 = vadd.f32 %v3699, %v3702
        %3705 = vst.msk [vmem:[%s352 + $0x4] sm:$0xf] %vm3634, %v3704
        %v3706 = vld [vmem:[%s357 + $0x4] sm:$0xf]
        %3707 = vrot.lane.b32.xlu0 %v3620, 6
        %v3708 = vpop.permute.xlu0 %3707
        %v3710 = vadd.f32 %v3706, %v3708
        %3711 = vst.msk [vmem:[%s352 + $0x4] sm:$0xf] %vm3641, %v3710
        %v3712 = vld [vmem:[%s357 + $0x4] sm:$0xf]
        %v3713 = vadd.f32 %v3712, %v3620
        %3714 = vst.msk [vmem:[%s352 + $0x4] sm:$0xf] %vm3651, %v3713
        %v3715 = vld [vmem:[%s357 + $0x4] sm:$0xf]
        %3716 = vrot.lane.b32.xlu0 %v3620, 122
        %v3717 = vpop.permute.xlu0 %3716
        %v3719 = vadd.f32 %v3715, %v3717
        %3720 = vst.msk [vmem:[%s352 + $0x4] sm:$0xf] %vm3661, %v3719
        %v3721 = vld [vmem:[%s357 + $0x4] sm:$0xf]
        %3722 = vrot.lane.b32.xlu0 %v3620, 116
        %v3723 = vpop.permute.xlu0 %3722
        %v3725 = vadd.f32 %v3721, %v3723
        %3726 = vst.msk [vmem:[%s352 + $0x4] sm:$0xf] %vm3670, %v3725
        %v3727 = vld [vmem:[%s357 + $0x4] sm:$0xf]
        %3728 = vrot.lane.b32.xlu0 %v3620, 110
        %v3729 = vpop.permute.xlu0 %3728
        %v3730 = vrot.slane %v3729, 4
        %vm3731 = vcmask 900096
        %v3732 = vsel %vm3731, %v3729, %v3730
        %v3734 = vadd.f32 %v3727, %v3732
        %3735 = vst.msk [vmem:[%s352 + $0x4] sm:$0xf] %vm3680, %v3734
        %v3736 = vld [vmem:[%s357 + $0x4] sm:$0xf]
        %3737 = vrot.lane.b32.xlu0 %v3620, 104
        %v3738 = vpop.permute.xlu0 %3737
        %v3739 = vrot.slane %v3738, 4
        %v3740 = vsel %vm776, %v3738, %v3739
        %v3742 = vadd.f32 %v3736, %v3740
        %3743 = vst.msk [vmem:[%s352 + $0x4] sm:$0xf] %vm3690, %v3742
        %s3744 = sand.u32 %s247, 1
        %s3745 = scalar_lea.sflag [#allocation5], %s3744
        %s3746 = sand.u32 %s247, 1
        %s3747 = smul.addr %s3746, 8
        %s3748 = scalar_lea.vmem [#allocation4], %s3747
        // Predicated region
        $region61: #{tpu_custom_call.1} parent=59 // pred_check
          %p3749 = pneg %p257
        $region62: #{tpu_custom_call.1} parent=59 // pred_check_branch
          %3751 = sbr.rel (%p3749) target = $region64
        $region63: #{tpu_custom_call.1} parent=59 // pred_region
          %s3753 = ssub.s32 128, 128
          %3754 = vsyncadd %s3745, %s3753
          %s3755 = smul.addr %s24, 2
          %s3756 = smul.addr %s3755, 64
          %s3757 = scalar_lea.hbm %s10, %s3756
          %s3759 = sshll.u32 %s3748, 4
          %s3760 = int_to_ptr.vmem [resolvable:$true] %s3759
          %3762 = dma.vmem_to_hbm [thread:$0]  %s3760, 128, %s3757, %s3745
        $region64: #{tpu_custom_call.1} parent=59 // pred_fallthru
          _
      $region60: #{tpu_custom_call.1} parent=5 // pred_fallthru
        _
      %p3763 = scmp.le.s32.totalorder 2, %s19
      // Predicated region
      $region65: #{tpu_custom_call.1} parent=5 // pred_check
        %p3764 = pneg %p3763
      $region66: #{tpu_custom_call.1} parent=5 // pred_check_branch
        %3766 = sbr.rel (%p3764) target = $region68
      $region67: #{tpu_custom_call.1} parent=5 // pred_region
        %s3767 = ssub.s32 %s19, 2
        // Predicated region
        $region69: #{tpu_custom_call.1} parent=67 // pred_check
          %p3768 = pneg %p263
        $region70: #{tpu_custom_call.1} parent=67 // pred_check_branch
          %3770 = sbr.rel (%p3768) target = $region72
        $region71: #{tpu_custom_call.1} parent=67 // pred_region
          %s3771 = sand.u32 %s248, 1
          %s3772 = scalar_lea.sflag [#allocation5], %s3771
          %s3773 = sand.u32 %s248, 1
          %s3774 = smul.addr %s3773, 8
          %s3775 = scalar_lea.vmem [#allocation4], %s3774
          %3776 = dma.done %s3772, 128
        $region72: #{tpu_custom_call.1} parent=67 // pred_fallthru
          _
      $region68: #{tpu_custom_call.1} parent=5 // pred_fallthru
        _
    $region6: #{tpu_custom_call.1} parent=1 // loop_footer
      %s23 = sadd.s32 1, %s19
    $region7: #{tpu_custom_call.1} parent=1 // loop_footer_branch
      %18 = sbr.rel target = $region3
    $region8: #{tpu_custom_call.1} parent=1 // loop_exit
      _
    %3777 = vsyncpa [#allocation5], 1
    %s3778 = scalar_lea.sflag [#allocation5], 1
    %3779 = vsyncpa %s3778, 1

</llo_original>
